<compile_context>
chip_gen: v7x
topology: tpu7x:2x2x1
jax: 0.10.0
libtpu: 0.0.40
codegen_flags: <defaults>
</compile_context>

<pallas_src>
import jax
import jax.numpy as jnp
from jax.experimental import pallas as pl
from jax.experimental.pallas import tpu as pltpu

# ---- small synthetic BERT config (consistent with the module's forward) ----
VOCAB = 100
TYPE_VOCAB = 2
MAX_POS = 64
B = 2             # batch_size
S = 8             # max_length (sequence length)
D = 32            # D_in (hidden size)
N_HEADS = 2
HEAD_DIM = D // N_HEADS
FF = 64           # feed-forward intermediate size
N_LAYERS = 2
H_CLS = 16        # classifier hidden H
D_OUT = 2         # num labels
LOGITS_PAD = 128  # lane-dense padded logits width (real logits in cols [:D_OUT])
LN_EPS = 1e-12
MASK_BIAS = -30.0 # clamped additive mask bias (lets softmax skip the row-max reduce)

# ---- misc slab layout: f32 [MISC_ROWS, 128] ----
ROW_PT = 0                    # rows 0..B*S-1 : (pos + token-type) embeddings, tiled over batch
ROW_EMB_G = B * S             # embedding LayerNorm gamma
ROW_EMB_B = ROW_EMB_G + 1     # embedding LayerNorm beta
ROW_BC1 = ROW_EMB_B + 1       # classifier bias 1 (H_CLS)
ROW_BC2 = ROW_BC1 + 1         # classifier bias 2 (padded to 128 lanes)
ROW_WC1 = ROW_BC2 + 1         # classifier W1: D rows x H_CLS lanes
ROW_WC2 = ROW_WC1 + D         # classifier W2: H_CLS rows x 128 lanes (zero-padded)
MISC_ROWS = ROW_WC2 + H_CLS   # = 68

# ---- per-layer bias/LN slab: f32 [L, 8, 128] ----
#   row 0: bqkv(3D)  1: bo(D)  2: ln1_g  3: ln1_b  4: bf1(FF)  5: bf2(D)  6: ln2_g  7: ln2_b
VEC_ROWS, VEC_W = 8, 128

# ---- per-layer packed matmul weights: bf16 [L, W_ROWS, W_LANES] ----
#   rows [0,D),    lanes [0,3D)       : Wqkv  (Wq|Wk|Wv, heads contiguous inside each)
#   rows [0,D),    lanes [3D,4D)      : Wo
#   rows [0,D),    lanes [4D,4D+FF)   : W1  (D -> FF)
#   rows [D,D+FF), lanes [0,D)        : W2  (FF -> D)
W_ROWS = D + FF          # 96
W_LANES = 4 * D + FF     # 192


def _layernorm(x, gamma, beta):
    mu = jnp.mean(x, axis=-1, keepdims=True)
    var = jnp.mean(jnp.square(x - mu), axis=-1, keepdims=True)
    return (x - mu) * jax.lax.rsqrt(var + LN_EPS) * gamma + beta


# ---------------- fused Pallas kernel ----------------

def bert_fused_kernel(ids_ref, mask_ref, emb_tbl_ref, misc_ref, vec_ref, w_ref, o_ref):
    """Embeddings (in-kernel gather) -> N_LAYERS x (MHA+LN, FFN+LN) -> [CLS] -> classifier."""
    f32, bf16 = jnp.float32, jnp.bfloat16

    # 1) embeddings: one-hot gather on the MXU + (pos + token-type) + LayerNorm
    ids = ids_ref[...]                                                     # (B*S, 1) int32
    vocab_iota = jax.lax.broadcasted_iota(jnp.int32, (B * S, VOCAB), 1)
    one_hot = (vocab_iota == ids).astype(bf16)                             # (B*S, VOCAB)
    word = jnp.dot(one_hot, emb_tbl_ref[...], preferred_element_type=f32)  # (B*S, D)
    emb = word + misc_ref[ROW_PT:ROW_PT + B * S, :D]                       # pre-tiled pos+type
    x2 = _layernorm(emb,
                    misc_ref[ROW_EMB_G:ROW_EMB_G + 1, :D],
                    misc_ref[ROW_EMB_B:ROW_EMB_B + 1, :D])                 # (B*S, D) f32

    # additive attention-mask bias, computed ONCE (hoisted out of layer/head loops)
    bias3 = ((1.0 - mask_ref[...].astype(f32)) * MASK_BIAS)[:, None, :]    # (B, 1, S)
    scale = HEAD_DIM ** -0.5

    # 2) encoder layers (statically unrolled)
    for l in range(N_LAYERS):
        bqkv  = vec_ref[l, 0:1, :3 * D]
        bo    = vec_ref[l, 1:2, :D]
        ln1_g = vec_ref[l, 2:3, :D]
        ln1_b = vec_ref[l, 3:4, :D]
        bf1   = vec_ref[l, 4:5, :FF]
        bf2   = vec_ref[l, 5:6, :D]
        ln2_g = vec_ref[l, 6:7, :D]
        ln2_b = vec_ref[l, 7:8, :D]

        # fused QKV projection: one bf16 MXU matmul, f32 accumulation
        qkv = jnp.dot(x2.astype(bf16), w_ref[l, :D, :3 * D],
                      preferred_element_type=f32) + bqkv                   # (B*S, 3D)
        qkv3 = qkv.reshape(B, S, 3 * D)

        # multi-head attention (static 2-iter loop; see header note).  Per-head context
        # is projected through its Wo row-block and summed == concat -> Wo, so there is
        # no lane-dim head concat.
        attn = None
        for h in range(N_HEADS):
            lo = h * HEAD_DIM
            q_h = qkv3[:, :, lo:lo + HEAD_DIM]                             # (B, S, hd)
            k_h = qkv3[:, :, D + lo:D + lo + HEAD_DIM]
            v_h = qkv3[:, :, 2 * D + lo:2 * D + lo + HEAD_DIM]
            s = jnp.einsum('bqd,bkd->bqk', q_h, k_h,
                           preferred_element_type=f32) * scale + bias3     # (B, S, S)
            # no row-max subtraction: scores are tightly bounded and the mask bias is
            # clamped to -30, so exp() cannot overflow here.
            p = jnp.exp(s)
            p = p * pl.reciprocal(jnp.sum(p, axis=-1, keepdims=True), approx=True)
            ctx = jnp.einsum('bqk,bkd->bqd', p, v_h, preferred_element_type=f32)
            part = jnp.dot(ctx.reshape(B * S, HEAD_DIM).astype(bf16),
                           w_ref[l, lo:lo + HEAD_DIM, 3 * D:4 * D],
                           preferred_element_type=f32)                     # (B*S, D)
            attn = part if attn is None else attn + part
        attn = attn + bo

        x1 = _layernorm(x2 + attn, ln1_g, ln1_b)

        # feed-forward
        # TODO(synk): HF BERT uses exact erf-GELU; tanh-approx GELU used here.
        hid = jnp.dot(x1.astype(bf16), w_ref[l, :D, 4 * D:4 * D + FF],
                      preferred_element_type=f32) + bf1
        hid = jax.nn.gelu(hid, approximate=True)
        y = jnp.dot(hid.astype(bf16), w_ref[l, D:D + FF, :D],
                    preferred_element_type=f32) + bf2
        x2 = _layernorm(x1 + y, ln2_g, ln2_b)

    # 3) classifier on the [CLS] hidden state: Linear -> ReLU -> Linear (lane-dense store)
    cls = x2.reshape(B, S, D)[:, 0, :]                                     # (B, D)
    hcl = jnp.dot(cls, misc_ref[ROW_WC1:ROW_WC1 + D, :H_CLS],
                  preferred_element_type=f32) + misc_ref[ROW_BC1:ROW_BC1 + 1, :H_CLS]
    hcl = jnp.maximum(hcl, 0.0)
    o_ref[...] = (jnp.dot(hcl, misc_ref[ROW_WC2:ROW_WC2 + H_CLS, :],
                          preferred_element_type=f32)
                  + misc_ref[ROW_BC2:ROW_BC2 + 1, :])                      # (B, 128)


# ---------------- parameters ----------------

def init_params(key):
    def nrm(k, shape):
        return 0.02 * jax.random.normal(k, shape, dtype=jnp.float32)

    keys = jax.random.split(key, 5 + N_LAYERS)
    word_emb = nrm(keys[0], (VOCAB, D))
    pos_emb = nrm(keys[1], (MAX_POS, D))
    type_emb = nrm(keys[2], (TYPE_VOCAB, D))
    wc1 = nrm(keys[3], (D, H_CLS))
    wc2 = nrm(keys[4], (H_CLS, D_OUT))

    # misc slab: (pos+type) rows, embedding LN, classifier weights/biases
    misc = jnp.zeros((MISC_ROWS, 128), jnp.float32)
    pos_type = pos_emb[:S] + type_emb[0][None, :]        # token_type_id == 0 everywhere
    misc = misc.at[ROW_PT:ROW_PT + B * S, :D].set(jnp.tile(pos_type, (B, 1)))
    misc = misc.at[ROW_EMB_G, :D].set(1.0)               # emb-LN gamma (beta stays 0)
    misc = misc.at[ROW_WC1:ROW_WC1 + D, :H_CLS].set(wc1)       # bc1/bc2 stay 0
    misc = misc.at[ROW_WC2:ROW_WC2 + H_CLS, :D_OUT].set(wc2)   # zero-padded to 128 lanes

    # per-layer packed matmul weights (bf16) and bias/LN slab (f32)
    w_blocks, vecs = [], []
    for li in range(N_LAYERS):
        lk = jax.random.split(keys[5 + li], 6)
        wq, wk, wv = nrm(lk[0], (D, D)), nrm(lk[1], (D, D)), nrm(lk[2], (D, D))
        blk = jnp.zeros((W_ROWS, W_LANES), jnp.float32)
        blk = blk.at[:D, 0:3 * D].set(jnp.concatenate([wq, wk, wv], axis=1))
        blk = blk.at[:D, 3 * D:4 * D].set(nrm(lk[3], (D, D)))          # Wo
        blk = blk.at[:D, 4 * D:4 * D + FF].set(nrm(lk[4], (D, FF)))    # W1
        blk = blk.at[D:D + FF, 0:D].set(nrm(lk[5], (FF, D)))           # W2
        w_blocks.append(blk)

        v = jnp.zeros((VEC_ROWS, VEC_W), jnp.float32)
        v = v.at[2, :D].set(1.0)   # ln1 gamma
        v = v.at[6, :D].set(1.0)   # ln2 gamma (biases / betas zero, BERT-style init)
        vecs.append(v)

    return {
        'emb_tbl': word_emb.astype(jnp.bfloat16),          # (VOCAB, D)    bf16
        'misc': misc,                                      # (68, 128)     f32
        'vec': jnp.stack(vecs),                            # (L, 8, 128)   f32
        'w': jnp.stack(w_blocks).astype(jnp.bfloat16),     # (L, 96, 192)  bf16
    }


# ---------------- forward wrapper ----------------

_VMEM = pl.BlockSpec(memory_space=pltpu.MemorySpace.VMEM)


def bert_classifier2_forward(params, input_ids, attention_mask):
    """Mirrors BertClassifier2.forward: BERT -> last_hidden_state[:, 0, :] -> classifier."""
    ids_col = input_ids.astype(jnp.int32).reshape(B * S, 1)   # token ids as a column

    # Single fused call, no grid: total resident footprint is ~130 KB of VMEM, far under
    # the scoped default on v5e/v6e/v7x, so no tiling / vmem_limit change is needed.
    # If batch grows, add a grid over batch blocks with
    # dimension_semantics=("parallel",) so both v7x TensorCores execute.
    logits_pad = pl.pallas_call(
        bert_fused_kernel,
        out_shape=jax.ShapeDtypeStruct((B, LOGITS_PAD), jnp.float32),
        in_specs=[_VMEM] * 6,
        out_specs=_VMEM,
    )(ids_col, attention_mask.astype(jnp.int32), params['emb_tbl'],
      params['misc'], params['vec'], params['w'])

    return logits_pad[:, :D_OUT]


if __name__ == "__main__":
    key = jax.random.PRNGKey(0)
    pkey, ikey = jax.random.split(key)

    params = init_params(pkey)
    input_ids = jax.random.randint(ikey, (B, S), 0, VOCAB, dtype=jnp.int32)
    attention_mask = jnp.array(
        [[1, 1, 1, 1, 1, 1, 1, 1],
         [1, 1, 1, 1, 1, 1, 0, 0]], dtype=jnp.int32)

    fwd = jax.jit(bert_classifier2_forward)
    logits = fwd(params, input_ids, attention_mask)
    logits = jax.block_until_ready(logits)
    assert logits.shape == (B, D_OUT) and logits.dtype == jnp.float32
    assert bool(jnp.all(jnp.isfinite(logits)))
    print("KERNEL_OK")
</pallas_src>

<mosaic_0001>
module attributes {stable_mosaic.version = 11 : i64} {
  func.func @bert_fused_kernel(%arg0: memref<16x1xi32, #tpu.memory_space<vmem>>, %arg1: memref<2x8xi32, #tpu.memory_space<vmem>>, %arg2: memref<100x32xbf16, #tpu.memory_space<vmem>>, %arg3: memref<68x128xf32, #tpu.memory_space<vmem>>, %arg4: memref<2x8x128xf32, #tpu.memory_space<vmem>>, %arg5: memref<2x96x192xbf16, #tpu.memory_space<vmem>>, %arg6: memref<2x128xf32, #tpu.memory_space<vmem>>) attributes {dimension_semantics = [], scalar_prefetch = 0 : i64, scratch_operands = 0 : i64, tpu.core_type = #tpu.core_type<tc>} {
    %c0 = arith.constant 0 : index
    %c0_0 = arith.constant 0 : index
    %0 = vector.load %arg0[%c0, %c0_0] : memref<16x1xi32, #tpu.memory_space<vmem>>, vector<16x1xi32>
    %1 = tpu.iota {dimensions = array<i32: 1>} : vector<16x100xi32>
    %2 = vector.broadcast %0 : vector<16x1xi32> to vector<16x100xi32>
    %3 = arith.cmpi eq, %1, %2 : vector<16x100xi32>
    %4 = arith.extui %3 : vector<16x100xi1> to vector<16x100xi32>
    %5 = arith.sitofp %4 : vector<16x100xi32> to vector<16x100xf32>
    %6 = arith.truncf %5 : vector<16x100xf32> to vector<16x100xbf16>
    %c0_1 = arith.constant 0 : index
    %c0_2 = arith.constant 0 : index
    %7 = vector.load %arg2[%c0_1, %c0_2] : memref<100x32xbf16, #tpu.memory_space<vmem>>, vector<100x32xbf16>
    %cst = arith.constant dense<0.000000e+00> : vector<16x32xf32>
    %8 = tpu.matmul %6, %7, %cst {dimension_numbers = #tpu.dot_dimension_numbers<[1], [0], [0], [1], [0, 0, 1, 1], [], []>} : vector<16x100xbf16>, vector<100x32xbf16>, vector<16x32xf32> -> vector<16x32xf32>
    %c0_3 = arith.constant 0 : index
    %c0_4 = arith.constant 0 : index
    %9 = vector.load %arg3[%c0_3, %c0_4] : memref<68x128xf32, #tpu.memory_space<vmem>>, vector<16x32xf32>
    %10 = arith.addf %8, %9 : vector<16x32xf32>
    %c16 = arith.constant 16 : index
    %c0_5 = arith.constant 0 : index
    %11 = vector.load %arg3[%c16, %c0_5] : memref<68x128xf32, #tpu.memory_space<vmem>>, vector<1x32xf32>
    %c17 = arith.constant 17 : index
    %c0_6 = arith.constant 0 : index
    %12 = vector.load %arg3[%c17, %c0_6] : memref<68x128xf32, #tpu.memory_space<vmem>>, vector<1x32xf32>
    %cst_7 = arith.constant dense<0.000000e+00> : vector<16xf32>
    %13 = vector.multi_reduction <add>, %10, %cst_7 [1] : vector<16x32xf32> to vector<16xf32>
    %14 = vector.shape_cast %13 : vector<16xf32> to vector<16x1xf32>
    %cst_8 = arith.constant 3.200000e+01 : f32
    %15 = vector.broadcast %cst_8 : f32 to vector<16x1xf32>
    %16 = arith.divf %14, %15 : vector<16x1xf32>
    %17 = vector.broadcast %16 : vector<16x1xf32> to vector<16x32xf32>
    %18 = arith.subf %10, %17 : vector<16x32xf32>
    %19 = arith.mulf %18, %18 : vector<16x32xf32>
    %cst_9 = arith.constant dense<0.000000e+00> : vector<16xf32>
    %20 = vector.multi_reduction <add>, %19, %cst_9 [1] : vector<16x32xf32> to vector<16xf32>
    %21 = vector.shape_cast %20 : vector<16xf32> to vector<16x1xf32>
    %cst_10 = arith.constant 3.200000e+01 : f32
    %22 = vector.broadcast %cst_10 : f32 to vector<16x1xf32>
    %23 = arith.divf %21, %22 : vector<16x1xf32>
    %24 = vector.broadcast %16 : vector<16x1xf32> to vector<16x32xf32>
    %25 = arith.subf %10, %24 : vector<16x32xf32>
    %cst_11 = arith.constant 9.99999996E-13 : f32
    %26 = vector.broadcast %cst_11 : f32 to vector<16x1xf32>
    %27 = arith.addf %23, %26 : vector<16x1xf32>
    %28 = math.rsqrt %27 : vector<16x1xf32>
    %29 = vector.broadcast %28 : vector<16x1xf32> to vector<16x32xf32>
    %30 = arith.mulf %25, %29 : vector<16x32xf32>
    %31 = vector.broadcast %11 : vector<1x32xf32> to vector<16x32xf32>
    %32 = arith.mulf %30, %31 : vector<16x32xf32>
    %33 = vector.broadcast %12 : vector<1x32xf32> to vector<16x32xf32>
    %34 = arith.addf %32, %33 : vector<16x32xf32>
    %c0_12 = arith.constant 0 : index
    %c0_13 = arith.constant 0 : index
    %35 = vector.load %arg1[%c0_12, %c0_13] : memref<2x8xi32, #tpu.memory_space<vmem>>, vector<2x8xi32>
    %36 = arith.sitofp %35 : vector<2x8xi32> to vector<2x8xf32>
    %cst_14 = arith.constant 1.000000e+00 : f32
    %37 = vector.broadcast %cst_14 : f32 to vector<2x8xf32>
    %38 = arith.subf %37, %36 : vector<2x8xf32>
    %cst_15 = arith.constant -3.000000e+01 : f32
    %39 = vector.broadcast %cst_15 : f32 to vector<2x8xf32>
    %40 = arith.mulf %38, %39 : vector<2x8xf32>
    %41 = vector.shape_cast %40 : vector<2x8xf32> to vector<2x1x8xf32>
    %c0_16 = arith.constant 0 : index
    %c0_17 = arith.constant 0 : index
    %c0_18 = arith.constant 0 : index
    %42 = vector.load %arg4[%c0_16, %c0_17, %c0_18] : memref<2x8x128xf32, #tpu.memory_space<vmem>>, vector<1x1x96xf32>
    %43 = vector.shape_cast %42 : vector<1x1x96xf32> to vector<1x96xf32>
    %c0_19 = arith.constant 0 : index
    %c1 = arith.constant 1 : index
    %c0_20 = arith.constant 0 : index
    %44 = vector.load %arg4[%c0_19, %c1, %c0_20] : memref<2x8x128xf32, #tpu.memory_space<vmem>>, vector<1x1x32xf32>
    %45 = vector.shape_cast %44 : vector<1x1x32xf32> to vector<1x32xf32>
    %c0_21 = arith.constant 0 : index
    %c2 = arith.constant 2 : index
    %c0_22 = arith.constant 0 : index
    %46 = vector.load %arg4[%c0_21, %c2, %c0_22] : memref<2x8x128xf32, #tpu.memory_space<vmem>>, vector<1x1x32xf32>
    %47 = vector.shape_cast %46 : vector<1x1x32xf32> to vector<1x32xf32>
    %c0_23 = arith.constant 0 : index
    %c3 = arith.constant 3 : index
    %c0_24 = arith.constant 0 : index
    %48 = vector.load %arg4[%c0_23, %c3, %c0_24] : memref<2x8x128xf32, #tpu.memory_space<vmem>>, vector<1x1x32xf32>
    %49 = vector.shape_cast %48 : vector<1x1x32xf32> to vector<1x32xf32>
    %c0_25 = arith.constant 0 : index
    %c4 = arith.constant 4 : index
    %c0_26 = arith.constant 0 : index
    %50 = vector.load %arg4[%c0_25, %c4, %c0_26] : memref<2x8x128xf32, #tpu.memory_space<vmem>>, vector<1x1x64xf32>
    %51 = vector.shape_cast %50 : vector<1x1x64xf32> to vector<1x64xf32>
    %c0_27 = arith.constant 0 : index
    %c5 = arith.constant 5 : index
    %c0_28 = arith.constant 0 : index
    %52 = vector.load %arg4[%c0_27, %c5, %c0_28] : memref<2x8x128xf32, #tpu.memory_space<vmem>>, vector<1x1x32xf32>
    %53 = vector.shape_cast %52 : vector<1x1x32xf32> to vector<1x32xf32>
    %c0_29 = arith.constant 0 : index
    %c6 = arith.constant 6 : index
    %c0_30 = arith.constant 0 : index
    %54 = vector.load %arg4[%c0_29, %c6, %c0_30] : memref<2x8x128xf32, #tpu.memory_space<vmem>>, vector<1x1x32xf32>
    %55 = vector.shape_cast %54 : vector<1x1x32xf32> to vector<1x32xf32>
    %c0_31 = arith.constant 0 : index
    %c7 = arith.constant 7 : index
    %c0_32 = arith.constant 0 : index
    %56 = vector.load %arg4[%c0_31, %c7, %c0_32] : memref<2x8x128xf32, #tpu.memory_space<vmem>>, vector<1x1x32xf32>
    %57 = vector.shape_cast %56 : vector<1x1x32xf32> to vector<1x32xf32>
    %58 = arith.truncf %34 : vector<16x32xf32> to vector<16x32xbf16>
    %c0_33 = arith.constant 0 : index
    %c0_34 = arith.constant 0 : index
    %c0_35 = arith.constant 0 : index
    %59 = vector.load %arg5[%c0_33, %c0_34, %c0_35] : memref<2x96x192xbf16, #tpu.memory_space<vmem>>, vector<1x32x96xbf16>
    %60 = vector.shape_cast %59 : vector<1x32x96xbf16> to vector<32x96xbf16>
    %cst_36 = arith.constant dense<0.000000e+00> : vector<16x96xf32>
    %61 = tpu.matmul %58, %60, %cst_36 {dimension_numbers = #tpu.dot_dimension_numbers<[1], [0], [0], [1], [0, 0, 1, 1], [], []>} : vector<16x32xbf16>, vector<32x96xbf16>, vector<16x96xf32> -> vector<16x96xf32>
    %62 = vector.broadcast %43 : vector<1x96xf32> to vector<16x96xf32>
    %63 = arith.addf %61, %62 : vector<16x96xf32>
    %64 = vector.shape_cast %63 : vector<16x96xf32> to vector<2x8x96xf32>
    %65 = vector.extract_strided_slice %64 {offsets = [0, 0, 0], sizes = [2, 8, 16], strides = [1, 1, 1]} : vector<2x8x96xf32> to vector<2x8x16xf32>
    %66 = vector.extract_strided_slice %64 {offsets = [0, 0, 32], sizes = [2, 8, 16], strides = [1, 1, 1]} : vector<2x8x96xf32> to vector<2x8x16xf32>
    %67 = vector.extract_strided_slice %64 {offsets = [0, 0, 64], sizes = [2, 8, 16], strides = [1, 1, 1]} : vector<2x8x96xf32> to vector<2x8x16xf32>
    "tpu.trace_start"() <{level = 10 : i32, message = "bqd,bkd->bqk"}> : () -> ()
    %cst_37 = arith.constant dense<0.000000e+00> : vector<2x8x8xf32>
    %68 = tpu.matmul %65, %66, %cst_37 {dimension_numbers = #tpu.dot_dimension_numbers<[2], [2], [1], [1], [0, 0, 0, 1, 1, 1], [0], [0]>} : vector<2x8x16xf32>, vector<2x8x16xf32>, vector<2x8x8xf32> -> vector<2x8x8xf32>
    "tpu.trace_stop"() : () -> ()
    %cst_38 = arith.constant 2.500000e-01 : f32
    %69 = vector.broadcast %cst_38 : f32 to vector<2x8x8xf32>
    %70 = arith.mulf %68, %69 : vector<2x8x8xf32>
    %71 = vector.broadcast %41 : vector<2x1x8xf32> to vector<2x8x8xf32>
    %72 = arith.addf %70, %71 : vector<2x8x8xf32>
    %73 = math.exp %72 : vector<2x8x8xf32>
    %cst_39 = arith.constant dense<0.000000e+00> : vector<2x8xf32>
    %74 = vector.multi_reduction <add>, %73, %cst_39 [2] : vector<2x8x8xf32> to vector<2x8xf32>
    %75 = vector.shape_cast %74 : vector<2x8xf32> to vector<2x8x1xf32>
    %76 = tpu.reciprocal %75 {approx = true} : vector<2x8x1xf32> -> vector<2x8x1xf32>
    %77 = vector.broadcast %76 : vector<2x8x1xf32> to vector<2x8x8xf32>
    %78 = arith.mulf %73, %77 : vector<2x8x8xf32>
    "tpu.trace_start"() <{level = 10 : i32, message = "bqk,bkd->bqd"}> : () -> ()
    %cst_40 = arith.constant dense<0.000000e+00> : vector<2x8x16xf32>
    %79 = tpu.matmul %78, %67, %cst_40 {dimension_numbers = #tpu.dot_dimension_numbers<[2], [1], [1], [2], [0, 0, 0, 1, 1, 2], [0], [0]>} : vector<2x8x8xf32>, vector<2x8x16xf32>, vector<2x8x16xf32> -> vector<2x8x16xf32>
    "tpu.trace_stop"() : () -> ()
    %80 = vector.shape_cast %79 : vector<2x8x16xf32> to vector<16x16xf32>
    %81 = arith.truncf %80 : vector<16x16xf32> to vector<16x16xbf16>
    %c0_41 = arith.constant 0 : index
    %c0_42 = arith.constant 0 : index
    %c96 = arith.constant 96 : index
    %82 = vector.load %arg5[%c0_41, %c0_42, %c96] : memref<2x96x192xbf16, #tpu.memory_space<vmem>>, vector<1x16x32xbf16>
    %83 = vector.shape_cast %82 : vector<1x16x32xbf16> to vector<16x32xbf16>
    %cst_43 = arith.constant dense<0.000000e+00> : vector<16x32xf32>
    %84 = tpu.matmul %81, %83, %cst_43 {dimension_numbers = #tpu.dot_dimension_numbers<[1], [0], [0], [1], [0, 0, 1, 1], [], []>} : vector<16x16xbf16>, vector<16x32xbf16>, vector<16x32xf32> -> vector<16x32xf32>
    %85 = vector.extract_strided_slice %64 {offsets = [0, 0, 16], sizes = [2, 8, 16], strides = [1, 1, 1]} : vector<2x8x96xf32> to vector<2x8x16xf32>
    %86 = vector.extract_strided_slice %64 {offsets = [0, 0, 48], sizes = [2, 8, 16], strides = [1, 1, 1]} : vector<2x8x96xf32> to vector<2x8x16xf32>
    %87 = vector.extract_strided_slice %64 {offsets = [0, 0, 80], sizes = [2, 8, 16], strides = [1, 1, 1]} : vector<2x8x96xf32> to vector<2x8x16xf32>
    "tpu.trace_start"() <{level = 10 : i32, message = "bqd,bkd->bqk"}> : () -> ()
    %cst_44 = arith.constant dense<0.000000e+00> : vector<2x8x8xf32>
    %88 = tpu.matmul %85, %86, %cst_44 {dimension_numbers = #tpu.dot_dimension_numbers<[2], [2], [1], [1], [0, 0, 0, 1, 1, 1], [0], [0]>} : vector<2x8x16xf32>, vector<2x8x16xf32>, vector<2x8x8xf32> -> vector<2x8x8xf32>
    "tpu.trace_stop"() : () -> ()
    %cst_45 = arith.constant 2.500000e-01 : f32
    %89 = vector.broadcast %cst_45 : f32 to vector<2x8x8xf32>
    %90 = arith.mulf %88, %89 : vector<2x8x8xf32>
    %91 = vector.broadcast %41 : vector<2x1x8xf32> to vector<2x8x8xf32>
    %92 = arith.addf %90, %91 : vector<2x8x8xf32>
    %93 = math.exp %92 : vector<2x8x8xf32>
    %cst_46 = arith.constant dense<0.000000e+00> : vector<2x8xf32>
    %94 = vector.multi_reduction <add>, %93, %cst_46 [2] : vector<2x8x8xf32> to vector<2x8xf32>
    %95 = vector.shape_cast %94 : vector<2x8xf32> to vector<2x8x1xf32>
    %96 = tpu.reciprocal %95 {approx = true} : vector<2x8x1xf32> -> vector<2x8x1xf32>
    %97 = vector.broadcast %96 : vector<2x8x1xf32> to vector<2x8x8xf32>
    %98 = arith.mulf %93, %97 : vector<2x8x8xf32>
    "tpu.trace_start"() <{level = 10 : i32, message = "bqk,bkd->bqd"}> : () -> ()
    %cst_47 = arith.constant dense<0.000000e+00> : vector<2x8x16xf32>
    %99 = tpu.matmul %98, %87, %cst_47 {dimension_numbers = #tpu.dot_dimension_numbers<[2], [1], [1], [2], [0, 0, 0, 1, 1, 2], [0], [0]>} : vector<2x8x8xf32>, vector<2x8x16xf32>, vector<2x8x16xf32> -> vector<2x8x16xf32>
    "tpu.trace_stop"() : () -> ()
    %100 = vector.shape_cast %99 : vector<2x8x16xf32> to vector<16x16xf32>
    %101 = arith.truncf %100 : vector<16x16xf32> to vector<16x16xbf16>
    %c0_48 = arith.constant 0 : index
    %c16_49 = arith.constant 16 : index
    %c96_50 = arith.constant 96 : index
    %102 = vector.load %arg5[%c0_48, %c16_49, %c96_50] : memref<2x96x192xbf16, #tpu.memory_space<vmem>>, vector<1x16x32xbf16>
    %103 = vector.shape_cast %102 : vector<1x16x32xbf16> to vector<16x32xbf16>
    %cst_51 = arith.constant dense<0.000000e+00> : vector<16x32xf32>
    %104 = tpu.matmul %101, %103, %cst_51 {dimension_numbers = #tpu.dot_dimension_numbers<[1], [0], [0], [1], [0, 0, 1, 1], [], []>} : vector<16x16xbf16>, vector<16x32xbf16>, vector<16x32xf32> -> vector<16x32xf32>
    %105 = arith.addf %84, %104 : vector<16x32xf32>
    %106 = vector.broadcast %45 : vector<1x32xf32> to vector<16x32xf32>
    %107 = arith.addf %105, %106 : vector<16x32xf32>
    %108 = arith.addf %34, %107 : vector<16x32xf32>
    %cst_52 = arith.constant dense<0.000000e+00> : vector<16xf32>
    %109 = vector.multi_reduction <add>, %108, %cst_52 [1] : vector<16x32xf32> to vector<16xf32>
    %110 = vector.shape_cast %109 : vector<16xf32> to vector<16x1xf32>
    %cst_53 = arith.constant 3.200000e+01 : f32
    %111 = vector.broadcast %cst_53 : f32 to vector<16x1xf32>
    %112 = arith.divf %110, %111 : vector<16x1xf32>
    %113 = vector.broadcast %112 : vector<16x1xf32> to vector<16x32xf32>
    %114 = arith.subf %108, %113 : vector<16x32xf32>
    %115 = arith.mulf %114, %114 : vector<16x32xf32>
    %cst_54 = arith.constant dense<0.000000e+00> : vector<16xf32>
    %116 = vector.multi_reduction <add>, %115, %cst_54 [1] : vector<16x32xf32> to vector<16xf32>
    %117 = vector.shape_cast %116 : vector<16xf32> to vector<16x1xf32>
    %cst_55 = arith.constant 3.200000e+01 : f32
    %118 = vector.broadcast %cst_55 : f32 to vector<16x1xf32>
    %119 = arith.divf %117, %118 : vector<16x1xf32>
    %120 = vector.broadcast %112 : vector<16x1xf32> to vector<16x32xf32>
    %121 = arith.subf %108, %120 : vector<16x32xf32>
    %cst_56 = arith.constant 9.99999996E-13 : f32
    %122 = vector.broadcast %cst_56 : f32 to vector<16x1xf32>
    %123 = arith.addf %119, %122 : vector<16x1xf32>
    %124 = math.rsqrt %123 : vector<16x1xf32>
    %125 = vector.broadcast %124 : vector<16x1xf32> to vector<16x32xf32>
    %126 = arith.mulf %121, %125 : vector<16x32xf32>
    %127 = vector.broadcast %47 : vector<1x32xf32> to vector<16x32xf32>
    %128 = arith.mulf %126, %127 : vector<16x32xf32>
    %129 = vector.broadcast %49 : vector<1x32xf32> to vector<16x32xf32>
    %130 = arith.addf %128, %129 : vector<16x32xf32>
    %131 = arith.truncf %130 : vector<16x32xf32> to vector<16x32xbf16>
    %c0_57 = arith.constant 0 : index
    %c0_58 = arith.constant 0 : index
    %c128 = arith.constant 128 : index
    %132 = vector.load %arg5[%c0_57, %c0_58, %c128] : memref<2x96x192xbf16, #tpu.memory_space<vmem>>, vector<1x32x64xbf16>
    %133 = vector.shape_cast %132 : vector<1x32x64xbf16> to vector<32x64xbf16>
    %cst_59 = arith.constant dense<0.000000e+00> : vector<16x64xf32>
    %134 = tpu.matmul %131, %133, %cst_59 {dimension_numbers = #tpu.dot_dimension_numbers<[1], [0], [0], [1], [0, 0, 1, 1], [], []>} : vector<16x32xbf16>, vector<32x64xbf16>, vector<16x64xf32> -> vector<16x64xf32>
    %135 = vector.broadcast %51 : vector<1x64xf32> to vector<16x64xf32>
    %136 = arith.addf %134, %135 : vector<16x64xf32>
    %137 = arith.mulf %136, %136 : vector<16x64xf32>
    %138 = arith.mulf %136, %137 : vector<16x64xf32>
    %cst_60 = arith.constant 4.471500e-02 : f32
    %139 = vector.broadcast %cst_60 : f32 to vector<16x64xf32>
    %140 = arith.mulf %139, %138 : vector<16x64xf32>
    %141 = arith.addf %136, %140 : vector<16x64xf32>
    %cst_61 = arith.constant 0.797884583 : f32
    %142 = vector.broadcast %cst_61 : f32 to vector<16x64xf32>
    %143 = arith.mulf %142, %141 : vector<16x64xf32>
    %144 = math.tanh %143 : vector<16x64xf32>
    %cst_62 = arith.constant 1.000000e+00 : f32
    %145 = vector.broadcast %cst_62 : f32 to vector<16x64xf32>
    %146 = arith.addf %145, %144 : vector<16x64xf32>
    %cst_63 = arith.constant 5.000000e-01 : f32
    %147 = vector.broadcast %cst_63 : f32 to vector<16x64xf32>
    %148 = arith.mulf %147, %146 : vector<16x64xf32>
    %149 = arith.mulf %136, %148 : vector<16x64xf32>
    %150 = arith.truncf %149 : vector<16x64xf32> to vector<16x64xbf16>
    %c0_64 = arith.constant 0 : index
    %c32 = arith.constant 32 : index
    %c0_65 = arith.constant 0 : index
    %151 = vector.load %arg5[%c0_64, %c32, %c0_65] : memref<2x96x192xbf16, #tpu.memory_space<vmem>>, vector<1x64x32xbf16>
    %152 = vector.shape_cast %151 : vector<1x64x32xbf16> to vector<64x32xbf16>
    %cst_66 = arith.constant dense<0.000000e+00> : vector<16x32xf32>
    %153 = tpu.matmul %150, %152, %cst_66 {dimension_numbers = #tpu.dot_dimension_numbers<[1], [0], [0], [1], [0, 0, 1, 1], [], []>} : vector<16x64xbf16>, vector<64x32xbf16>, vector<16x32xf32> -> vector<16x32xf32>
    %154 = vector.broadcast %53 : vector<1x32xf32> to vector<16x32xf32>
    %155 = arith.addf %153, %154 : vector<16x32xf32>
    %156 = arith.addf %130, %155 : vector<16x32xf32>
    %cst_67 = arith.constant dense<0.000000e+00> : vector<16xf32>
    %157 = vector.multi_reduction <add>, %156, %cst_67 [1] : vector<16x32xf32> to vector<16xf32>
    %158 = vector.shape_cast %157 : vector<16xf32> to vector<16x1xf32>
    %cst_68 = arith.constant 3.200000e+01 : f32
    %159 = vector.broadcast %cst_68 : f32 to vector<16x1xf32>
    %160 = arith.divf %158, %159 : vector<16x1xf32>
    %161 = vector.broadcast %160 : vector<16x1xf32> to vector<16x32xf32>
    %162 = arith.subf %156, %161 : vector<16x32xf32>
    %163 = arith.mulf %162, %162 : vector<16x32xf32>
    %cst_69 = arith.constant dense<0.000000e+00> : vector<16xf32>
    %164 = vector.multi_reduction <add>, %163, %cst_69 [1] : vector<16x32xf32> to vector<16xf32>
    %165 = vector.shape_cast %164 : vector<16xf32> to vector<16x1xf32>
    %cst_70 = arith.constant 3.200000e+01 : f32
    %166 = vector.broadcast %cst_70 : f32 to vector<16x1xf32>
    %167 = arith.divf %165, %166 : vector<16x1xf32>
    %168 = vector.broadcast %160 : vector<16x1xf32> to vector<16x32xf32>
    %169 = arith.subf %156, %168 : vector<16x32xf32>
    %cst_71 = arith.constant 9.99999996E-13 : f32
    %170 = vector.broadcast %cst_71 : f32 to vector<16x1xf32>
    %171 = arith.addf %167, %170 : vector<16x1xf32>
    %172 = math.rsqrt %171 : vector<16x1xf32>
    %173 = vector.broadcast %172 : vector<16x1xf32> to vector<16x32xf32>
    %174 = arith.mulf %169, %173 : vector<16x32xf32>
    %175 = vector.broadcast %55 : vector<1x32xf32> to vector<16x32xf32>
    %176 = arith.mulf %174, %175 : vector<16x32xf32>
    %177 = vector.broadcast %57 : vector<1x32xf32> to vector<16x32xf32>
    %178 = arith.addf %176, %177 : vector<16x32xf32>
    %c1_72 = arith.constant 1 : index
    %c0_73 = arith.constant 0 : index
    %c0_74 = arith.constant 0 : index
    %179 = vector.load %arg4[%c1_72, %c0_73, %c0_74] : memref<2x8x128xf32, #tpu.memory_space<vmem>>, vector<1x1x96xf32>
    %180 = vector.shape_cast %179 : vector<1x1x96xf32> to vector<1x96xf32>
    %c1_75 = arith.constant 1 : index
    %c1_76 = arith.constant 1 : index
    %c0_77 = arith.constant 0 : index
    %181 = vector.load %arg4[%c1_75, %c1_76, %c0_77] : memref<2x8x128xf32, #tpu.memory_space<vmem>>, vector<1x1x32xf32>
    %182 = vector.shape_cast %181 : vector<1x1x32xf32> to vector<1x32xf32>
    %c1_78 = arith.constant 1 : index
    %c2_79 = arith.constant 2 : index
    %c0_80 = arith.constant 0 : index
    %183 = vector.load %arg4[%c1_78, %c2_79, %c0_80] : memref<2x8x128xf32, #tpu.memory_space<vmem>>, vector<1x1x32xf32>
    %184 = vector.shape_cast %183 : vector<1x1x32xf32> to vector<1x32xf32>
    %c1_81 = arith.constant 1 : index
    %c3_82 = arith.constant 3 : index
    %c0_83 = arith.constant 0 : index
    %185 = vector.load %arg4[%c1_81, %c3_82, %c0_83] : memref<2x8x128xf32, #tpu.memory_space<vmem>>, vector<1x1x32xf32>
    %186 = vector.shape_cast %185 : vector<1x1x32xf32> to vector<1x32xf32>
    %c1_84 = arith.constant 1 : index
    %c4_85 = arith.constant 4 : index
    %c0_86 = arith.constant 0 : index
    %187 = vector.load %arg4[%c1_84, %c4_85, %c0_86] : memref<2x8x128xf32, #tpu.memory_space<vmem>>, vector<1x1x64xf32>
    %188 = vector.shape_cast %187 : vector<1x1x64xf32> to vector<1x64xf32>
    %c1_87 = arith.constant 1 : index
    %c5_88 = arith.constant 5 : index
    %c0_89 = arith.constant 0 : index
    %189 = vector.load %arg4[%c1_87, %c5_88, %c0_89] : memref<2x8x128xf32, #tpu.memory_space<vmem>>, vector<1x1x32xf32>
    %190 = vector.shape_cast %189 : vector<1x1x32xf32> to vector<1x32xf32>
    %c1_90 = arith.constant 1 : index
    %c6_91 = arith.constant 6 : index
    %c0_92 = arith.constant 0 : index
    %191 = vector.load %arg4[%c1_90, %c6_91, %c0_92] : memref<2x8x128xf32, #tpu.memory_space<vmem>>, vector<1x1x32xf32>
    %192 = vector.shape_cast %191 : vector<1x1x32xf32> to vector<1x32xf32>
    %c1_93 = arith.constant 1 : index
    %c7_94 = arith.constant 7 : index
    %c0_95 = arith.constant 0 : index
    %193 = vector.load %arg4[%c1_93, %c7_94, %c0_95] : memref<2x8x128xf32, #tpu.memory_space<vmem>>, vector<1x1x32xf32>
    %194 = vector.shape_cast %193 : vector<1x1x32xf32> to vector<1x32xf32>
    %195 = arith.truncf %178 : vector<16x32xf32> to vector<16x32xbf16>
    %c1_96 = arith.constant 1 : index
    %c0_97 = arith.constant 0 : index
    %c0_98 = arith.constant 0 : index
    %196 = vector.load %arg5[%c1_96, %c0_97, %c0_98] : memref<2x96x192xbf16, #tpu.memory_space<vmem>>, vector<1x32x96xbf16>
    %197 = vector.shape_cast %196 : vector<1x32x96xbf16> to vector<32x96xbf16>
    %cst_99 = arith.constant dense<0.000000e+00> : vector<16x96xf32>
    %198 = tpu.matmul %195, %197, %cst_99 {dimension_numbers = #tpu.dot_dimension_numbers<[1], [0], [0], [1], [0, 0, 1, 1], [], []>} : vector<16x32xbf16>, vector<32x96xbf16>, vector<16x96xf32> -> vector<16x96xf32>
    %199 = vector.broadcast %180 : vector<1x96xf32> to vector<16x96xf32>
    %200 = arith.addf %198, %199 : vector<16x96xf32>
    %201 = vector.shape_cast %200 : vector<16x96xf32> to vector<2x8x96xf32>
    %202 = vector.extract_strided_slice %201 {offsets = [0, 0, 0], sizes = [2, 8, 16], strides = [1, 1, 1]} : vector<2x8x96xf32> to vector<2x8x16xf32>
    %203 = vector.extract_strided_slice %201 {offsets = [0, 0, 32], sizes = [2, 8, 16], strides = [1, 1, 1]} : vector<2x8x96xf32> to vector<2x8x16xf32>
    %204 = vector.extract_strided_slice %201 {offsets = [0, 0, 64], sizes = [2, 8, 16], strides = [1, 1, 1]} : vector<2x8x96xf32> to vector<2x8x16xf32>
    "tpu.trace_start"() <{level = 10 : i32, message = "bqd,bkd->bqk"}> : () -> ()
    %cst_100 = arith.constant dense<0.000000e+00> : vector<2x8x8xf32>
    %205 = tpu.matmul %202, %203, %cst_100 {dimension_numbers = #tpu.dot_dimension_numbers<[2], [2], [1], [1], [0, 0, 0, 1, 1, 1], [0], [0]>} : vector<2x8x16xf32>, vector<2x8x16xf32>, vector<2x8x8xf32> -> vector<2x8x8xf32>
    "tpu.trace_stop"() : () -> ()
    %cst_101 = arith.constant 2.500000e-01 : f32
    %206 = vector.broadcast %cst_101 : f32 to vector<2x8x8xf32>
    %207 = arith.mulf %205, %206 : vector<2x8x8xf32>
    %208 = vector.broadcast %41 : vector<2x1x8xf32> to vector<2x8x8xf32>
    %209 = arith.addf %207, %208 : vector<2x8x8xf32>
    %210 = math.exp %209 : vector<2x8x8xf32>
    %cst_102 = arith.constant dense<0.000000e+00> : vector<2x8xf32>
    %211 = vector.multi_reduction <add>, %210, %cst_102 [2] : vector<2x8x8xf32> to vector<2x8xf32>
    %212 = vector.shape_cast %211 : vector<2x8xf32> to vector<2x8x1xf32>
    %213 = tpu.reciprocal %212 {approx = true} : vector<2x8x1xf32> -> vector<2x8x1xf32>
    %214 = vector.broadcast %213 : vector<2x8x1xf32> to vector<2x8x8xf32>
    %215 = arith.mulf %210, %214 : vector<2x8x8xf32>
    "tpu.trace_start"() <{level = 10 : i32, message = "bqk,bkd->bqd"}> : () -> ()
    %cst_103 = arith.constant dense<0.000000e+00> : vector<2x8x16xf32>
    %216 = tpu.matmul %215, %204, %cst_103 {dimension_numbers = #tpu.dot_dimension_numbers<[2], [1], [1], [2], [0, 0, 0, 1, 1, 2], [0], [0]>} : vector<2x8x8xf32>, vector<2x8x16xf32>, vector<2x8x16xf32> -> vector<2x8x16xf32>
    "tpu.trace_stop"() : () -> ()
    %217 = vector.shape_cast %216 : vector<2x8x16xf32> to vector<16x16xf32>
    %218 = arith.truncf %217 : vector<16x16xf32> to vector<16x16xbf16>
    %c1_104 = arith.constant 1 : index
    %c0_105 = arith.constant 0 : index
    %c96_106 = arith.constant 96 : index
    %219 = vector.load %arg5[%c1_104, %c0_105, %c96_106] : memref<2x96x192xbf16, #tpu.memory_space<vmem>>, vector<1x16x32xbf16>
    %220 = vector.shape_cast %219 : vector<1x16x32xbf16> to vector<16x32xbf16>
    %cst_107 = arith.constant dense<0.000000e+00> : vector<16x32xf32>
    %221 = tpu.matmul %218, %220, %cst_107 {dimension_numbers = #tpu.dot_dimension_numbers<[1], [0], [0], [1], [0, 0, 1, 1], [], []>} : vector<16x16xbf16>, vector<16x32xbf16>, vector<16x32xf32> -> vector<16x32xf32>
    %222 = vector.extract_strided_slice %201 {offsets = [0, 0, 16], sizes = [2, 8, 16], strides = [1, 1, 1]} : vector<2x8x96xf32> to vector<2x8x16xf32>
    %223 = vector.extract_strided_slice %201 {offsets = [0, 0, 48], sizes = [2, 8, 16], strides = [1, 1, 1]} : vector<2x8x96xf32> to vector<2x8x16xf32>
    %224 = vector.extract_strided_slice %201 {offsets = [0, 0, 80], sizes = [2, 8, 16], strides = [1, 1, 1]} : vector<2x8x96xf32> to vector<2x8x16xf32>
    "tpu.trace_start"() <{level = 10 : i32, message = "bqd,bkd->bqk"}> : () -> ()
    %cst_108 = arith.constant dense<0.000000e+00> : vector<2x8x8xf32>
    %225 = tpu.matmul %222, %223, %cst_108 {dimension_numbers = #tpu.dot_dimension_numbers<[2], [2], [1], [1], [0, 0, 0, 1, 1, 1], [0], [0]>} : vector<2x8x16xf32>, vector<2x8x16xf32>, vector<2x8x8xf32> -> vector<2x8x8xf32>
    "tpu.trace_stop"() : () -> ()
    %cst_109 = arith.constant 2.500000e-01 : f32
    %226 = vector.broadcast %cst_109 : f32 to vector<2x8x8xf32>
    %227 = arith.mulf %225, %226 : vector<2x8x8xf32>
    %228 = vector.broadcast %41 : vector<2x1x8xf32> to vector<2x8x8xf32>
    %229 = arith.addf %227, %228 : vector<2x8x8xf32>
    %230 = math.exp %229 : vector<2x8x8xf32>
    %cst_110 = arith.constant dense<0.000000e+00> : vector<2x8xf32>
    %231 = vector.multi_reduction <add>, %230, %cst_110 [2] : vector<2x8x8xf32> to vector<2x8xf32>
    %232 = vector.shape_cast %231 : vector<2x8xf32> to vector<2x8x1xf32>
    %233 = tpu.reciprocal %232 {approx = true} : vector<2x8x1xf32> -> vector<2x8x1xf32>
    %234 = vector.broadcast %233 : vector<2x8x1xf32> to vector<2x8x8xf32>
    %235 = arith.mulf %230, %234 : vector<2x8x8xf32>
    "tpu.trace_start"() <{level = 10 : i32, message = "bqk,bkd->bqd"}> : () -> ()
    %cst_111 = arith.constant dense<0.000000e+00> : vector<2x8x16xf32>
    %236 = tpu.matmul %235, %224, %cst_111 {dimension_numbers = #tpu.dot_dimension_numbers<[2], [1], [1], [2], [0, 0, 0, 1, 1, 2], [0], [0]>} : vector<2x8x8xf32>, vector<2x8x16xf32>, vector<2x8x16xf32> -> vector<2x8x16xf32>
    "tpu.trace_stop"() : () -> ()
    %237 = vector.shape_cast %236 : vector<2x8x16xf32> to vector<16x16xf32>
    %238 = arith.truncf %237 : vector<16x16xf32> to vector<16x16xbf16>
    %c1_112 = arith.constant 1 : index
    %c16_113 = arith.constant 16 : index
    %c96_114 = arith.constant 96 : index
    %239 = vector.load %arg5[%c1_112, %c16_113, %c96_114] : memref<2x96x192xbf16, #tpu.memory_space<vmem>>, vector<1x16x32xbf16>
    %240 = vector.shape_cast %239 : vector<1x16x32xbf16> to vector<16x32xbf16>
    %cst_115 = arith.constant dense<0.000000e+00> : vector<16x32xf32>
    %241 = tpu.matmul %238, %240, %cst_115 {dimension_numbers = #tpu.dot_dimension_numbers<[1], [0], [0], [1], [0, 0, 1, 1], [], []>} : vector<16x16xbf16>, vector<16x32xbf16>, vector<16x32xf32> -> vector<16x32xf32>
    %242 = arith.addf %221, %241 : vector<16x32xf32>
    %243 = vector.broadcast %182 : vector<1x32xf32> to vector<16x32xf32>
    %244 = arith.addf %242, %243 : vector<16x32xf32>
    %245 = arith.addf %178, %244 : vector<16x32xf32>
    %cst_116 = arith.constant dense<0.000000e+00> : vector<16xf32>
    %246 = vector.multi_reduction <add>, %245, %cst_116 [1] : vector<16x32xf32> to vector<16xf32>
    %247 = vector.shape_cast %246 : vector<16xf32> to vector<16x1xf32>
    %cst_117 = arith.constant 3.200000e+01 : f32
    %248 = vector.broadcast %cst_117 : f32 to vector<16x1xf32>
    %249 = arith.divf %247, %248 : vector<16x1xf32>
    %250 = vector.broadcast %249 : vector<16x1xf32> to vector<16x32xf32>
    %251 = arith.subf %245, %250 : vector<16x32xf32>
    %252 = arith.mulf %251, %251 : vector<16x32xf32>
    %cst_118 = arith.constant dense<0.000000e+00> : vector<16xf32>
    %253 = vector.multi_reduction <add>, %252, %cst_118 [1] : vector<16x32xf32> to vector<16xf32>
    %254 = vector.shape_cast %253 : vector<16xf32> to vector<16x1xf32>
    %cst_119 = arith.constant 3.200000e+01 : f32
    %255 = vector.broadcast %cst_119 : f32 to vector<16x1xf32>
    %256 = arith.divf %254, %255 : vector<16x1xf32>
    %257 = vector.broadcast %249 : vector<16x1xf32> to vector<16x32xf32>
    %258 = arith.subf %245, %257 : vector<16x32xf32>
    %cst_120 = arith.constant 9.99999996E-13 : f32
    %259 = vector.broadcast %cst_120 : f32 to vector<16x1xf32>
    %260 = arith.addf %256, %259 : vector<16x1xf32>
    %261 = math.rsqrt %260 : vector<16x1xf32>
    %262 = vector.broadcast %261 : vector<16x1xf32> to vector<16x32xf32>
    %263 = arith.mulf %258, %262 : vector<16x32xf32>
    %264 = vector.broadcast %184 : vector<1x32xf32> to vector<16x32xf32>
    %265 = arith.mulf %263, %264 : vector<16x32xf32>
    %266 = vector.broadcast %186 : vector<1x32xf32> to vector<16x32xf32>
    %267 = arith.addf %265, %266 : vector<16x32xf32>
    %268 = arith.truncf %267 : vector<16x32xf32> to vector<16x32xbf16>
    %c1_121 = arith.constant 1 : index
    %c0_122 = arith.constant 0 : index
    %c128_123 = arith.constant 128 : index
    %269 = vector.load %arg5[%c1_121, %c0_122, %c128_123] : memref<2x96x192xbf16, #tpu.memory_space<vmem>>, vector<1x32x64xbf16>
    %270 = vector.shape_cast %269 : vector<1x32x64xbf16> to vector<32x64xbf16>
    %cst_124 = arith.constant dense<0.000000e+00> : vector<16x64xf32>
    %271 = tpu.matmul %268, %270, %cst_124 {dimension_numbers = #tpu.dot_dimension_numbers<[1], [0], [0], [1], [0, 0, 1, 1], [], []>} : vector<16x32xbf16>, vector<32x64xbf16>, vector<16x64xf32> -> vector<16x64xf32>
    %272 = vector.broadcast %188 : vector<1x64xf32> to vector<16x64xf32>
    %273 = arith.addf %271, %272 : vector<16x64xf32>
    %274 = arith.mulf %273, %273 : vector<16x64xf32>
    %275 = arith.mulf %273, %274 : vector<16x64xf32>
    %cst_125 = arith.constant 4.471500e-02 : f32
    %276 = vector.broadcast %cst_125 : f32 to vector<16x64xf32>
    %277 = arith.mulf %276, %275 : vector<16x64xf32>
    %278 = arith.addf %273, %277 : vector<16x64xf32>
    %cst_126 = arith.constant 0.797884583 : f32
    %279 = vector.broadcast %cst_126 : f32 to vector<16x64xf32>
    %280 = arith.mulf %279, %278 : vector<16x64xf32>
    %281 = math.tanh %280 : vector<16x64xf32>
    %cst_127 = arith.constant 1.000000e+00 : f32
    %282 = vector.broadcast %cst_127 : f32 to vector<16x64xf32>
    %283 = arith.addf %282, %281 : vector<16x64xf32>
    %cst_128 = arith.constant 5.000000e-01 : f32
    %284 = vector.broadcast %cst_128 : f32 to vector<16x64xf32>
    %285 = arith.mulf %284, %283 : vector<16x64xf32>
    %286 = arith.mulf %273, %285 : vector<16x64xf32>
    %287 = arith.truncf %286 : vector<16x64xf32> to vector<16x64xbf16>
    %c1_129 = arith.constant 1 : index
    %c32_130 = arith.constant 32 : index
    %c0_131 = arith.constant 0 : index
    %288 = vector.load %arg5[%c1_129, %c32_130, %c0_131] : memref<2x96x192xbf16, #tpu.memory_space<vmem>>, vector<1x64x32xbf16>
    %289 = vector.shape_cast %288 : vector<1x64x32xbf16> to vector<64x32xbf16>
    %cst_132 = arith.constant dense<0.000000e+00> : vector<16x32xf32>
    %290 = tpu.matmul %287, %289, %cst_132 {dimension_numbers = #tpu.dot_dimension_numbers<[1], [0], [0], [1], [0, 0, 1, 1], [], []>} : vector<16x64xbf16>, vector<64x32xbf16>, vector<16x32xf32> -> vector<16x32xf32>
    %291 = vector.broadcast %190 : vector<1x32xf32> to vector<16x32xf32>
    %292 = arith.addf %290, %291 : vector<16x32xf32>
    %293 = arith.addf %267, %292 : vector<16x32xf32>
    %cst_133 = arith.constant dense<0.000000e+00> : vector<16xf32>
    %294 = vector.multi_reduction <add>, %293, %cst_133 [1] : vector<16x32xf32> to vector<16xf32>
    %295 = vector.shape_cast %294 : vector<16xf32> to vector<16x1xf32>
    %cst_134 = arith.constant 3.200000e+01 : f32
    %296 = vector.broadcast %cst_134 : f32 to vector<16x1xf32>
    %297 = arith.divf %295, %296 : vector<16x1xf32>
    %298 = vector.broadcast %297 : vector<16x1xf32> to vector<16x32xf32>
    %299 = arith.subf %293, %298 : vector<16x32xf32>
    %300 = arith.mulf %299, %299 : vector<16x32xf32>
    %cst_135 = arith.constant dense<0.000000e+00> : vector<16xf32>
    %301 = vector.multi_reduction <add>, %300, %cst_135 [1] : vector<16x32xf32> to vector<16xf32>
    %302 = vector.shape_cast %301 : vector<16xf32> to vector<16x1xf32>
    %cst_136 = arith.constant 3.200000e+01 : f32
    %303 = vector.broadcast %cst_136 : f32 to vector<16x1xf32>
    %304 = arith.divf %302, %303 : vector<16x1xf32>
    %305 = vector.broadcast %297 : vector<16x1xf32> to vector<16x32xf32>
    %306 = arith.subf %293, %305 : vector<16x32xf32>
    %cst_137 = arith.constant 9.99999996E-13 : f32
    %307 = vector.broadcast %cst_137 : f32 to vector<16x1xf32>
    %308 = arith.addf %304, %307 : vector<16x1xf32>
    %309 = math.rsqrt %308 : vector<16x1xf32>
    %310 = vector.broadcast %309 : vector<16x1xf32> to vector<16x32xf32>
    %311 = arith.mulf %306, %310 : vector<16x32xf32>
    %312 = vector.broadcast %192 : vector<1x32xf32> to vector<16x32xf32>
    %313 = arith.mulf %311, %312 : vector<16x32xf32>
    %314 = vector.broadcast %194 : vector<1x32xf32> to vector<16x32xf32>
    %315 = arith.addf %313, %314 : vector<16x32xf32>
    %316 = vector.shape_cast %315 : vector<16x32xf32> to vector<2x8x32xf32>
    %317 = vector.extract_strided_slice %316 {offsets = [0, 0, 0], sizes = [2, 1, 32], strides = [1, 1, 1]} : vector<2x8x32xf32> to vector<2x1x32xf32>
    %318 = vector.shape_cast %317 : vector<2x1x32xf32> to vector<2x32xf32>
    %c20 = arith.constant 20 : index
    %c0_138 = arith.constant 0 : index
    %319 = vector.load %arg3[%c20, %c0_138] : memref<68x128xf32, #tpu.memory_space<vmem>>, vector<32x16xf32>
    %cst_139 = arith.constant dense<0.000000e+00> : vector<2x16xf32>
    %320 = tpu.matmul %318, %319, %cst_139 {dimension_numbers = #tpu.dot_dimension_numbers<[1], [0], [0], [1], [0, 0, 1, 1], [], []>} : vector<2x32xf32>, vector<32x16xf32>, vector<2x16xf32> -> vector<2x16xf32>
    %c18 = arith.constant 18 : index
    %c0_140 = arith.constant 0 : index
    %321 = vector.load %arg3[%c18, %c0_140] : memref<68x128xf32, #tpu.memory_space<vmem>>, vector<1x16xf32>
    %322 = vector.broadcast %321 : vector<1x16xf32> to vector<2x16xf32>
    %323 = arith.addf %320, %322 : vector<2x16xf32>
    %cst_141 = arith.constant 0.000000e+00 : f32
    %324 = vector.broadcast %cst_141 : f32 to vector<2x16xf32>
    %325 = arith.maximumf %323, %324 : vector<2x16xf32>
    %c52 = arith.constant 52 : index
    %c0_142 = arith.constant 0 : index
    %326 = vector.load %arg3[%c52, %c0_142] : memref<68x128xf32, #tpu.memory_space<vmem>>, vector<16x128xf32>
    %cst_143 = arith.constant dense<0.000000e+00> : vector<2x128xf32>
    %327 = tpu.matmul %325, %326, %cst_143 {dimension_numbers = #tpu.dot_dimension_numbers<[1], [0], [0], [1], [0, 0, 1, 1], [], []>} : vector<2x16xf32>, vector<16x128xf32>, vector<2x128xf32> -> vector<2x128xf32>
    %c19 = arith.constant 19 : index
    %c0_144 = arith.constant 0 : index
    %328 = vector.load %arg3[%c19, %c0_144] : memref<68x128xf32, #tpu.memory_space<vmem>>, vector<1x128xf32>
    %329 = vector.broadcast %328 : vector<1x128xf32> to vector<2x128xf32>
    %330 = arith.addf %327, %329 : vector<2x128xf32>
    %c0_145 = arith.constant 0 : index
    %c0_146 = arith.constant 0 : index
    %331 = vector.load %arg6[%c0_145, %c0_146] : memref<2x128xf32, #tpu.memory_space<vmem>>, vector<2x128xf32>
    tpu.vector_store %arg6[%c0_145, %c0_146], %330 {strides = array<i32>} : memref<2x128xf32, #tpu.memory_space<vmem>>, vector<2x128xf32>,
    return
  }
}

</mosaic_0001>

<llo_original>
// kernel: bert_classifier2_forward.1
$region0: #{bert_classifier2_forward.1}
  #allocation0 [shape = 'u32[]', space=smem, size = 0x4, offset = 0x4, fixed_abs, tag = 'smem constant byte address 0x4 - core index']
  #allocation1 [shape = 'u32[144,128]{1,0:T(1,128)}', space=vmem, size = 0x12000, scoped, tag = 'internal scratch']
  %s0 = inlined_call_operand.vmem [shape: s32[16,1], index: 0, kind: input, shape index: {}]
  %s1 = inlined_call_operand.vmem [shape: s32[2,8], index: 1, kind: input, shape index: {}]
  %s2 = inlined_call_operand.vmem [shape: bf16[100,32], index: 2, kind: input, shape index: {}]
  %s3 = inlined_call_operand.vmem [shape: f32[68,128], index: 3, kind: input, shape index: {}]
  %s4 = inlined_call_operand.vmem [shape: f32[2,8,128], index: 4, kind: input, shape index: {}]
  %s5 = inlined_call_operand.hbm [shape: bf16[2,96,192], index: 5, kind: input, shape index: {}]
  %s6 = inlined_call_operand.hbm [shape: f32[2,128], index: 6, kind: output, shape index: {}]
  %s7 = sld [smem:[#allocation0]]
  $region38: #{bert_classifier2_forward.1} parent=0
    _
  %s9 = ssub.s32 1, %s7
  %s10 = scalar_select 0, %s9, %s7
  $region1: #{bert_classifier2_forward.1} parent=0
    #allocation2 [shape = 'u8[98304]{0}', space=vmem, size = 0x18000, scoped, tag = 'input window, operand 5, single buffered']
    #allocation3 [shape = 's32[1]{0}', space=sflag, size = 0x4, scoped, tag = 'scoped memory for bert_classifier2_forward.1']
    #allocation4 [shape = 's32[1]{0}', space=sflag, size = 0x4, scoped, tag = 'scoped memory for bert_classifier2_forward.1']
    #allocation5 [shape = 'u8[1024]{0}', space=vmem, size = 0x400, scoped, tag = 'output window, operand 0, single buffered']
    %11 = vsyncpa [#allocation3], 0
    %12 = vsyncpa [#allocation4], 0
    // Predicated region
    $region2: #{bert_classifier2_forward.1} parent=1 // pred_check
      _
    $region3: #{bert_classifier2_forward.1} parent=1 // pred_check_branch
      %14 = sbr.rel (0) target = $region5
    $region4: #{bert_classifier2_forward.1} parent=1 // pred_region
      _
    $region5: #{bert_classifier2_forward.1} parent=1 // pred_fallthru
      _
    // Predicated region
    $region6: #{bert_classifier2_forward.1} parent=1 // pred_check
      _
    $region7: #{bert_classifier2_forward.1} parent=1 // pred_check_branch
      %16 = sbr.rel (0) target = $region9
    $region8: #{bert_classifier2_forward.1} parent=1 // pred_region
      _
    $region9: #{bert_classifier2_forward.1} parent=1 // pred_fallthru
      _
    // Predicated region
    $region10: #{bert_classifier2_forward.1} parent=1 // pred_check
      _
    $region11: #{bert_classifier2_forward.1} parent=1 // pred_check_branch
      %18 = sbr.rel (0) target = $region13
    $region12: #{bert_classifier2_forward.1} parent=1 // pred_region
      _
    $region13: #{bert_classifier2_forward.1} parent=1 // pred_fallthru
      _
    // Predicated region
    $region14: #{bert_classifier2_forward.1} parent=1 // pred_check
      _
    $region15: #{bert_classifier2_forward.1} parent=1 // pred_check_branch
      %20 = sbr.rel (0) target = $region17
    $region16: #{bert_classifier2_forward.1} parent=1 // pred_region
      _
    $region17: #{bert_classifier2_forward.1} parent=1 // pred_fallthru
      _
    // Predicated region
    $region18: #{bert_classifier2_forward.1} parent=1 // pred_check
      _
    $region19: #{bert_classifier2_forward.1} parent=1 // pred_check_branch
      %22 = sbr.rel (0) target = $region21
    $region20: #{bert_classifier2_forward.1} parent=1 // pred_region
      _
    $region21: #{bert_classifier2_forward.1} parent=1 // pred_fallthru
      _
    // Predicated region
    $region22: #{bert_classifier2_forward.1} parent=1 // pred_check
      _
    $region23: #{bert_classifier2_forward.1} parent=1 // pred_check_branch
      %24 = sbr.rel (0) target = $region25
    $region24: #{bert_classifier2_forward.1} parent=1 // pred_region
      %s26 = ssub.s32 3072, 3072
      %27 = vsyncadd [#allocation3], %s26
      %s28 = sshll.u32 [#allocation2], 4
      %s29 = int_to_ptr.vmem [resolvable:$true] %s28
      %34 = dma.hbm_to_vmem [thread:$0]  %s5, 3072, %s29, [#allocation3], 128, 128, 8
    $region25: #{bert_classifier2_forward.1} parent=1 // pred_fallthru
      _
    // Predicated region
    $region26: #{bert_classifier2_forward.1} parent=1 // pred_check
      _
    $region27: #{bert_classifier2_forward.1} parent=1 // pred_check_branch
      %36 = sbr.rel (0) target = $region29
    $region28: #{bert_classifier2_forward.1} parent=1 // pred_region
      %37 = dma.done [#allocation3], 3072
    $region29: #{bert_classifier2_forward.1} parent=1 // pred_fallthru
      _
    %v39 = vld [vmem:[%s0] sm:$0xff]
    %v40 = vld [vmem:[%s0 + $0x8] sm:$0xff]
    %v41 = vlaneseq
    %v42 = vand.u32 %v41, 127
    %43 = vset.pattern.permute.xlu0 0
    %44 = vperm.xlu0 %43, %v39
    %v45 = vpop.permute.xlu0 %44
    %46 = vset.pattern.permute.xlu0 0
    %47 = vperm.xlu0 %46, %v40
    %v48 = vpop.permute.xlu0 %47
    %vm49 = vcmp.eq.s32.totalorder %v42, %v45
    %vm50 = vcmp.eq.s32.totalorder %v42, %v48
    %v51 = vsel %vm49, 1, 0
    %v52 = vsel %vm50, 1, 0
    %v53 = vcvt.s32.f32 %v51
    %v54 = vcvt.s32.f32 %v52
    %v55 = vpack.c.bf16 %v54, %v53
    %v56 = vld [vmem:[%s2] sm:$0xf]
    %v57 = vld [vmem:[%s2 + $0x4] sm:$0xf]
    %v58 = vld [vmem:[%s2 + $0x8] sm:$0xf]
    %v59 = vld [vmem:[%s2 + $0xc] sm:$0xf]
    %v60 = vld [vmem:[%s2 + $0x10] sm:$0xf]
    %v61 = vld [vmem:[%s2 + $0x14] sm:$0xf]
    %v62 = vld [vmem:[%s2 + $0x18] sm:$0xf]
    %v63 = vld [vmem:[%s2 + $0x1c] sm:$0xf]
    %v64 = vld [vmem:[%s2 + $0x20] sm:$0xf]
    %v65 = vld [vmem:[%s2 + $0x24] sm:$0xf]
    %v66 = vld [vmem:[%s2 + $0x28] sm:$0xf]
    %v67 = vld [vmem:[%s2 + $0x2c] sm:$0xf]
    %v68 = vld [vmem:[%s2 + $0x30] sm:$0x3]
    %v69 = vld [vmem:[%s3] sm:$0xff]
    %v70 = vld [vmem:[%s3 + $0x8] sm:$0xff]
    %v84 = vunpack.c.l.b16 %v56
    %v85 = vunpack.c.l.b16 %v57
    %v86 = vunpack.c.l.b16 %v58
    %v87 = vunpack.c.l.b16 %v59
    %v88 = vunpack.c.l.b16 %v60
    %v89 = vunpack.c.l.b16 %v61
    %v90 = vunpack.c.l.b16 %v62
    %v91 = vunpack.c.l.b16 %v63
    %v92 = vunpack.c.l.b16 %v64
    %v93 = vunpack.c.l.b16 %v65
    %v94 = vunpack.c.l.b16 %v66
    %v95 = vunpack.c.l.b16 %v67
    %v96 = vunpack.c.l.b16 %v68
    %v97 = vpack.c.b16 %v85, %v84
    %v98 = vpack.c.b16 %v87, %v86
    %v99 = vpack.c.b16 %v89, %v88
    %v100 = vpack.c.b16 %v91, %v90
    %v101 = vpack.c.b16 %v93, %v92
    %v102 = vpack.c.b16 %v95, %v94
    %v103 = vpack.c.b16 %v96, %v96
    %vm110 = vcmask 818176
    %v112 = vsel %vm110, %v55, 0
    %vm114 = vcmask 1041408
    %v116 = vsel %vm114, %v103, 0
    %118 = vmatprep.subr.bf16.mxu0 0
    %119 = vmatpush1.bf16.msra.mxu0 %v97
    %120 = vmatprep.subr.bf16.mxu0 0
    %121 = vmatpush1.bf16.msra.mxu0 %v98
    %122 = vmatprep.subr.bf16.mxu0 0
    %123 = vmatpush1.bf16.msra.mxu0 %v99
    %124 = vmatprep.subr.bf16.mxu0 0
    %125 = vmatpush1.bf16.msra.mxu0 %v100
    %126 = vmatprep.subr.bf16.mxu0 0
    %127 = vmatpush1.bf16.msra.mxu0 %v101
    %128 = vmatprep.subr.bf16.mxu0 0
    %129 = vmatpush1.bf16.msra.mxu0 %v102
    %130 = vmatprep.subr.bf16.mxu0 0
    %131 = vmatpush1.bf16.msra.mxu0 %v116
    %132 = vmatprep.subr.bf16.mxu0 0
    %133 = vmatpush1.bf16.msra.mxu0 0
    %134 = vmatprep.subr.bf16.mxu0 0
    %135 = vmatpush1.bf16.msra.mxu0 0
    %136 = vmatprep.subr.bf16.mxu0 0
    %137 = vmatpush1.bf16.msra.mxu0 0
    %138 = vmatprep.subr.bf16.mxu0 0
    %139 = vmatpush1.bf16.msra.mxu0 0
    %140 = vmatprep.subr.bf16.mxu0 0
    %141 = vmatpush1.bf16.msra.mxu0 0
    %142 = vmatprep.subr.bf16.mxu0 0
    %143 = vmatpush1.bf16.msra.mxu0 0
    %144 = vmatprep.subr.bf16.mxu0 0
    %145 = vmatpush1.bf16.msra.mxu0 0
    %146 = vmatprep.subr.bf16.mxu0 0
    %147 = vmatpush1.bf16.msra.mxu0 0
    %148 = vmatprep.subr.bf16.mxu0 0
    %149 = vmatpush1.bf16.msra.mxu0 0
    %150 = vmatprep.mubr.bf16.mxu0 0
    %151 = vmatmul.mubr.bf16.gmra.mrb[0].mxu0 %v112
    %v152 = vpop.f32.mrb[0].mxu0
    %v153 = vadd.f32 %v69, %v152
    %v154 = vpop.f32.mrb[0].mxu0
    %v155 = vpop.f32.mrb[0].mxu0
    %v156 = vadd.f32 %v70, %v155
    %v157 = vpop.f32.mrb[0].mxu0
    %158 = vdwg.mxu0
    %v159 = vld [vmem:[%s3 + $0x10] sm:$0x1]
    %v160 = vld [vmem:[%s3 + $0x11] sm:$0x1]
    %vm161 = vcmask 261120
    %v162 = vsel %vm161, %v153, 0.0
    %163 = vadd.xlane.f32.xlu0 %v162
    %v164 = vpop.xlane.xlu0 %163
    %v165 = vsel %vm161, %v156, 0.0
    %166 = vadd.xlane.f32.xlu0 %v165
    %v167 = vpop.xlane.xlu0 %166
    %v168 = vrcp.pop 32.0
    %v169 = vmul.f32 %v164, %v168
    %v170 = vmul.f32 %v167, %v168
    %v171 = vsub.f32 %v153, %v169
    %v172 = vsub.f32 %v156, %v170
    %v173 = vmul.f32 %v171, %v171
    %v174 = vmul.f32 %v172, %v172
    %v175 = vsel %vm161, %v173, 0.0
    %176 = vadd.xlane.f32.xlu0 %v175
    %v177 = vpop.xlane.xlu0 %176
    %v178 = vsel %vm161, %v174, 0.0
    %179 = vadd.xlane.f32.xlu0 %v178
    %v180 = vpop.xlane.xlu0 %179
    %v181 = vmul.f32 %v177, %v168
    %v182 = vmul.f32 %v180, %v168
    %v183 = vadd.f32 %v181, 1e-12
    %v184 = vadd.f32 %v182, 1e-12
    %v185 = vrsqrt.pop %v183
    %v186 = vrsqrt.pop %v184
    %v187 = vmul.f32 %v171, %v185
    %v188 = vmul.f32 %v172, %v186
    %v189 = vlaneseq
    %v190 = vshrl.u32 %v189, 7
    %v191 = vsub.s32 0, %v190
    %v192 = vrot.slane %v159, %v191
    %v193 = vmul.f32 %v187, %v192
    %v194 = vmul.f32 %v188, %v192
    %v195 = vlaneseq
    %v196 = vshrl.u32 %v195, 7
    %v197 = vsub.s32 0, %v196
    %v198 = vrot.slane %v160, %v197
    %v199 = vadd.f32 %v193, %v198
    %v200 = vadd.f32 %v194, %v198
    %v201 = vld [vmem:[%s1] sm:$0x3]
    %v202 = vcvt.s32.f32 %v201
    %v203 = vsub.f32 1.0, %v202
    %v204 = vmul.f32 %v203, -30.0
    %v207 = vunpack.c.l.s4 1966171168
    %v208 = vunpack.c.0.s8 %v207
    %v209 = vlaneseq
    %v210 = vshrl.u32 %v209, 7
    %v211 = vsub.s32 %v208, %v210
    %v212 = vrot.slane %v204, %v211
    %v213 = vcombine.high %v212, %v212
    %v215 = vunpack.c.l.s4 1966171168
    %v216 = vunpack.c.0.s8 %v215
    %v217 = vlaneseq
    %v218 = vshrl.u32 %v217, 7
    %v219 = vsub.s32 %v216, %v218
    %v220 = vrot.slane %v212, %v219
    %v222 = vunpack.c.l.s4 1966171168
    %v223 = vunpack.c.0.s8 %v222
    %v224 = vlaneseq
    %v225 = vshrl.u32 %v224, 7
    %v226 = vsub.s32 %v223, %v225
    %v227 = vrot.slane %v213, %v226
    %v228 = vld [vmem:[%s4] sm:$0x1]
    %v229 = vld [vmem:[%s4 + $0x1] sm:$0x1]
    %v230 = vld [vmem:[%s4 + $0x2] sm:$0x1]
    %v231 = vld [vmem:[%s4 + $0x3] sm:$0x1]
    %v232 = vld [vmem:[%s4 + $0x4] sm:$0x1]
    %v233 = vld [vmem:[%s4 + $0x5] sm:$0x1]
    %v234 = vld [vmem:[%s4 + $0x6] sm:$0x1]
    %v235 = vld [vmem:[%s4 + $0x7] sm:$0x1]
    %v236 = vpack.c.bf16 %v200, %v199
    %v237 = vld [vmem:[#allocation2] sm:$0xf]
    %v238 = vld [vmem:[#allocation2 + $0x8] sm:$0xf]
    %v239 = vld [vmem:[#allocation2 + $0x10] sm:$0xf]
    %v240 = vld [vmem:[#allocation2 + $0x18] sm:$0xf]
    %v241 = vlaneseq
    %v242 = vshrl.u32 %v241, 7
    %v243 = vsub.s32 0, %v242
    %v244 = vrot.slane %v228, %v243
    %v249 = vunpack.c.l.b16 %v237
    %v250 = vunpack.c.l.b16 %v238
    %v251 = vunpack.c.l.b16 %v239
    %v252 = vunpack.c.l.b16 %v240
    %v253 = vpack.c.b16 %v250, %v249
    %v254 = vpack.c.b16 %v252, %v251
    %v258 = vsel %vm161, %v236, 0
    %260 = vmatprep.subr.bf16.mxu0 0
    %261 = vmatpush1.bf16.msra.mxu0 %v253
    %262 = vmatprep.subr.bf16.mxu0 0
    %263 = vmatpush1.bf16.msra.mxu0 %v254
    %264 = vmatprep.subr.bf16.mxu0 0
    %265 = vmatpush1.bf16.msra.mxu0 0
    %266 = vmatprep.subr.bf16.mxu0 0
    %267 = vmatpush1.bf16.msra.mxu0 0
    %268 = vmatprep.subr.bf16.mxu0 0
    %269 = vmatpush1.bf16.msra.mxu0 0
    %270 = vmatprep.subr.bf16.mxu0 0
    %271 = vmatpush1.bf16.msra.mxu0 0
    %272 = vmatprep.subr.bf16.mxu0 0
    %273 = vmatpush1.bf16.msra.mxu0 0
    %274 = vmatprep.subr.bf16.mxu0 0
    %275 = vmatpush1.bf16.msra.mxu0 0
    %276 = vmatprep.subr.bf16.mxu0 0
    %277 = vmatpush1.bf16.msra.mxu0 0
    %278 = vmatprep.subr.bf16.mxu0 0
    %279 = vmatpush1.bf16.msra.mxu0 0
    %280 = vmatprep.subr.bf16.mxu0 0
    %281 = vmatpush1.bf16.msra.mxu0 0
    %282 = vmatprep.subr.bf16.mxu0 0
    %283 = vmatpush1.bf16.msra.mxu0 0
    %284 = vmatprep.subr.bf16.mxu0 0
    %285 = vmatpush1.bf16.msra.mxu0 0
    %286 = vmatprep.subr.bf16.mxu0 0
    %287 = vmatpush1.bf16.msra.mxu0 0
    %288 = vmatprep.subr.bf16.mxu0 0
    %289 = vmatpush1.bf16.msra.mxu0 0
    %290 = vmatprep.subr.bf16.mxu0 0
    %291 = vmatpush1.bf16.msra.mxu0 0
    %292 = vmatprep.mubr.bf16.mxu0 0
    %293 = vmatmul.mubr.bf16.gmra.mrb[0].mxu0 %v258
    %v294 = vpop.f32.mrb[0].mxu0
    %v295 = vadd.f32 %v244, %v294
    %v296 = vpop.f32.mrb[0].mxu0
    %v297 = vpop.f32.mrb[0].mxu0
    %v298 = vadd.f32 %v244, %v297
    %v299 = vpop.f32.mrb[0].mxu0
    %300 = vdwg.mxu0
    %302 = vrot.lane.b32.xlu0 %v295, 96
    %v303 = vpop.permute.xlu0 %302
    %vm304 = vcmask 130048
    %v305 = vsel %vm304, %v295, 0
    %v307 = vsel %vm304, %v303, 0
    %309 = vmatprep.subr.mxu0 0.0
    %310 = vmatpush1.xpose.msra.mxu0 %v307
    %311 = vmatprep.subr.mxu0 0.0
    %312 = vmatpush1.xpose.msra.mxu0 0.0
    %313 = vmatprep.subr.mxu0 0.0
    %314 = vmatpush1.xpose.msra.mxu0 0.0
    %315 = vmatprep.subr.mxu0 0.0
    %316 = vmatpush1.xpose.msra.mxu0 0.0
    %317 = vmatprep.subr.mxu0 0.0
    %318 = vmatpush1.xpose.msra.mxu0 0.0
    %319 = vmatprep.subr.mxu0 0.0
    %320 = vmatpush1.xpose.msra.mxu0 0.0
    %321 = vmatprep.subr.mxu0 0.0
    %322 = vmatpush1.xpose.msra.mxu0 0.0
    %323 = vmatprep.subr.mxu0 0.0
    %324 = vmatpush1.xpose.msra.mxu0 0.0
    %325 = vmatprep.subr.mxu0 0.0
    %326 = vmatpush1.xpose.msra.mxu0 0.0
    %327 = vmatprep.subr.mxu0 0.0
    %328 = vmatpush1.xpose.msra.mxu0 0.0
    %329 = vmatprep.subr.mxu0 0.0
    %330 = vmatpush1.xpose.msra.mxu0 0.0
    %331 = vmatprep.subr.mxu0 0.0
    %332 = vmatpush1.xpose.msra.mxu0 0.0
    %333 = vmatprep.subr.mxu0 0.0
    %334 = vmatpush1.xpose.msra.mxu0 0.0
    %335 = vmatprep.subr.mxu0 0.0
    %336 = vmatpush1.xpose.msra.mxu0 0.0
    %337 = vmatprep.subr.mxu0 0.0
    %338 = vmatpush1.xpose.msra.mxu0 0.0
    %339 = vmatprep.subr.mxu0 0.0
    %340 = vmatpush1.xpose.msra.mxu0 0.0
    %341 = vmatprep.subr.mxu0 0.0
    %342 = vmatpush1.xpose.msra.mxu0 0.0
    %343 = vmatprep.subr.mxu0 0.0
    %344 = vmatpush1.xpose.msra.mxu0 0.0
    %345 = vmatprep.subr.mxu0 0.0
    %346 = vmatpush1.xpose.msra.mxu0 0.0
    %347 = vmatprep.subr.mxu0 0.0
    %348 = vmatpush1.xpose.msra.mxu0 0.0
    %349 = vmatprep.subr.mxu0 0.0
    %350 = vmatpush1.xpose.msra.mxu0 0.0
    %351 = vmatprep.subr.mxu0 0.0
    %352 = vmatpush1.xpose.msra.mxu0 0.0
    %353 = vmatprep.subr.mxu0 0.0
    %354 = vmatpush1.xpose.msra.mxu0 0.0
    %355 = vmatprep.subr.mxu0 0.0
    %356 = vmatpush1.xpose.msra.mxu0 0.0
    %357 = vmatprep.subr.mxu0 0.0
    %358 = vmatpush1.xpose.msra.mxu0 0.0
    %359 = vmatprep.subr.mxu0 0.0
    %360 = vmatpush1.xpose.msra.mxu0 0.0
    %361 = vmatprep.subr.mxu0 0.0
    %362 = vmatpush1.xpose.msra.mxu0 0.0
    %363 = vmatprep.subr.mxu0 0.0
    %364 = vmatpush1.xpose.msra.mxu0 0.0
    %365 = vmatprep.subr.mxu0 0.0
    %366 = vmatpush1.xpose.msra.mxu0 0.0
    %367 = vmatprep.subr.mxu0 0.0
    %368 = vmatpush1.xpose.msra.mxu0 0.0
    %369 = vmatprep.subr.mxu0 0.0
    %370 = vmatpush1.xpose.msra.mxu0 0.0
    %371 = vmatprep.subr.mxu0 0.0
    %372 = vmatpush1.xpose.msra.mxu0 0.0
    %373 = vmatprep.mubr.f32.mxu0 0.0
    %374 = vmatmul.mubr.f32.gmra.mrb[0].mxu0 %v305
    %v375 = vpop.f32.mrb[0].mxu0
    %v376 = vadd.f32 0.0, %v375
    %v377 = vpop.f32.mrb[0].mxu0
    %378 = vdwg.mxu0
    %380 = vrot.lane.b32.xlu0 %v298, 96
    %v381 = vpop.permute.xlu0 %380
    %v382 = vsel %vm304, %v298, 0
    %v384 = vsel %vm304, %v381, 0
    %386 = vmatprep.subr.mxu0 0.0
    %387 = vmatpush1.xpose.msra.mxu0 %v384
    %388 = vmatprep.subr.mxu0 0.0
    %389 = vmatpush1.xpose.msra.mxu0 0.0
    %390 = vmatprep.subr.mxu0 0.0
    %391 = vmatpush1.xpose.msra.mxu0 0.0
    %392 = vmatprep.subr.mxu0 0.0
    %393 = vmatpush1.xpose.msra.mxu0 0.0
    %394 = vmatprep.subr.mxu0 0.0
    %395 = vmatpush1.xpose.msra.mxu0 0.0
    %396 = vmatprep.subr.mxu0 0.0
    %397 = vmatpush1.xpose.msra.mxu0 0.0
    %398 = vmatprep.subr.mxu0 0.0
    %399 = vmatpush1.xpose.msra.mxu0 0.0
    %400 = vmatprep.subr.mxu0 0.0
    %401 = vmatpush1.xpose.msra.mxu0 0.0
    %402 = vmatprep.subr.mxu0 0.0
    %403 = vmatpush1.xpose.msra.mxu0 0.0
    %404 = vmatprep.subr.mxu0 0.0
    %405 = vmatpush1.xpose.msra.mxu0 0.0
    %406 = vmatprep.subr.mxu0 0.0
    %407 = vmatpush1.xpose.msra.mxu0 0.0
    %408 = vmatprep.subr.mxu0 0.0
    %409 = vmatpush1.xpose.msra.mxu0 0.0
    %410 = vmatprep.subr.mxu0 0.0
    %411 = vmatpush1.xpose.msra.mxu0 0.0
    %412 = vmatprep.subr.mxu0 0.0
    %413 = vmatpush1.xpose.msra.mxu0 0.0
    %414 = vmatprep.subr.mxu0 0.0
    %415 = vmatpush1.xpose.msra.mxu0 0.0
    %416 = vmatprep.subr.mxu0 0.0
    %417 = vmatpush1.xpose.msra.mxu0 0.0
    %418 = vmatprep.subr.mxu0 0.0
    %419 = vmatpush1.xpose.msra.mxu0 0.0
    %420 = vmatprep.subr.mxu0 0.0
    %421 = vmatpush1.xpose.msra.mxu0 0.0
    %422 = vmatprep.subr.mxu0 0.0
    %423 = vmatpush1.xpose.msra.mxu0 0.0
    %424 = vmatprep.subr.mxu0 0.0
    %425 = vmatpush1.xpose.msra.mxu0 0.0
    %426 = vmatprep.subr.mxu0 0.0
    %427 = vmatpush1.xpose.msra.mxu0 0.0
    %428 = vmatprep.subr.mxu0 0.0
    %429 = vmatpush1.xpose.msra.mxu0 0.0
    %430 = vmatprep.subr.mxu0 0.0
    %431 = vmatpush1.xpose.msra.mxu0 0.0
    %432 = vmatprep.subr.mxu0 0.0
    %433 = vmatpush1.xpose.msra.mxu0 0.0
    %434 = vmatprep.subr.mxu0 0.0
    %435 = vmatpush1.xpose.msra.mxu0 0.0
    %436 = vmatprep.subr.mxu0 0.0
    %437 = vmatpush1.xpose.msra.mxu0 0.0
    %438 = vmatprep.subr.mxu0 0.0
    %439 = vmatpush1.xpose.msra.mxu0 0.0
    %440 = vmatprep.subr.mxu0 0.0
    %441 = vmatpush1.xpose.msra.mxu0 0.0
    %442 = vmatprep.subr.mxu0 0.0
    %443 = vmatpush1.xpose.msra.mxu0 0.0
    %444 = vmatprep.subr.mxu0 0.0
    %445 = vmatpush1.xpose.msra.mxu0 0.0
    %446 = vmatprep.subr.mxu0 0.0
    %447 = vmatpush1.xpose.msra.mxu0 0.0
    %448 = vmatprep.subr.mxu0 0.0
    %449 = vmatpush1.xpose.msra.mxu0 0.0
    %450 = vmatprep.mubr.f32.mxu0 0.0
    %451 = vmatmul.mubr.f32.gmra.mrb[0].mxu0 %v382
    %v452 = vpop.f32.mrb[0].mxu0
    %v453 = vadd.f32 0.0, %v452
    %v454 = vpop.f32.mrb[0].mxu0
    %455 = vdwg.mxu0
    %v456 = vmul.f32 %v376, 0.25
    %v457 = vmul.f32 %v453, 0.25
    %v458 = vlaneseq
    %v459 = vshrl.u32 %v458, 7
    %v460 = vsub.s32 0, %v459
    %v461 = vrot.slane %v220, %v460
    %v462 = vlaneseq
    %v463 = vshrl.u32 %v462, 7
    %v464 = vsub.s32 0, %v463
    %v465 = vrot.slane %v227, %v464
    %v468 = vadd.f32 %v456, %v461
    %v469 = vadd.f32 %v457, %v465
    %v470 = vmul.f32 %v468, 1.442695
    %v471 = vpow.pop %v470
    %v472 = vmul.f32 %v469, 1.442695
    %v473 = vpow.pop %v472
    %vm474 = vcmask 64512
    %v475 = vsel %vm474, %v471, 0.0
    %476 = vadd.xlane.f32.xlu0 %v475
    %v477 = vpop.xlane.xlu0 %476
    %v478 = vsel %vm474, %v473, 0.0
    %479 = vadd.xlane.f32.xlu0 %v478
    %v480 = vpop.xlane.xlu0 %479
    %v481 = vrcp.pop %v477
    %v482 = vrcp.pop %v480
    %v483 = vmul.f32 %v471, %v481
    %v484 = vmul.f32 %v473, %v482
    %485 = vrot.lane.b32.xlu0 %v295, 64
    %v486 = vpop.permute.xlu0 %485
    %v489 = vsel %vm474, %v483, 0
    %491 = vmatprep.subr.mxu0 0.0
    %492 = vmatpush1.msra.mxu0 %v486
    %493 = vmatprep.subr.mxu0 0.0
    %494 = vmatpush1.msra.mxu0 0.0
    %495 = vmatprep.subr.mxu0 0.0
    %496 = vmatpush1.msra.mxu0 0.0
    %497 = vmatprep.subr.mxu0 0.0
    %498 = vmatpush1.msra.mxu0 0.0
    %499 = vmatprep.subr.mxu0 0.0
    %500 = vmatpush1.msra.mxu0 0.0
    %501 = vmatprep.subr.mxu0 0.0
    %502 = vmatpush1.msra.mxu0 0.0
    %503 = vmatprep.subr.mxu0 0.0
    %504 = vmatpush1.msra.mxu0 0.0
    %505 = vmatprep.subr.mxu0 0.0
    %506 = vmatpush1.msra.mxu0 0.0
    %507 = vmatprep.subr.mxu0 0.0
    %508 = vmatpush1.msra.mxu0 0.0
    %509 = vmatprep.subr.mxu0 0.0
    %510 = vmatpush1.msra.mxu0 0.0
    %511 = vmatprep.subr.mxu0 0.0
    %512 = vmatpush1.msra.mxu0 0.0
    %513 = vmatprep.subr.mxu0 0.0
    %514 = vmatpush1.msra.mxu0 0.0
    %515 = vmatprep.subr.mxu0 0.0
    %516 = vmatpush1.msra.mxu0 0.0
    %517 = vmatprep.subr.mxu0 0.0
    %518 = vmatpush1.msra.mxu0 0.0
    %519 = vmatprep.subr.mxu0 0.0
    %520 = vmatpush1.msra.mxu0 0.0
    %521 = vmatprep.subr.mxu0 0.0
    %522 = vmatpush1.msra.mxu0 0.0
    %523 = vmatprep.subr.mxu0 0.0
    %524 = vmatpush1.msra.mxu0 0.0
    %525 = vmatprep.subr.mxu0 0.0
    %526 = vmatpush1.msra.mxu0 0.0
    %527 = vmatprep.subr.mxu0 0.0
    %528 = vmatpush1.msra.mxu0 0.0
    %529 = vmatprep.subr.mxu0 0.0
    %530 = vmatpush1.msra.mxu0 0.0
    %531 = vmatprep.subr.mxu0 0.0
    %532 = vmatpush1.msra.mxu0 0.0
    %533 = vmatprep.subr.mxu0 0.0
    %534 = vmatpush1.msra.mxu0 0.0
    %535 = vmatprep.subr.mxu0 0.0
    %536 = vmatpush1.msra.mxu0 0.0
    %537 = vmatprep.subr.mxu0 0.0
    %538 = vmatpush1.msra.mxu0 0.0
    %539 = vmatprep.subr.mxu0 0.0
    %540 = vmatpush1.msra.mxu0 0.0
    %541 = vmatprep.subr.mxu0 0.0
    %542 = vmatpush1.msra.mxu0 0.0
    %543 = vmatprep.subr.mxu0 0.0
    %544 = vmatpush1.msra.mxu0 0.0
    %545 = vmatprep.subr.mxu0 0.0
    %546 = vmatpush1.msra.mxu0 0.0
    %547 = vmatprep.subr.mxu0 0.0
    %548 = vmatpush1.msra.mxu0 0.0
    %549 = vmatprep.subr.mxu0 0.0
    %550 = vmatpush1.msra.mxu0 0.0
    %551 = vmatprep.subr.mxu0 0.0
    %552 = vmatpush1.msra.mxu0 0.0
    %553 = vmatprep.subr.mxu0 0.0
    %554 = vmatpush1.msra.mxu0 0.0
    %555 = vmatprep.mubr.f32.mxu0 0.0
    %556 = vmatmul.mubr.f32.gmra.mrb[0].mxu0 %v489
    %v557 = vpop.f32.mrb[0].mxu0
    %v558 = vadd.f32 0.0, %v557
    %v559 = vpop.f32.mrb[0].mxu0
    %560 = vdwg.mxu0
    %561 = vrot.lane.b32.xlu0 %v298, 64
    %v562 = vpop.permute.xlu0 %561
    %v565 = vsel %vm474, %v484, 0
    %567 = vmatprep.subr.mxu0 0.0
    %568 = vmatpush1.msra.mxu0 %v562
    %569 = vmatprep.subr.mxu0 0.0
    %570 = vmatpush1.msra.mxu0 0.0
    %571 = vmatprep.subr.mxu0 0.0
    %572 = vmatpush1.msra.mxu0 0.0
    %573 = vmatprep.subr.mxu0 0.0
    %574 = vmatpush1.msra.mxu0 0.0
    %575 = vmatprep.subr.mxu0 0.0
    %576 = vmatpush1.msra.mxu0 0.0
    %577 = vmatprep.subr.mxu0 0.0
    %578 = vmatpush1.msra.mxu0 0.0
    %579 = vmatprep.subr.mxu0 0.0
    %580 = vmatpush1.msra.mxu0 0.0
    %581 = vmatprep.subr.mxu0 0.0
    %582 = vmatpush1.msra.mxu0 0.0
    %583 = vmatprep.subr.mxu0 0.0
    %584 = vmatpush1.msra.mxu0 0.0
    %585 = vmatprep.subr.mxu0 0.0
    %586 = vmatpush1.msra.mxu0 0.0
    %587 = vmatprep.subr.mxu0 0.0
    %588 = vmatpush1.msra.mxu0 0.0
    %589 = vmatprep.subr.mxu0 0.0
    %590 = vmatpush1.msra.mxu0 0.0
    %591 = vmatprep.subr.mxu0 0.0
    %592 = vmatpush1.msra.mxu0 0.0
    %593 = vmatprep.subr.mxu0 0.0
    %594 = vmatpush1.msra.mxu0 0.0
    %595 = vmatprep.subr.mxu0 0.0
    %596 = vmatpush1.msra.mxu0 0.0
    %597 = vmatprep.subr.mxu0 0.0
    %598 = vmatpush1.msra.mxu0 0.0
    %599 = vmatprep.subr.mxu0 0.0
    %600 = vmatpush1.msra.mxu0 0.0
    %601 = vmatprep.subr.mxu0 0.0
    %602 = vmatpush1.msra.mxu0 0.0
    %603 = vmatprep.subr.mxu0 0.0
    %604 = vmatpush1.msra.mxu0 0.0
    %605 = vmatprep.subr.mxu0 0.0
    %606 = vmatpush1.msra.mxu0 0.0
    %607 = vmatprep.subr.mxu0 0.0
    %608 = vmatpush1.msra.mxu0 0.0
    %609 = vmatprep.subr.mxu0 0.0
    %610 = vmatpush1.msra.mxu0 0.0
    %611 = vmatprep.subr.mxu0 0.0
    %612 = vmatpush1.msra.mxu0 0.0
    %613 = vmatprep.subr.mxu0 0.0
    %614 = vmatpush1.msra.mxu0 0.0
    %615 = vmatprep.subr.mxu0 0.0
    %616 = vmatpush1.msra.mxu0 0.0
    %617 = vmatprep.subr.mxu0 0.0
    %618 = vmatpush1.msra.mxu0 0.0
    %619 = vmatprep.subr.mxu0 0.0
    %620 = vmatpush1.msra.mxu0 0.0
    %621 = vmatprep.subr.mxu0 0.0
    %622 = vmatpush1.msra.mxu0 0.0
    %623 = vmatprep.subr.mxu0 0.0
    %624 = vmatpush1.msra.mxu0 0.0
    %625 = vmatprep.subr.mxu0 0.0
    %626 = vmatpush1.msra.mxu0 0.0
    %627 = vmatprep.subr.mxu0 0.0
    %628 = vmatpush1.msra.mxu0 0.0
    %629 = vmatprep.subr.mxu0 0.0
    %630 = vmatpush1.msra.mxu0 0.0
    %631 = vmatprep.mubr.f32.mxu0 0.0
    %632 = vmatmul.mubr.f32.gmra.mrb[0].mxu0 %v565
    %v633 = vpop.f32.mrb[0].mxu0
    %v634 = vadd.f32 0.0, %v633
    %v635 = vpop.f32.mrb[0].mxu0
    %636 = vdwg.mxu0
    %v637 = vpack.c.bf16 %v634, %v558
    %v638 = vld [vmem:[#allocation2] sm:$0xf]
    %v639 = vld [vmem:[#allocation2 + $0x8] sm:$0xf]
    %640 = vrot.lane.b32.xlu0 %v295, 112
    %v641 = vpop.permute.xlu0 %640
    %642 = vrot.lane.b32.xlu0 %v295, 80
    %v643 = vpop.permute.xlu0 %642
    %v644 = vsel %vm304, %v641, 0
    %v646 = vsel %vm304, %v643, 0
    %648 = vmatprep.subr.mxu0 0.0
    %649 = vmatpush1.xpose.msra.mxu0 %v646
    %650 = vmatprep.subr.mxu0 0.0
    %651 = vmatpush1.xpose.msra.mxu0 0.0
    %652 = vmatprep.subr.mxu0 0.0
    %653 = vmatpush1.xpose.msra.mxu0 0.0
    %654 = vmatprep.subr.mxu0 0.0
    %655 = vmatpush1.xpose.msra.mxu0 0.0
    %656 = vmatprep.subr.mxu0 0.0
    %657 = vmatpush1.xpose.msra.mxu0 0.0
    %658 = vmatprep.subr.mxu0 0.0
    %659 = vmatpush1.xpose.msra.mxu0 0.0
    %660 = vmatprep.subr.mxu0 0.0
    %661 = vmatpush1.xpose.msra.mxu0 0.0
    %662 = vmatprep.subr.mxu0 0.0
    %663 = vmatpush1.xpose.msra.mxu0 0.0
    %664 = vmatprep.subr.mxu0 0.0
    %665 = vmatpush1.xpose.msra.mxu0 0.0
    %666 = vmatprep.subr.mxu0 0.0
    %667 = vmatpush1.xpose.msra.mxu0 0.0
    %668 = vmatprep.subr.mxu0 0.0
    %669 = vmatpush1.xpose.msra.mxu0 0.0
    %670 = vmatprep.subr.mxu0 0.0
    %671 = vmatpush1.xpose.msra.mxu0 0.0
    %672 = vmatprep.subr.mxu0 0.0
    %673 = vmatpush1.xpose.msra.mxu0 0.0
    %674 = vmatprep.subr.mxu0 0.0
    %675 = vmatpush1.xpose.msra.mxu0 0.0
    %676 = vmatprep.subr.mxu0 0.0
    %677 = vmatpush1.xpose.msra.mxu0 0.0
    %678 = vmatprep.subr.mxu0 0.0
    %679 = vmatpush1.xpose.msra.mxu0 0.0
    %680 = vmatprep.subr.mxu0 0.0
    %681 = vmatpush1.xpose.msra.mxu0 0.0
    %682 = vmatprep.subr.mxu0 0.0
    %683 = vmatpush1.xpose.msra.mxu0 0.0
    %684 = vmatprep.subr.mxu0 0.0
    %685 = vmatpush1.xpose.msra.mxu0 0.0
    %686 = vmatprep.subr.mxu0 0.0
    %687 = vmatpush1.xpose.msra.mxu0 0.0
    %688 = vmatprep.subr.mxu0 0.0
    %689 = vmatpush1.xpose.msra.mxu0 0.0
    %690 = vmatprep.subr.mxu0 0.0
    %691 = vmatpush1.xpose.msra.mxu0 0.0
    %692 = vmatprep.subr.mxu0 0.0
    %693 = vmatpush1.xpose.msra.mxu0 0.0
    %694 = vmatprep.subr.mxu0 0.0
    %695 = vmatpush1.xpose.msra.mxu0 0.0
    %696 = vmatprep.subr.mxu0 0.0
    %697 = vmatpush1.xpose.msra.mxu0 0.0
    %698 = vmatprep.subr.mxu0 0.0
    %699 = vmatpush1.xpose.msra.mxu0 0.0
    %700 = vmatprep.subr.mxu0 0.0
    %701 = vmatpush1.xpose.msra.mxu0 0.0
    %702 = vmatprep.subr.mxu0 0.0
    %703 = vmatpush1.xpose.msra.mxu0 0.0
    %704 = vmatprep.subr.mxu0 0.0
    %705 = vmatpush1.xpose.msra.mxu0 0.0
    %706 = vmatprep.subr.mxu0 0.0
    %707 = vmatpush1.xpose.msra.mxu0 0.0
    %708 = vmatprep.subr.mxu0 0.0
    %709 = vmatpush1.xpose.msra.mxu0 0.0
    %710 = vmatprep.subr.mxu0 0.0
    %711 = vmatpush1.xpose.msra.mxu0 0.0
    %712 = vmatprep.mubr.f32.mxu0 0.0
    %713 = vmatmul.mubr.f32.gmra.mrb[0].mxu0 %v644
    %v714 = vpop.f32.mrb[0].mxu0
    %v715 = vadd.f32 0.0, %v714
    %v716 = vpop.f32.mrb[0].mxu0
    %717 = vdwg.mxu0
    %718 = vrot.lane.b32.xlu0 %v298, 112
    %v719 = vpop.permute.xlu0 %718
    %720 = vrot.lane.b32.xlu0 %v298, 80
    %v721 = vpop.permute.xlu0 %720
    %v722 = vsel %vm304, %v719, 0
    %v724 = vsel %vm304, %v721, 0
    %726 = vmatprep.subr.mxu0 0.0
    %727 = vmatpush1.xpose.msra.mxu0 %v724
    %728 = vmatprep.subr.mxu0 0.0
    %729 = vmatpush1.xpose.msra.mxu0 0.0
    %730 = vmatprep.subr.mxu0 0.0
    %731 = vmatpush1.xpose.msra.mxu0 0.0
    %732 = vmatprep.subr.mxu0 0.0
    %733 = vmatpush1.xpose.msra.mxu0 0.0
    %734 = vmatprep.subr.mxu0 0.0
    %735 = vmatpush1.xpose.msra.mxu0 0.0
    %736 = vmatprep.subr.mxu0 0.0
    %737 = vmatpush1.xpose.msra.mxu0 0.0
    %738 = vmatprep.subr.mxu0 0.0
    %739 = vmatpush1.xpose.msra.mxu0 0.0
    %740 = vmatprep.subr.mxu0 0.0
    %741 = vmatpush1.xpose.msra.mxu0 0.0
    %742 = vmatprep.subr.mxu0 0.0
    %743 = vmatpush1.xpose.msra.mxu0 0.0
    %744 = vmatprep.subr.mxu0 0.0
    %745 = vmatpush1.xpose.msra.mxu0 0.0
    %746 = vmatprep.subr.mxu0 0.0
    %747 = vmatpush1.xpose.msra.mxu0 0.0
    %748 = vmatprep.subr.mxu0 0.0
    %749 = vmatpush1.xpose.msra.mxu0 0.0
    %750 = vmatprep.subr.mxu0 0.0
    %751 = vmatpush1.xpose.msra.mxu0 0.0
    %752 = vmatprep.subr.mxu0 0.0
    %753 = vmatpush1.xpose.msra.mxu0 0.0
    %754 = vmatprep.subr.mxu0 0.0
    %755 = vmatpush1.xpose.msra.mxu0 0.0
    %756 = vmatprep.subr.mxu0 0.0
    %757 = vmatpush1.xpose.msra.mxu0 0.0
    %758 = vmatprep.subr.mxu0 0.0
    %759 = vmatpush1.xpose.msra.mxu0 0.0
    %760 = vmatprep.subr.mxu0 0.0
    %761 = vmatpush1.xpose.msra.mxu0 0.0
    %762 = vmatprep.subr.mxu0 0.0
    %763 = vmatpush1.xpose.msra.mxu0 0.0
    %764 = vmatprep.subr.mxu0 0.0
    %765 = vmatpush1.xpose.msra.mxu0 0.0
    %766 = vmatprep.subr.mxu0 0.0
    %767 = vmatpush1.xpose.msra.mxu0 0.0
    %768 = vmatprep.subr.mxu0 0.0
    %769 = vmatpush1.xpose.msra.mxu0 0.0
    %770 = vmatprep.subr.mxu0 0.0
    %771 = vmatpush1.xpose.msra.mxu0 0.0
    %772 = vmatprep.subr.mxu0 0.0
    %773 = vmatpush1.xpose.msra.mxu0 0.0
    %774 = vmatprep.subr.mxu0 0.0
    %775 = vmatpush1.xpose.msra.mxu0 0.0
    %776 = vmatprep.subr.mxu0 0.0
    %777 = vmatpush1.xpose.msra.mxu0 0.0
    %778 = vmatprep.subr.mxu0 0.0
    %779 = vmatpush1.xpose.msra.mxu0 0.0
    %780 = vmatprep.subr.mxu0 0.0
    %781 = vmatpush1.xpose.msra.mxu0 0.0
    %782 = vmatprep.subr.mxu0 0.0
    %783 = vmatpush1.xpose.msra.mxu0 0.0
    %784 = vmatprep.subr.mxu0 0.0
    %785 = vmatpush1.xpose.msra.mxu0 0.0
    %786 = vmatprep.subr.mxu0 0.0
    %787 = vmatpush1.xpose.msra.mxu0 0.0
    %788 = vmatprep.subr.mxu0 0.0
    %789 = vmatpush1.xpose.msra.mxu0 0.0
    %790 = vmatprep.mubr.f32.mxu0 0.0
    %791 = vmatmul.mubr.f32.gmra.mrb[0].mxu0 %v722
    %v792 = vpop.f32.mrb[0].mxu0
    %v793 = vadd.f32 0.0, %v792
    %v794 = vpop.f32.mrb[0].mxu0
    %795 = vdwg.mxu0
    %v796 = vmul.f32 %v715, 0.25
    %v797 = vmul.f32 %v793, 0.25
    %v798 = vadd.f32 %v796, %v461
    %v799 = vadd.f32 %v797, %v465
    %v800 = vmul.f32 %v798, 1.442695
    %v801 = vpow.pop %v800
    %v802 = vmul.f32 %v799, 1.442695
    %v803 = vpow.pop %v802
    %v804 = vsel %vm474, %v801, 0.0
    %805 = vadd.xlane.f32.xlu0 %v804
    %v806 = vpop.xlane.xlu0 %805
    %v807 = vsel %vm474, %v803, 0.0
    %808 = vadd.xlane.f32.xlu0 %v807
    %v809 = vpop.xlane.xlu0 %808
    %v810 = vrcp.pop %v806
    %v811 = vrcp.pop %v809
    %v812 = vmul.f32 %v801, %v810
    %v813 = vmul.f32 %v803, %v811
    %814 = vrot.lane.b32.xlu0 %v295, 48
    %v815 = vpop.permute.xlu0 %814
    %v818 = vsel %vm474, %v812, 0
    %820 = vmatprep.subr.mxu0 0.0
    %821 = vmatpush1.msra.mxu0 %v815
    %822 = vmatprep.subr.mxu0 0.0
    %823 = vmatpush1.msra.mxu0 0.0
    %824 = vmatprep.subr.mxu0 0.0
    %825 = vmatpush1.msra.mxu0 0.0
    %826 = vmatprep.subr.mxu0 0.0
    %827 = vmatpush1.msra.mxu0 0.0
    %828 = vmatprep.subr.mxu0 0.0
    %829 = vmatpush1.msra.mxu0 0.0
    %830 = vmatprep.subr.mxu0 0.0
    %831 = vmatpush1.msra.mxu0 0.0
    %832 = vmatprep.subr.mxu0 0.0
    %833 = vmatpush1.msra.mxu0 0.0
    %834 = vmatprep.subr.mxu0 0.0
    %835 = vmatpush1.msra.mxu0 0.0
    %836 = vmatprep.subr.mxu0 0.0
    %837 = vmatpush1.msra.mxu0 0.0
    %838 = vmatprep.subr.mxu0 0.0
    %839 = vmatpush1.msra.mxu0 0.0
    %840 = vmatprep.subr.mxu0 0.0
    %841 = vmatpush1.msra.mxu0 0.0
    %842 = vmatprep.subr.mxu0 0.0
    %843 = vmatpush1.msra.mxu0 0.0
    %844 = vmatprep.subr.mxu0 0.0
    %845 = vmatpush1.msra.mxu0 0.0
    %846 = vmatprep.subr.mxu0 0.0
    %847 = vmatpush1.msra.mxu0 0.0
    %848 = vmatprep.subr.mxu0 0.0
    %849 = vmatpush1.msra.mxu0 0.0
    %850 = vmatprep.subr.mxu0 0.0
    %851 = vmatpush1.msra.mxu0 0.0
    %852 = vmatprep.subr.mxu0 0.0
    %853 = vmatpush1.msra.mxu0 0.0
    %854 = vmatprep.subr.mxu0 0.0
    %855 = vmatpush1.msra.mxu0 0.0
    %856 = vmatprep.subr.mxu0 0.0
    %857 = vmatpush1.msra.mxu0 0.0
    %858 = vmatprep.subr.mxu0 0.0
    %859 = vmatpush1.msra.mxu0 0.0
    %860 = vmatprep.subr.mxu0 0.0
    %861 = vmatpush1.msra.mxu0 0.0
    %862 = vmatprep.subr.mxu0 0.0
    %863 = vmatpush1.msra.mxu0 0.0
    %864 = vmatprep.subr.mxu0 0.0
    %865 = vmatpush1.msra.mxu0 0.0
    %866 = vmatprep.subr.mxu0 0.0
    %867 = vmatpush1.msra.mxu0 0.0
    %868 = vmatprep.subr.mxu0 0.0
    %869 = vmatpush1.msra.mxu0 0.0
    %870 = vmatprep.subr.mxu0 0.0
    %871 = vmatpush1.msra.mxu0 0.0
    %872 = vmatprep.subr.mxu0 0.0
    %873 = vmatpush1.msra.mxu0 0.0
    %874 = vmatprep.subr.mxu0 0.0
    %875 = vmatpush1.msra.mxu0 0.0
    %876 = vmatprep.subr.mxu0 0.0
    %877 = vmatpush1.msra.mxu0 0.0
    %878 = vmatprep.subr.mxu0 0.0
    %879 = vmatpush1.msra.mxu0 0.0
    %880 = vmatprep.subr.mxu0 0.0
    %881 = vmatpush1.msra.mxu0 0.0
    %882 = vmatprep.subr.mxu0 0.0
    %883 = vmatpush1.msra.mxu0 0.0
    %884 = vmatprep.mubr.f32.mxu0 0.0
    %885 = vmatmul.mubr.f32.gmra.mrb[0].mxu0 %v818
    %v886 = vpop.f32.mrb[0].mxu0
    %v887 = vadd.f32 0.0, %v886
    %v888 = vpop.f32.mrb[0].mxu0
    %889 = vdwg.mxu0
    %890 = vrot.lane.b32.xlu0 %v298, 48
    %v891 = vpop.permute.xlu0 %890
    %v894 = vsel %vm474, %v813, 0
    %896 = vmatprep.subr.mxu0 0.0
    %897 = vmatpush1.msra.mxu0 %v891
    %898 = vmatprep.subr.mxu0 0.0
    %899 = vmatpush1.msra.mxu0 0.0
    %900 = vmatprep.subr.mxu0 0.0
    %901 = vmatpush1.msra.mxu0 0.0
    %902 = vmatprep.subr.mxu0 0.0
    %903 = vmatpush1.msra.mxu0 0.0
    %904 = vmatprep.subr.mxu0 0.0
    %905 = vmatpush1.msra.mxu0 0.0
    %906 = vmatprep.subr.mxu0 0.0
    %907 = vmatpush1.msra.mxu0 0.0
    %908 = vmatprep.subr.mxu0 0.0
    %909 = vmatpush1.msra.mxu0 0.0
    %910 = vmatprep.subr.mxu0 0.0
    %911 = vmatpush1.msra.mxu0 0.0
    %912 = vmatprep.subr.mxu0 0.0
    %913 = vmatpush1.msra.mxu0 0.0
    %914 = vmatprep.subr.mxu0 0.0
    %915 = vmatpush1.msra.mxu0 0.0
    %916 = vmatprep.subr.mxu0 0.0
    %917 = vmatpush1.msra.mxu0 0.0
    %918 = vmatprep.subr.mxu0 0.0
    %919 = vmatpush1.msra.mxu0 0.0
    %920 = vmatprep.subr.mxu0 0.0
    %921 = vmatpush1.msra.mxu0 0.0
    %922 = vmatprep.subr.mxu0 0.0
    %923 = vmatpush1.msra.mxu0 0.0
    %924 = vmatprep.subr.mxu0 0.0
    %925 = vmatpush1.msra.mxu0 0.0
    %926 = vmatprep.subr.mxu0 0.0
    %927 = vmatpush1.msra.mxu0 0.0
    %928 = vmatprep.subr.mxu0 0.0
    %929 = vmatpush1.msra.mxu0 0.0
    %930 = vmatprep.subr.mxu0 0.0
    %931 = vmatpush1.msra.mxu0 0.0
    %932 = vmatprep.subr.mxu0 0.0
    %933 = vmatpush1.msra.mxu0 0.0
    %934 = vmatprep.subr.mxu0 0.0
    %935 = vmatpush1.msra.mxu0 0.0
    %936 = vmatprep.subr.mxu0 0.0
    %937 = vmatpush1.msra.mxu0 0.0
    %938 = vmatprep.subr.mxu0 0.0
    %939 = vmatpush1.msra.mxu0 0.0
    %940 = vmatprep.subr.mxu0 0.0
    %941 = vmatpush1.msra.mxu0 0.0
    %942 = vmatprep.subr.mxu0 0.0
    %943 = vmatpush1.msra.mxu0 0.0
    %944 = vmatprep.subr.mxu0 0.0
    %945 = vmatpush1.msra.mxu0 0.0
    %946 = vmatprep.subr.mxu0 0.0
    %947 = vmatpush1.msra.mxu0 0.0
    %948 = vmatprep.subr.mxu0 0.0
    %949 = vmatpush1.msra.mxu0 0.0
    %950 = vmatprep.subr.mxu0 0.0
    %951 = vmatpush1.msra.mxu0 0.0
    %952 = vmatprep.subr.mxu0 0.0
    %953 = vmatpush1.msra.mxu0 0.0
    %954 = vmatprep.subr.mxu0 0.0
    %955 = vmatpush1.msra.mxu0 0.0
    %956 = vmatprep.subr.mxu0 0.0
    %957 = vmatpush1.msra.mxu0 0.0
    %958 = vmatprep.subr.mxu0 0.0
    %959 = vmatpush1.msra.mxu0 0.0
    %960 = vmatprep.mubr.f32.mxu0 0.0
    %961 = vmatmul.mubr.f32.gmra.mrb[0].mxu0 %v894
    %v962 = vpop.f32.mrb[0].mxu0
    %v963 = vadd.f32 0.0, %v962
    %v964 = vpop.f32.mrb[0].mxu0
    %965 = vdwg.mxu0
    %v966 = vpack.c.bf16 %v963, %v887
    %v967 = vld [vmem:[#allocation2 + $0x10] sm:$0xf]
    %v968 = vld [vmem:[#allocation2 + $0x18] sm:$0xf]
    %v971 = vunpack.c.l.b16 %v967
    %v972 = vunpack.c.l.b16 %v968
    %v973 = vpack.c.b16 %v972, %v971
    %974 = vrot.lane.b32.xlu0 %v973, 32
    %v975 = vpop.permute.xlu0 %974
    %v978 = vsel %vm304, %v966, 0
    %980 = vmatprep.subr.bf16.mxu0 0
    %981 = vmatpush1.bf16.msra.mxu0 %v975
    %982 = vmatprep.subr.bf16.mxu0 0
    %983 = vmatpush1.bf16.msra.mxu0 0
    %984 = vmatprep.subr.bf16.mxu0 0
    %985 = vmatpush1.bf16.msra.mxu0 0
    %986 = vmatprep.subr.bf16.mxu0 0
    %987 = vmatpush1.bf16.msra.mxu0 0
    %988 = vmatprep.subr.bf16.mxu0 0
    %989 = vmatpush1.bf16.msra.mxu0 0
    %990 = vmatprep.subr.bf16.mxu0 0
    %991 = vmatpush1.bf16.msra.mxu0 0
    %992 = vmatprep.subr.bf16.mxu0 0
    %993 = vmatpush1.bf16.msra.mxu0 0
    %994 = vmatprep.subr.bf16.mxu0 0
    %995 = vmatpush1.bf16.msra.mxu0 0
    %996 = vmatprep.subr.bf16.mxu0 0
    %997 = vmatpush1.bf16.msra.mxu0 0
    %998 = vmatprep.subr.bf16.mxu0 0
    %999 = vmatpush1.bf16.msra.mxu0 0
    %1000 = vmatprep.subr.bf16.mxu0 0
    %1001 = vmatpush1.bf16.msra.mxu0 0
    %1002 = vmatprep.subr.bf16.mxu0 0
    %1003 = vmatpush1.bf16.msra.mxu0 0
    %1004 = vmatprep.subr.bf16.mxu0 0
    %1005 = vmatpush1.bf16.msra.mxu0 0
    %1006 = vmatprep.subr.bf16.mxu0 0
    %1007 = vmatpush1.bf16.msra.mxu0 0
    %1008 = vmatprep.subr.bf16.mxu0 0
    %1009 = vmatpush1.bf16.msra.mxu0 0
    %1010 = vmatprep.subr.bf16.mxu0 0
    %1011 = vmatpush1.bf16.msra.mxu0 0
    %1012 = vmatprep.mubr.bf16.mxu0 0
    %1013 = vmatmul.mubr.bf16.gmra.mrb[0].mxu0 %v978
    %v1014 = vpop.f32.mrb[0].mxu0
    %v1015 = vadd.f32 0.0, %v1014
    %v1016 = vpop.f32.mrb[0].mxu0
    %v1017 = vpop.f32.mrb[0].mxu0
    %v1018 = vadd.f32 0.0, %v1017
    %v1019 = vpop.f32.mrb[0].mxu0
    %1020 = vdwg.mxu0
    %v1023 = vunpack.c.l.b16 %v638
    %v1024 = vunpack.c.l.b16 %v639
    %v1025 = vpack.c.b16 %v1024, %v1023
    %1026 = vrot.lane.b32.xlu0 %v1025, 32
    %v1027 = vpop.permute.xlu0 %1026
    %v1030 = vsel %vm304, %v637, 0
    %1032 = vmatprep.subr.bf16.mxu0 0
    %1033 = vmatpush1.bf16.msra.mxu0 %v1027
    %1034 = vmatprep.subr.bf16.mxu0 0
    %1035 = vmatpush1.bf16.msra.mxu0 0
    %1036 = vmatprep.subr.bf16.mxu0 0
    %1037 = vmatpush1.bf16.msra.mxu0 0
    %1038 = vmatprep.subr.bf16.mxu0 0
    %1039 = vmatpush1.bf16.msra.mxu0 0
    %1040 = vmatprep.subr.bf16.mxu0 0
    %1041 = vmatpush1.bf16.msra.mxu0 0
    %1042 = vmatprep.subr.bf16.mxu0 0
    %1043 = vmatpush1.bf16.msra.mxu0 0
    %1044 = vmatprep.subr.bf16.mxu0 0
    %1045 = vmatpush1.bf16.msra.mxu0 0
    %1046 = vmatprep.subr.bf16.mxu0 0
    %1047 = vmatpush1.bf16.msra.mxu0 0
    %1048 = vmatprep.subr.bf16.mxu0 0
    %1049 = vmatpush1.bf16.msra.mxu0 0
    %1050 = vmatprep.subr.bf16.mxu0 0
    %1051 = vmatpush1.bf16.msra.mxu0 0
    %1052 = vmatprep.subr.bf16.mxu0 0
    %1053 = vmatpush1.bf16.msra.mxu0 0
    %1054 = vmatprep.subr.bf16.mxu0 0
    %1055 = vmatpush1.bf16.msra.mxu0 0
    %1056 = vmatprep.subr.bf16.mxu0 0
    %1057 = vmatpush1.bf16.msra.mxu0 0
    %1058 = vmatprep.subr.bf16.mxu0 0
    %1059 = vmatpush1.bf16.msra.mxu0 0
    %1060 = vmatprep.subr.bf16.mxu0 0
    %1061 = vmatpush1.bf16.msra.mxu0 0
    %1062 = vmatprep.subr.bf16.mxu0 0
    %1063 = vmatpush1.bf16.msra.mxu0 0
    %1064 = vmatprep.mubr.bf16.mxu0 0
    %1065 = vmatmul.mubr.bf16.gmra.mrb[0].mxu0 %v1030
    %v1066 = vpop.f32.mrb[0].mxu0
    %v1067 = vadd.f32 %v1015, %v1066
    %v1068 = vpop.f32.mrb[0].mxu0
    %v1069 = vpop.f32.mrb[0].mxu0
    %v1070 = vadd.f32 %v1018, %v1069
    %v1071 = vpop.f32.mrb[0].mxu0
    %1072 = vdwg.mxu0
    %v1073 = vlaneseq
    %v1074 = vshrl.u32 %v1073, 7
    %v1075 = vsub.s32 0, %v1074
    %v1076 = vrot.slane %v229, %v1075
    %v1077 = vadd.f32 %v1067, %v1076
    %v1078 = vadd.f32 %v1070, %v1076
    %v1079 = vadd.f32 %v199, %v1077
    %v1080 = vadd.f32 %v200, %v1078
    %v1081 = vsel %vm161, %v1079, 0.0
    %1082 = vadd.xlane.f32.xlu0 %v1081
    %v1083 = vpop.xlane.xlu0 %1082
    %v1084 = vsel %vm161, %v1080, 0.0
    %1085 = vadd.xlane.f32.xlu0 %v1084
    %v1086 = vpop.xlane.xlu0 %1085
    %v1087 = vmul.f32 %v1083, %v168
    %v1088 = vmul.f32 %v1086, %v168
    %v1089 = vsub.f32 %v1079, %v1087
    %v1090 = vsub.f32 %v1080, %v1088
    %v1091 = vmul.f32 %v1089, %v1089
    %v1092 = vmul.f32 %v1090, %v1090
    %v1093 = vsel %vm161, %v1091, 0.0
    %1094 = vadd.xlane.f32.xlu0 %v1093
    %v1095 = vpop.xlane.xlu0 %1094
    %v1096 = vsel %vm161, %v1092, 0.0
    %1097 = vadd.xlane.f32.xlu0 %v1096
    %v1098 = vpop.xlane.xlu0 %1097
    %v1099 = vmul.f32 %v1095, %v168
    %v1100 = vmul.f32 %v1098, %v168
    %v1101 = vadd.f32 %v1099, 1e-12
    %v1102 = vadd.f32 %v1100, 1e-12
    %v1103 = vrsqrt.pop %v1101
    %v1104 = vrsqrt.pop %v1102
    %v1105 = vmul.f32 %v1089, %v1103
    %v1106 = vmul.f32 %v1090, %v1104
    %v1107 = vlaneseq
    %v1108 = vshrl.u32 %v1107, 7
    %v1109 = vsub.s32 0, %v1108
    %v1110 = vrot.slane %v230, %v1109
    %v1111 = vmul.f32 %v1105, %v1110
    %v1112 = vmul.f32 %v1106, %v1110
    %v1113 = vlaneseq
    %v1114 = vshrl.u32 %v1113, 7
    %v1115 = vsub.s32 0, %v1114
    %v1116 = vrot.slane %v231, %v1115
    %v1117 = vadd.f32 %v1111, %v1116
    %v1118 = vadd.f32 %v1112, %v1116
    %v1119 = vpack.c.bf16 %v1118, %v1117
    %v1120 = vld [vmem:[#allocation2 + $0x4] sm:$0xf]
    %v1121 = vld [vmem:[#allocation2 + $0xc] sm:$0xf]
    %v1122 = vld [vmem:[#allocation2 + $0x14] sm:$0xf]
    %v1123 = vld [vmem:[#allocation2 + $0x1c] sm:$0xf]
    %v1124 = vlaneseq
    %v1125 = vshrl.u32 %v1124, 7
    %v1126 = vsub.s32 0, %v1125
    %v1127 = vrot.slane %v232, %v1126
    %v1132 = vunpack.c.l.b16 %v1120
    %v1133 = vunpack.c.l.b16 %v1121
    %v1134 = vunpack.c.l.b16 %v1122
    %v1135 = vunpack.c.l.b16 %v1123
    %v1136 = vpack.c.b16 %v1133, %v1132
    %v1137 = vpack.c.b16 %v1135, %v1134
    %v1141 = vsel %vm161, %v1119, 0
    %1143 = vmatprep.subr.bf16.mxu0 0
    %1144 = vmatpush1.bf16.msra.mxu0 %v1136
    %1145 = vmatprep.subr.bf16.mxu0 0
    %1146 = vmatpush1.bf16.msra.mxu0 %v1137
    %1147 = vmatprep.subr.bf16.mxu0 0
    %1148 = vmatpush1.bf16.msra.mxu0 0
    %1149 = vmatprep.subr.bf16.mxu0 0
    %1150 = vmatpush1.bf16.msra.mxu0 0
    %1151 = vmatprep.subr.bf16.mxu0 0
    %1152 = vmatpush1.bf16.msra.mxu0 0
    %1153 = vmatprep.subr.bf16.mxu0 0
    %1154 = vmatpush1.bf16.msra.mxu0 0
    %1155 = vmatprep.subr.bf16.mxu0 0
    %1156 = vmatpush1.bf16.msra.mxu0 0
    %1157 = vmatprep.subr.bf16.mxu0 0
    %1158 = vmatpush1.bf16.msra.mxu0 0
    %1159 = vmatprep.subr.bf16.mxu0 0
    %1160 = vmatpush1.bf16.msra.mxu0 0
    %1161 = vmatprep.subr.bf16.mxu0 0
    %1162 = vmatpush1.bf16.msra.mxu0 0
    %1163 = vmatprep.subr.bf16.mxu0 0
    %1164 = vmatpush1.bf16.msra.mxu0 0
    %1165 = vmatprep.subr.bf16.mxu0 0
    %1166 = vmatpush1.bf16.msra.mxu0 0
    %1167 = vmatprep.subr.bf16.mxu0 0
    %1168 = vmatpush1.bf16.msra.mxu0 0
    %1169 = vmatprep.subr.bf16.mxu0 0
    %1170 = vmatpush1.bf16.msra.mxu0 0
    %1171 = vmatprep.subr.bf16.mxu0 0
    %1172 = vmatpush1.bf16.msra.mxu0 0
    %1173 = vmatprep.subr.bf16.mxu0 0
    %1174 = vmatpush1.bf16.msra.mxu0 0
    %1175 = vmatprep.mubr.bf16.mxu0 0
    %1176 = vmatmul.mubr.bf16.gmra.mrb[0].mxu0 %v1141
    %v1177 = vpop.f32.mrb[0].mxu0
    %v1178 = vadd.f32 %v1127, %v1177
    %v1179 = vpop.f32.mrb[0].mxu0
    %v1180 = vpop.f32.mrb[0].mxu0
    %v1181 = vadd.f32 %v1127, %v1180
    %v1182 = vpop.f32.mrb[0].mxu0
    %1183 = vdwg.mxu0
    %v1184 = vmul.f32 %v1178, %v1178
    %v1185 = vmul.f32 %v1181, %v1181
    %v1186 = vmul.f32 %v1178, %v1184
    %v1187 = vmul.f32 %v1181, %v1185
    %v1188 = vmul.f32 %v1186, 0.044715
    %v1189 = vmul.f32 %v1187, 0.044715
    %v1190 = vadd.f32 %v1178, %v1188
    %v1191 = vadd.f32 %v1181, %v1189
    %v1192 = vmul.f32 %v1190, 0.7978846
    %v1193 = vmul.f32 %v1191, 0.7978846
    %v1194 = vtanh.pop %v1192
    %v1195 = vtanh.pop %v1193
    %v1196 = vadd.f32 %v1194, 1.0
    %v1197 = vadd.f32 %v1195, 1.0
    %v1198 = vmul.f32 %v1196, 0.5
    %v1199 = vmul.f32 %v1197, 0.5
    %v1200 = vmul.f32 %v1178, %v1198
    %v1201 = vmul.f32 %v1181, %v1199
    %v1202 = vpack.c.bf16 %v1201, %v1200
    %v1203 = vld [vmem:[#allocation2 + $0x20] sm:$0xf]
    %v1204 = vld [vmem:[#allocation2 + $0x28] sm:$0xf]
    %v1205 = vld [vmem:[#allocation2 + $0x30] sm:$0xf]
    %v1206 = vld [vmem:[#allocation2 + $0x38] sm:$0xf]
    %v1207 = vld [vmem:[#allocation2 + $0x40] sm:$0xf]
    %v1208 = vld [vmem:[#allocation2 + $0x48] sm:$0xf]
    %v1209 = vld [vmem:[#allocation2 + $0x50] sm:$0xf]
    %v1210 = vld [vmem:[#allocation2 + $0x58] sm:$0xf]
    %v1211 = vlaneseq
    %v1212 = vshrl.u32 %v1211, 7
    %v1213 = vsub.s32 0, %v1212
    %v1214 = vrot.slane %v233, %v1213
    %v1223 = vunpack.c.l.b16 %v1203
    %v1224 = vunpack.c.l.b16 %v1204
    %v1225 = vunpack.c.l.b16 %v1205
    %v1226 = vunpack.c.l.b16 %v1206
    %v1227 = vunpack.c.l.b16 %v1207
    %v1228 = vunpack.c.l.b16 %v1208
    %v1229 = vunpack.c.l.b16 %v1209
    %v1230 = vunpack.c.l.b16 %v1210
    %v1231 = vpack.c.b16 %v1224, %v1223
    %v1232 = vpack.c.b16 %v1226, %v1225
    %v1233 = vpack.c.b16 %v1228, %v1227
    %v1234 = vpack.c.b16 %v1230, %v1229
    %vm1239 = vcmask 523264
    %v1241 = vsel %vm1239, %v1202, 0
    %1243 = vmatprep.subr.bf16.mxu0 0
    %1244 = vmatpush1.bf16.msra.mxu0 %v1231
    %1245 = vmatprep.subr.bf16.mxu0 0
    %1246 = vmatpush1.bf16.msra.mxu0 %v1232
    %1247 = vmatprep.subr.bf16.mxu0 0
    %1248 = vmatpush1.bf16.msra.mxu0 %v1233
    %1249 = vmatprep.subr.bf16.mxu0 0
    %1250 = vmatpush1.bf16.msra.mxu0 %v1234
    %1251 = vmatprep.subr.bf16.mxu0 0
    %1252 = vmatpush1.bf16.msra.mxu0 0
    %1253 = vmatprep.subr.bf16.mxu0 0
    %1254 = vmatpush1.bf16.msra.mxu0 0
    %1255 = vmatprep.subr.bf16.mxu0 0
    %1256 = vmatpush1.bf16.msra.mxu0 0
    %1257 = vmatprep.subr.bf16.mxu0 0
    %1258 = vmatpush1.bf16.msra.mxu0 0
    %1259 = vmatprep.subr.bf16.mxu0 0
    %1260 = vmatpush1.bf16.msra.mxu0 0
    %1261 = vmatprep.subr.bf16.mxu0 0
    %1262 = vmatpush1.bf16.msra.mxu0 0
    %1263 = vmatprep.subr.bf16.mxu0 0
    %1264 = vmatpush1.bf16.msra.mxu0 0
    %1265 = vmatprep.subr.bf16.mxu0 0
    %1266 = vmatpush1.bf16.msra.mxu0 0
    %1267 = vmatprep.subr.bf16.mxu0 0
    %1268 = vmatpush1.bf16.msra.mxu0 0
    %1269 = vmatprep.subr.bf16.mxu0 0
    %1270 = vmatpush1.bf16.msra.mxu0 0
    %1271 = vmatprep.subr.bf16.mxu0 0
    %1272 = vmatpush1.bf16.msra.mxu0 0
    %1273 = vmatprep.subr.bf16.mxu0 0
    %1274 = vmatpush1.bf16.msra.mxu0 0
    %1275 = vmatprep.mubr.bf16.mxu0 0
    %1276 = vmatmul.mubr.bf16.gmra.mrb[0].mxu0 %v1241
    %v1277 = vpop.f32.mrb[0].mxu0
    %v1278 = vadd.f32 %v1214, %v1277
    %v1279 = vpop.f32.mrb[0].mxu0
    %v1280 = vpop.f32.mrb[0].mxu0
    %v1281 = vadd.f32 %v1214, %v1280
    %v1282 = vpop.f32.mrb[0].mxu0
    %1283 = vdwg.mxu0
    %v1284 = vadd.f32 %v1117, %v1278
    %v1285 = vadd.f32 %v1118, %v1281
    %v1286 = vsel %vm161, %v1284, 0.0
    %1287 = vadd.xlane.f32.xlu0 %v1286
    %v1288 = vpop.xlane.xlu0 %1287
    %v1289 = vsel %vm161, %v1285, 0.0
    %1290 = vadd.xlane.f32.xlu0 %v1289
    %v1291 = vpop.xlane.xlu0 %1290
    %v1292 = vmul.f32 %v1288, %v168
    %v1293 = vmul.f32 %v1291, %v168
    %v1294 = vsub.f32 %v1284, %v1292
    %v1295 = vsub.f32 %v1285, %v1293
    %v1296 = vmul.f32 %v1294, %v1294
    %v1297 = vmul.f32 %v1295, %v1295
    %v1298 = vsel %vm161, %v1296, 0.0
    %1299 = vadd.xlane.f32.xlu0 %v1298
    %v1300 = vpop.xlane.xlu0 %1299
    %v1301 = vsel %vm161, %v1297, 0.0
    %1302 = vadd.xlane.f32.xlu0 %v1301
    %v1303 = vpop.xlane.xlu0 %1302
    %v1304 = vmul.f32 %v1300, %v168
    %v1305 = vmul.f32 %v1303, %v168
    %v1306 = vadd.f32 %v1304, 1e-12
    %v1307 = vadd.f32 %v1305, 1e-12
    %v1308 = vrsqrt.pop %v1306
    %v1309 = vrsqrt.pop %v1307
    %v1310 = vmul.f32 %v1294, %v1308
    %v1311 = vmul.f32 %v1295, %v1309
    %v1312 = vlaneseq
    %v1313 = vshrl.u32 %v1312, 7
    %v1314 = vsub.s32 0, %v1313
    %v1315 = vrot.slane %v234, %v1314
    %v1316 = vmul.f32 %v1310, %v1315
    %v1317 = vmul.f32 %v1311, %v1315
    %v1318 = vlaneseq
    %v1319 = vshrl.u32 %v1318, 7
    %v1320 = vsub.s32 0, %v1319
    %v1321 = vrot.slane %v235, %v1320
    %v1322 = vadd.f32 %v1316, %v1321
    %v1323 = vadd.f32 %v1317, %v1321
    %s1324 = scalar_lea.vmem %s4, 8
    %v1325 = vld [vmem:[%s1324] sm:$0x1]
    %v1326 = vld [vmem:[%s1324 + $0x1] sm:$0x1]
    %v1327 = vld [vmem:[%s1324 + $0x2] sm:$0x1]
    %v1328 = vld [vmem:[%s1324 + $0x3] sm:$0x1]
    %v1329 = vld [vmem:[%s1324 + $0x4] sm:$0x1]
    %v1330 = vld [vmem:[%s1324 + $0x5] sm:$0x1]
    %v1331 = vld [vmem:[%s1324 + $0x6] sm:$0x1]
    %v1332 = vld [vmem:[%s1324 + $0x7] sm:$0x1]
    %v1333 = vpack.c.bf16 %v1323, %v1322
    %s1334 = scalar_lea.vmem [#allocation2], 96
    %v1335 = vld [vmem:[%s1334] sm:$0xf]
    %v1336 = vld [vmem:[%s1334 + $0x8] sm:$0xf]
    %v1337 = vld [vmem:[%s1334 + $0x10] sm:$0xf]
    %v1338 = vld [vmem:[%s1334 + $0x18] sm:$0xf]
    %v1339 = vlaneseq
    %v1340 = vshrl.u32 %v1339, 7
    %v1341 = vsub.s32 0, %v1340
    %v1342 = vrot.slane %v1325, %v1341
    %v1347 = vunpack.c.l.b16 %v1335
    %v1348 = vunpack.c.l.b16 %v1336
    %v1349 = vunpack.c.l.b16 %v1337
    %v1350 = vunpack.c.l.b16 %v1338
    %v1351 = vpack.c.b16 %v1348, %v1347
    %v1352 = vpack.c.b16 %v1350, %v1349
    %v1356 = vsel %vm161, %v1333, 0
    %1358 = vmatprep.subr.bf16.mxu0 0
    %1359 = vmatpush1.bf16.msra.mxu0 %v1351
    %1360 = vmatprep.subr.bf16.mxu0 0
    %1361 = vmatpush1.bf16.msra.mxu0 %v1352
    %1362 = vmatprep.subr.bf16.mxu0 0
    %1363 = vmatpush1.bf16.msra.mxu0 0
    %1364 = vmatprep.subr.bf16.mxu0 0
    %1365 = vmatpush1.bf16.msra.mxu0 0
    %1366 = vmatprep.subr.bf16.mxu0 0
    %1367 = vmatpush1.bf16.msra.mxu0 0
    %1368 = vmatprep.subr.bf16.mxu0 0
    %1369 = vmatpush1.bf16.msra.mxu0 0
    %1370 = vmatprep.subr.bf16.mxu0 0
    %1371 = vmatpush1.bf16.msra.mxu0 0
    %1372 = vmatprep.subr.bf16.mxu0 0
    %1373 = vmatpush1.bf16.msra.mxu0 0
    %1374 = vmatprep.subr.bf16.mxu0 0
    %1375 = vmatpush1.bf16.msra.mxu0 0
    %1376 = vmatprep.subr.bf16.mxu0 0
    %1377 = vmatpush1.bf16.msra.mxu0 0
    %1378 = vmatprep.subr.bf16.mxu0 0
    %1379 = vmatpush1.bf16.msra.mxu0 0
    %1380 = vmatprep.subr.bf16.mxu0 0
    %1381 = vmatpush1.bf16.msra.mxu0 0
    %1382 = vmatprep.subr.bf16.mxu0 0
    %1383 = vmatpush1.bf16.msra.mxu0 0
    %1384 = vmatprep.subr.bf16.mxu0 0
    %1385 = vmatpush1.bf16.msra.mxu0 0
    %1386 = vmatprep.subr.bf16.mxu0 0
    %1387 = vmatpush1.bf16.msra.mxu0 0
    %1388 = vmatprep.subr.bf16.mxu0 0
    %1389 = vmatpush1.bf16.msra.mxu0 0
    %1390 = vmatprep.mubr.bf16.mxu0 0
    %1391 = vmatmul.mubr.bf16.gmra.mrb[0].mxu0 %v1356
    %v1392 = vpop.f32.mrb[0].mxu0
    %v1393 = vadd.f32 %v1342, %v1392
    %v1394 = vpop.f32.mrb[0].mxu0
    %v1395 = vpop.f32.mrb[0].mxu0
    %v1396 = vadd.f32 %v1342, %v1395
    %v1397 = vpop.f32.mrb[0].mxu0
    %1398 = vdwg.mxu0
    %1400 = vrot.lane.b32.xlu0 %v1393, 96
    %v1401 = vpop.permute.xlu0 %1400
    %v1402 = vsel %vm304, %v1393, 0
    %v1404 = vsel %vm304, %v1401, 0
    %1406 = vmatprep.subr.mxu0 0.0
    %1407 = vmatpush1.xpose.msra.mxu0 %v1404
    %1408 = vmatprep.subr.mxu0 0.0
    %1409 = vmatpush1.xpose.msra.mxu0 0.0
    %1410 = vmatprep.subr.mxu0 0.0
    %1411 = vmatpush1.xpose.msra.mxu0 0.0
    %1412 = vmatprep.subr.mxu0 0.0
    %1413 = vmatpush1.xpose.msra.mxu0 0.0
    %1414 = vmatprep.subr.mxu0 0.0
    %1415 = vmatpush1.xpose.msra.mxu0 0.0
    %1416 = vmatprep.subr.mxu0 0.0
    %1417 = vmatpush1.xpose.msra.mxu0 0.0
    %1418 = vmatprep.subr.mxu0 0.0
    %1419 = vmatpush1.xpose.msra.mxu0 0.0
    %1420 = vmatprep.subr.mxu0 0.0
    %1421 = vmatpush1.xpose.msra.mxu0 0.0
    %1422 = vmatprep.subr.mxu0 0.0
    %1423 = vmatpush1.xpose.msra.mxu0 0.0
    %1424 = vmatprep.subr.mxu0 0.0
    %1425 = vmatpush1.xpose.msra.mxu0 0.0
    %1426 = vmatprep.subr.mxu0 0.0
    %1427 = vmatpush1.xpose.msra.mxu0 0.0
    %1428 = vmatprep.subr.mxu0 0.0
    %1429 = vmatpush1.xpose.msra.mxu0 0.0
    %1430 = vmatprep.subr.mxu0 0.0
    %1431 = vmatpush1.xpose.msra.mxu0 0.0
    %1432 = vmatprep.subr.mxu0 0.0
    %1433 = vmatpush1.xpose.msra.mxu0 0.0
    %1434 = vmatprep.subr.mxu0 0.0
    %1435 = vmatpush1.xpose.msra.mxu0 0.0
    %1436 = vmatprep.subr.mxu0 0.0
    %1437 = vmatpush1.xpose.msra.mxu0 0.0
    %1438 = vmatprep.subr.mxu0 0.0
    %1439 = vmatpush1.xpose.msra.mxu0 0.0
    %1440 = vmatprep.subr.mxu0 0.0
    %1441 = vmatpush1.xpose.msra.mxu0 0.0
    %1442 = vmatprep.subr.mxu0 0.0
    %1443 = vmatpush1.xpose.msra.mxu0 0.0
    %1444 = vmatprep.subr.mxu0 0.0
    %1445 = vmatpush1.xpose.msra.mxu0 0.0
    %1446 = vmatprep.subr.mxu0 0.0
    %1447 = vmatpush1.xpose.msra.mxu0 0.0
    %1448 = vmatprep.subr.mxu0 0.0
    %1449 = vmatpush1.xpose.msra.mxu0 0.0
    %1450 = vmatprep.subr.mxu0 0.0
    %1451 = vmatpush1.xpose.msra.mxu0 0.0
    %1452 = vmatprep.subr.mxu0 0.0
    %1453 = vmatpush1.xpose.msra.mxu0 0.0
    %1454 = vmatprep.subr.mxu0 0.0
    %1455 = vmatpush1.xpose.msra.mxu0 0.0
    %1456 = vmatprep.subr.mxu0 0.0
    %1457 = vmatpush1.xpose.msra.mxu0 0.0
    %1458 = vmatprep.subr.mxu0 0.0
    %1459 = vmatpush1.xpose.msra.mxu0 0.0
    %1460 = vmatprep.subr.mxu0 0.0
    %1461 = vmatpush1.xpose.msra.mxu0 0.0
    %1462 = vmatprep.subr.mxu0 0.0
    %1463 = vmatpush1.xpose.msra.mxu0 0.0
    %1464 = vmatprep.subr.mxu0 0.0
    %1465 = vmatpush1.xpose.msra.mxu0 0.0
    %1466 = vmatprep.subr.mxu0 0.0
    %1467 = vmatpush1.xpose.msra.mxu0 0.0
    %1468 = vmatprep.subr.mxu0 0.0
    %1469 = vmatpush1.xpose.msra.mxu0 0.0
    %1470 = vmatprep.mubr.f32.mxu0 0.0
    %1471 = vmatmul.mubr.f32.gmra.mrb[0].mxu0 %v1402
    %v1472 = vpop.f32.mrb[0].mxu0
    %v1473 = vadd.f32 0.0, %v1472
    %v1474 = vpop.f32.mrb[0].mxu0
    %1475 = vdwg.mxu0
    %1477 = vrot.lane.b32.xlu0 %v1396, 96
    %v1478 = vpop.permute.xlu0 %1477
    %v1479 = vsel %vm304, %v1396, 0
    %v1481 = vsel %vm304, %v1478, 0
    %1483 = vmatprep.subr.mxu0 0.0
    %1484 = vmatpush1.xpose.msra.mxu0 %v1481
    %1485 = vmatprep.subr.mxu0 0.0
    %1486 = vmatpush1.xpose.msra.mxu0 0.0
    %1487 = vmatprep.subr.mxu0 0.0
    %1488 = vmatpush1.xpose.msra.mxu0 0.0
    %1489 = vmatprep.subr.mxu0 0.0
    %1490 = vmatpush1.xpose.msra.mxu0 0.0
    %1491 = vmatprep.subr.mxu0 0.0
    %1492 = vmatpush1.xpose.msra.mxu0 0.0
    %1493 = vmatprep.subr.mxu0 0.0
    %1494 = vmatpush1.xpose.msra.mxu0 0.0
    %1495 = vmatprep.subr.mxu0 0.0
    %1496 = vmatpush1.xpose.msra.mxu0 0.0
    %1497 = vmatprep.subr.mxu0 0.0
    %1498 = vmatpush1.xpose.msra.mxu0 0.0
    %1499 = vmatprep.subr.mxu0 0.0
    %1500 = vmatpush1.xpose.msra.mxu0 0.0
    %1501 = vmatprep.subr.mxu0 0.0
    %1502 = vmatpush1.xpose.msra.mxu0 0.0
    %1503 = vmatprep.subr.mxu0 0.0
    %1504 = vmatpush1.xpose.msra.mxu0 0.0
    %1505 = vmatprep.subr.mxu0 0.0
    %1506 = vmatpush1.xpose.msra.mxu0 0.0
    %1507 = vmatprep.subr.mxu0 0.0
    %1508 = vmatpush1.xpose.msra.mxu0 0.0
    %1509 = vmatprep.subr.mxu0 0.0
    %1510 = vmatpush1.xpose.msra.mxu0 0.0
    %1511 = vmatprep.subr.mxu0 0.0
    %1512 = vmatpush1.xpose.msra.mxu0 0.0
    %1513 = vmatprep.subr.mxu0 0.0
    %1514 = vmatpush1.xpose.msra.mxu0 0.0
    %1515 = vmatprep.subr.mxu0 0.0
    %1516 = vmatpush1.xpose.msra.mxu0 0.0
    %1517 = vmatprep.subr.mxu0 0.0
    %1518 = vmatpush1.xpose.msra.mxu0 0.0
    %1519 = vmatprep.subr.mxu0 0.0
    %1520 = vmatpush1.xpose.msra.mxu0 0.0
    %1521 = vmatprep.subr.mxu0 0.0
    %1522 = vmatpush1.xpose.msra.mxu0 0.0
    %1523 = vmatprep.subr.mxu0 0.0
    %1524 = vmatpush1.xpose.msra.mxu0 0.0
    %1525 = vmatprep.subr.mxu0 0.0
    %1526 = vmatpush1.xpose.msra.mxu0 0.0
    %1527 = vmatprep.subr.mxu0 0.0
    %1528 = vmatpush1.xpose.msra.mxu0 0.0
    %1529 = vmatprep.subr.mxu0 0.0
    %1530 = vmatpush1.xpose.msra.mxu0 0.0
    %1531 = vmatprep.subr.mxu0 0.0
    %1532 = vmatpush1.xpose.msra.mxu0 0.0
    %1533 = vmatprep.subr.mxu0 0.0
    %1534 = vmatpush1.xpose.msra.mxu0 0.0
    %1535 = vmatprep.subr.mxu0 0.0
    %1536 = vmatpush1.xpose.msra.mxu0 0.0
    %1537 = vmatprep.subr.mxu0 0.0
    %1538 = vmatpush1.xpose.msra.mxu0 0.0
    %1539 = vmatprep.subr.mxu0 0.0
    %1540 = vmatpush1.xpose.msra.mxu0 0.0
    %1541 = vmatprep.subr.mxu0 0.0
    %1542 = vmatpush1.xpose.msra.mxu0 0.0
    %1543 = vmatprep.subr.mxu0 0.0
    %1544 = vmatpush1.xpose.msra.mxu0 0.0
    %1545 = vmatprep.subr.mxu0 0.0
    %1546 = vmatpush1.xpose.msra.mxu0 0.0
    %1547 = vmatprep.mubr.f32.mxu0 0.0
    %1548 = vmatmul.mubr.f32.gmra.mrb[0].mxu0 %v1479
    %v1549 = vpop.f32.mrb[0].mxu0
    %v1550 = vadd.f32 0.0, %v1549
    %v1551 = vpop.f32.mrb[0].mxu0
    %1552 = vdwg.mxu0
    %v1553 = vmul.f32 %v1473, 0.25
    %v1554 = vmul.f32 %v1550, 0.25
    %v1555 = vadd.f32 %v1553, %v461
    %v1556 = vadd.f32 %v1554, %v465
    %v1557 = vmul.f32 %v1555, 1.442695
    %v1558 = vpow.pop %v1557
    %v1559 = vmul.f32 %v1556, 1.442695
    %v1560 = vpow.pop %v1559
    %v1561 = vsel %vm474, %v1558, 0.0
    %1562 = vadd.xlane.f32.xlu0 %v1561
    %v1563 = vpop.xlane.xlu0 %1562
    %v1564 = vsel %vm474, %v1560, 0.0
    %1565 = vadd.xlane.f32.xlu0 %v1564
    %v1566 = vpop.xlane.xlu0 %1565
    %v1567 = vrcp.pop %v1563
    %v1568 = vrcp.pop %v1566
    %v1569 = vmul.f32 %v1558, %v1567
    %v1570 = vmul.f32 %v1560, %v1568
    %1571 = vrot.lane.b32.xlu0 %v1393, 64
    %v1572 = vpop.permute.xlu0 %1571
    %v1575 = vsel %vm474, %v1569, 0
    %1577 = vmatprep.subr.mxu0 0.0
    %1578 = vmatpush1.msra.mxu0 %v1572
    %1579 = vmatprep.subr.mxu0 0.0
    %1580 = vmatpush1.msra.mxu0 0.0
    %1581 = vmatprep.subr.mxu0 0.0
    %1582 = vmatpush1.msra.mxu0 0.0
    %1583 = vmatprep.subr.mxu0 0.0
    %1584 = vmatpush1.msra.mxu0 0.0
    %1585 = vmatprep.subr.mxu0 0.0
    %1586 = vmatpush1.msra.mxu0 0.0
    %1587 = vmatprep.subr.mxu0 0.0
    %1588 = vmatpush1.msra.mxu0 0.0
    %1589 = vmatprep.subr.mxu0 0.0
    %1590 = vmatpush1.msra.mxu0 0.0
    %1591 = vmatprep.subr.mxu0 0.0
    %1592 = vmatpush1.msra.mxu0 0.0
    %1593 = vmatprep.subr.mxu0 0.0
    %1594 = vmatpush1.msra.mxu0 0.0
    %1595 = vmatprep.subr.mxu0 0.0
    %1596 = vmatpush1.msra.mxu0 0.0
    %1597 = vmatprep.subr.mxu0 0.0
    %1598 = vmatpush1.msra.mxu0 0.0
    %1599 = vmatprep.subr.mxu0 0.0
    %1600 = vmatpush1.msra.mxu0 0.0
    %1601 = vmatprep.subr.mxu0 0.0
    %1602 = vmatpush1.msra.mxu0 0.0
    %1603 = vmatprep.subr.mxu0 0.0
    %1604 = vmatpush1.msra.mxu0 0.0
    %1605 = vmatprep.subr.mxu0 0.0
    %1606 = vmatpush1.msra.mxu0 0.0
    %1607 = vmatprep.subr.mxu0 0.0
    %1608 = vmatpush1.msra.mxu0 0.0
    %1609 = vmatprep.subr.mxu0 0.0
    %1610 = vmatpush1.msra.mxu0 0.0
    %1611 = vmatprep.subr.mxu0 0.0
    %1612 = vmatpush1.msra.mxu0 0.0
    %1613 = vmatprep.subr.mxu0 0.0
    %1614 = vmatpush1.msra.mxu0 0.0
    %1615 = vmatprep.subr.mxu0 0.0
    %1616 = vmatpush1.msra.mxu0 0.0
    %1617 = vmatprep.subr.mxu0 0.0
    %1618 = vmatpush1.msra.mxu0 0.0
    %1619 = vmatprep.subr.mxu0 0.0
    %1620 = vmatpush1.msra.mxu0 0.0
    %1621 = vmatprep.subr.mxu0 0.0
    %1622 = vmatpush1.msra.mxu0 0.0
    %1623 = vmatprep.subr.mxu0 0.0
    %1624 = vmatpush1.msra.mxu0 0.0
    %1625 = vmatprep.subr.mxu0 0.0
    %1626 = vmatpush1.msra.mxu0 0.0
    %1627 = vmatprep.subr.mxu0 0.0
    %1628 = vmatpush1.msra.mxu0 0.0
    %1629 = vmatprep.subr.mxu0 0.0
    %1630 = vmatpush1.msra.mxu0 0.0
    %1631 = vmatprep.subr.mxu0 0.0
    %1632 = vmatpush1.msra.mxu0 0.0
    %1633 = vmatprep.subr.mxu0 0.0
    %1634 = vmatpush1.msra.mxu0 0.0
    %1635 = vmatprep.subr.mxu0 0.0
    %1636 = vmatpush1.msra.mxu0 0.0
    %1637 = vmatprep.subr.mxu0 0.0
    %1638 = vmatpush1.msra.mxu0 0.0
    %1639 = vmatprep.subr.mxu0 0.0
    %1640 = vmatpush1.msra.mxu0 0.0
    %1641 = vmatprep.mubr.f32.mxu0 0.0
    %1642 = vmatmul.mubr.f32.gmra.mrb[0].mxu0 %v1575
    %v1643 = vpop.f32.mrb[0].mxu0
    %v1644 = vadd.f32 0.0, %v1643
    %v1645 = vpop.f32.mrb[0].mxu0
    %1646 = vdwg.mxu0
    %1647 = vrot.lane.b32.xlu0 %v1396, 64
    %v1648 = vpop.permute.xlu0 %1647
    %v1651 = vsel %vm474, %v1570, 0
    %1653 = vmatprep.subr.mxu0 0.0
    %1654 = vmatpush1.msra.mxu0 %v1648
    %1655 = vmatprep.subr.mxu0 0.0
    %1656 = vmatpush1.msra.mxu0 0.0
    %1657 = vmatprep.subr.mxu0 0.0
    %1658 = vmatpush1.msra.mxu0 0.0
    %1659 = vmatprep.subr.mxu0 0.0
    %1660 = vmatpush1.msra.mxu0 0.0
    %1661 = vmatprep.subr.mxu0 0.0
    %1662 = vmatpush1.msra.mxu0 0.0
    %1663 = vmatprep.subr.mxu0 0.0
    %1664 = vmatpush1.msra.mxu0 0.0
    %1665 = vmatprep.subr.mxu0 0.0
    %1666 = vmatpush1.msra.mxu0 0.0
    %1667 = vmatprep.subr.mxu0 0.0
    %1668 = vmatpush1.msra.mxu0 0.0
    %1669 = vmatprep.subr.mxu0 0.0
    %1670 = vmatpush1.msra.mxu0 0.0
    %1671 = vmatprep.subr.mxu0 0.0
    %1672 = vmatpush1.msra.mxu0 0.0
    %1673 = vmatprep.subr.mxu0 0.0
    %1674 = vmatpush1.msra.mxu0 0.0
    %1675 = vmatprep.subr.mxu0 0.0
    %1676 = vmatpush1.msra.mxu0 0.0
    %1677 = vmatprep.subr.mxu0 0.0
    %1678 = vmatpush1.msra.mxu0 0.0
    %1679 = vmatprep.subr.mxu0 0.0
    %1680 = vmatpush1.msra.mxu0 0.0
    %1681 = vmatprep.subr.mxu0 0.0
    %1682 = vmatpush1.msra.mxu0 0.0
    %1683 = vmatprep.subr.mxu0 0.0
    %1684 = vmatpush1.msra.mxu0 0.0
    %1685 = vmatprep.subr.mxu0 0.0
    %1686 = vmatpush1.msra.mxu0 0.0
    %1687 = vmatprep.subr.mxu0 0.0
    %1688 = vmatpush1.msra.mxu0 0.0
    %1689 = vmatprep.subr.mxu0 0.0
    %1690 = vmatpush1.msra.mxu0 0.0
    %1691 = vmatprep.subr.mxu0 0.0
    %1692 = vmatpush1.msra.mxu0 0.0
    %1693 = vmatprep.subr.mxu0 0.0
    %1694 = vmatpush1.msra.mxu0 0.0
    %1695 = vmatprep.subr.mxu0 0.0
    %1696 = vmatpush1.msra.mxu0 0.0
    %1697 = vmatprep.subr.mxu0 0.0
    %1698 = vmatpush1.msra.mxu0 0.0
    %1699 = vmatprep.subr.mxu0 0.0
    %1700 = vmatpush1.msra.mxu0 0.0
    %1701 = vmatprep.subr.mxu0 0.0
    %1702 = vmatpush1.msra.mxu0 0.0
    %1703 = vmatprep.subr.mxu0 0.0
    %1704 = vmatpush1.msra.mxu0 0.0
    %1705 = vmatprep.subr.mxu0 0.0
    %1706 = vmatpush1.msra.mxu0 0.0
    %1707 = vmatprep.subr.mxu0 0.0
    %1708 = vmatpush1.msra.mxu0 0.0
    %1709 = vmatprep.subr.mxu0 0.0
    %1710 = vmatpush1.msra.mxu0 0.0
    %1711 = vmatprep.subr.mxu0 0.0
    %1712 = vmatpush1.msra.mxu0 0.0
    %1713 = vmatprep.subr.mxu0 0.0
    %1714 = vmatpush1.msra.mxu0 0.0
    %1715 = vmatprep.subr.mxu0 0.0
    %1716 = vmatpush1.msra.mxu0 0.0
    %1717 = vmatprep.mubr.f32.mxu0 0.0
    %1718 = vmatmul.mubr.f32.gmra.mrb[0].mxu0 %v1651
    %v1719 = vpop.f32.mrb[0].mxu0
    %v1720 = vadd.f32 0.0, %v1719
    %v1721 = vpop.f32.mrb[0].mxu0
    %1722 = vdwg.mxu0
    %v1723 = vpack.c.bf16 %v1720, %v1644
    %v1724 = vld [vmem:[%s1334] sm:$0xf]
    %v1725 = vld [vmem:[%s1334 + $0x8] sm:$0xf]
    %1726 = vrot.lane.b32.xlu0 %v1393, 112
    %v1727 = vpop.permute.xlu0 %1726
    %1728 = vrot.lane.b32.xlu0 %v1393, 80
    %v1729 = vpop.permute.xlu0 %1728
    %v1730 = vsel %vm304, %v1727, 0
    %v1732 = vsel %vm304, %v1729, 0
    %1734 = vmatprep.subr.mxu0 0.0
    %1735 = vmatpush1.xpose.msra.mxu0 %v1732
    %1736 = vmatprep.subr.mxu0 0.0
    %1737 = vmatpush1.xpose.msra.mxu0 0.0
    %1738 = vmatprep.subr.mxu0 0.0
    %1739 = vmatpush1.xpose.msra.mxu0 0.0
    %1740 = vmatprep.subr.mxu0 0.0
    %1741 = vmatpush1.xpose.msra.mxu0 0.0
    %1742 = vmatprep.subr.mxu0 0.0
    %1743 = vmatpush1.xpose.msra.mxu0 0.0
    %1744 = vmatprep.subr.mxu0 0.0
    %1745 = vmatpush1.xpose.msra.mxu0 0.0
    %1746 = vmatprep.subr.mxu0 0.0
    %1747 = vmatpush1.xpose.msra.mxu0 0.0
    %1748 = vmatprep.subr.mxu0 0.0
    %1749 = vmatpush1.xpose.msra.mxu0 0.0
    %1750 = vmatprep.subr.mxu0 0.0
    %1751 = vmatpush1.xpose.msra.mxu0 0.0
    %1752 = vmatprep.subr.mxu0 0.0
    %1753 = vmatpush1.xpose.msra.mxu0 0.0
    %1754 = vmatprep.subr.mxu0 0.0
    %1755 = vmatpush1.xpose.msra.mxu0 0.0
    %1756 = vmatprep.subr.mxu0 0.0
    %1757 = vmatpush1.xpose.msra.mxu0 0.0
    %1758 = vmatprep.subr.mxu0 0.0
    %1759 = vmatpush1.xpose.msra.mxu0 0.0
    %1760 = vmatprep.subr.mxu0 0.0
    %1761 = vmatpush1.xpose.msra.mxu0 0.0
    %1762 = vmatprep.subr.mxu0 0.0
    %1763 = vmatpush1.xpose.msra.mxu0 0.0
    %1764 = vmatprep.subr.mxu0 0.0
    %1765 = vmatpush1.xpose.msra.mxu0 0.0
    %1766 = vmatprep.subr.mxu0 0.0
    %1767 = vmatpush1.xpose.msra.mxu0 0.0
    %1768 = vmatprep.subr.mxu0 0.0
    %1769 = vmatpush1.xpose.msra.mxu0 0.0
    %1770 = vmatprep.subr.mxu0 0.0
    %1771 = vmatpush1.xpose.msra.mxu0 0.0
    %1772 = vmatprep.subr.mxu0 0.0
    %1773 = vmatpush1.xpose.msra.mxu0 0.0
    %1774 = vmatprep.subr.mxu0 0.0
    %1775 = vmatpush1.xpose.msra.mxu0 0.0
    %1776 = vmatprep.subr.mxu0 0.0
    %1777 = vmatpush1.xpose.msra.mxu0 0.0
    %1778 = vmatprep.subr.mxu0 0.0
    %1779 = vmatpush1.xpose.msra.mxu0 0.0
    %1780 = vmatprep.subr.mxu0 0.0
    %1781 = vmatpush1.xpose.msra.mxu0 0.0
    %1782 = vmatprep.subr.mxu0 0.0
    %1783 = vmatpush1.xpose.msra.mxu0 0.0
    %1784 = vmatprep.subr.mxu0 0.0
    %1785 = vmatpush1.xpose.msra.mxu0 0.0
    %1786 = vmatprep.subr.mxu0 0.0
    %1787 = vmatpush1.xpose.msra.mxu0 0.0
    %1788 = vmatprep.subr.mxu0 0.0
    %1789 = vmatpush1.xpose.msra.mxu0 0.0
    %1790 = vmatprep.subr.mxu0 0.0
    %1791 = vmatpush1.xpose.msra.mxu0 0.0
    %1792 = vmatprep.subr.mxu0 0.0
    %1793 = vmatpush1.xpose.msra.mxu0 0.0
    %1794 = vmatprep.subr.mxu0 0.0
    %1795 = vmatpush1.xpose.msra.mxu0 0.0
    %1796 = vmatprep.subr.mxu0 0.0
    %1797 = vmatpush1.xpose.msra.mxu0 0.0
    %1798 = vmatprep.mubr.f32.mxu0 0.0
    %1799 = vmatmul.mubr.f32.gmra.mrb[0].mxu0 %v1730
    %v1800 = vpop.f32.mrb[0].mxu0
    %v1801 = vadd.f32 0.0, %v1800
    %v1802 = vpop.f32.mrb[0].mxu0
    %1803 = vdwg.mxu0
    %1804 = vrot.lane.b32.xlu0 %v1396, 112
    %v1805 = vpop.permute.xlu0 %1804
    %1806 = vrot.lane.b32.xlu0 %v1396, 80
    %v1807 = vpop.permute.xlu0 %1806
    %v1808 = vsel %vm304, %v1805, 0
    %v1810 = vsel %vm304, %v1807, 0
    %1812 = vmatprep.subr.mxu0 0.0
    %1813 = vmatpush1.xpose.msra.mxu0 %v1810
    %1814 = vmatprep.subr.mxu0 0.0
    %1815 = vmatpush1.xpose.msra.mxu0 0.0
    %1816 = vmatprep.subr.mxu0 0.0
    %1817 = vmatpush1.xpose.msra.mxu0 0.0
    %1818 = vmatprep.subr.mxu0 0.0
    %1819 = vmatpush1.xpose.msra.mxu0 0.0
    %1820 = vmatprep.subr.mxu0 0.0
    %1821 = vmatpush1.xpose.msra.mxu0 0.0
    %1822 = vmatprep.subr.mxu0 0.0
    %1823 = vmatpush1.xpose.msra.mxu0 0.0
    %1824 = vmatprep.subr.mxu0 0.0
    %1825 = vmatpush1.xpose.msra.mxu0 0.0
    %1826 = vmatprep.subr.mxu0 0.0
    %1827 = vmatpush1.xpose.msra.mxu0 0.0
    %1828 = vmatprep.subr.mxu0 0.0
    %1829 = vmatpush1.xpose.msra.mxu0 0.0
    %1830 = vmatprep.subr.mxu0 0.0
    %1831 = vmatpush1.xpose.msra.mxu0 0.0
    %1832 = vmatprep.subr.mxu0 0.0
    %1833 = vmatpush1.xpose.msra.mxu0 0.0
    %1834 = vmatprep.subr.mxu0 0.0
    %1835 = vmatpush1.xpose.msra.mxu0 0.0
    %1836 = vmatprep.subr.mxu0 0.0
    %1837 = vmatpush1.xpose.msra.mxu0 0.0
    %1838 = vmatprep.subr.mxu0 0.0
    %1839 = vmatpush1.xpose.msra.mxu0 0.0
    %1840 = vmatprep.subr.mxu0 0.0
    %1841 = vmatpush1.xpose.msra.mxu0 0.0
    %1842 = vmatprep.subr.mxu0 0.0
    %1843 = vmatpush1.xpose.msra.mxu0 0.0
    %1844 = vmatprep.subr.mxu0 0.0
    %1845 = vmatpush1.xpose.msra.mxu0 0.0
    %1846 = vmatprep.subr.mxu0 0.0
    %1847 = vmatpush1.xpose.msra.mxu0 0.0
    %1848 = vmatprep.subr.mxu0 0.0
    %1849 = vmatpush1.xpose.msra.mxu0 0.0
    %1850 = vmatprep.subr.mxu0 0.0
    %1851 = vmatpush1.xpose.msra.mxu0 0.0
    %1852 = vmatprep.subr.mxu0 0.0
    %1853 = vmatpush1.xpose.msra.mxu0 0.0
    %1854 = vmatprep.subr.mxu0 0.0
    %1855 = vmatpush1.xpose.msra.mxu0 0.0
    %1856 = vmatprep.subr.mxu0 0.0
    %1857 = vmatpush1.xpose.msra.mxu0 0.0
    %1858 = vmatprep.subr.mxu0 0.0
    %1859 = vmatpush1.xpose.msra.mxu0 0.0
    %1860 = vmatprep.subr.mxu0 0.0
    %1861 = vmatpush1.xpose.msra.mxu0 0.0
    %1862 = vmatprep.subr.mxu0 0.0
    %1863 = vmatpush1.xpose.msra.mxu0 0.0
    %1864 = vmatprep.subr.mxu0 0.0
    %1865 = vmatpush1.xpose.msra.mxu0 0.0
    %1866 = vmatprep.subr.mxu0 0.0
    %1867 = vmatpush1.xpose.msra.mxu0 0.0
    %1868 = vmatprep.subr.mxu0 0.0
    %1869 = vmatpush1.xpose.msra.mxu0 0.0
    %1870 = vmatprep.subr.mxu0 0.0
    %1871 = vmatpush1.xpose.msra.mxu0 0.0
    %1872 = vmatprep.subr.mxu0 0.0
    %1873 = vmatpush1.xpose.msra.mxu0 0.0
    %1874 = vmatprep.subr.mxu0 0.0
    %1875 = vmatpush1.xpose.msra.mxu0 0.0
    %1876 = vmatprep.mubr.f32.mxu0 0.0
    %1877 = vmatmul.mubr.f32.gmra.mrb[0].mxu0 %v1808
    %v1878 = vpop.f32.mrb[0].mxu0
    %v1879 = vadd.f32 0.0, %v1878
    %v1880 = vpop.f32.mrb[0].mxu0
    %1881 = vdwg.mxu0
    %v1882 = vmul.f32 %v1801, 0.25
    %v1883 = vmul.f32 %v1879, 0.25
    %v1884 = vadd.f32 %v1882, %v461
    %v1885 = vadd.f32 %v1883, %v465
    %v1886 = vmul.f32 %v1884, 1.442695
    %v1887 = vpow.pop %v1886
    %v1888 = vmul.f32 %v1885, 1.442695
    %v1889 = vpow.pop %v1888
    %v1890 = vsel %vm474, %v1887, 0.0
    %1891 = vadd.xlane.f32.xlu0 %v1890
    %v1892 = vpop.xlane.xlu0 %1891
    %v1893 = vsel %vm474, %v1889, 0.0
    %1894 = vadd.xlane.f32.xlu0 %v1893
    %v1895 = vpop.xlane.xlu0 %1894
    %v1896 = vrcp.pop %v1892
    %v1897 = vrcp.pop %v1895
    %v1898 = vmul.f32 %v1887, %v1896
    %v1899 = vmul.f32 %v1889, %v1897
    %1900 = vrot.lane.b32.xlu0 %v1393, 48
    %v1901 = vpop.permute.xlu0 %1900
    %v1904 = vsel %vm474, %v1898, 0
    %1906 = vmatprep.subr.mxu0 0.0
    %1907 = vmatpush1.msra.mxu0 %v1901
    %1908 = vmatprep.subr.mxu0 0.0
    %1909 = vmatpush1.msra.mxu0 0.0
    %1910 = vmatprep.subr.mxu0 0.0
    %1911 = vmatpush1.msra.mxu0 0.0
    %1912 = vmatprep.subr.mxu0 0.0
    %1913 = vmatpush1.msra.mxu0 0.0
    %1914 = vmatprep.subr.mxu0 0.0
    %1915 = vmatpush1.msra.mxu0 0.0
    %1916 = vmatprep.subr.mxu0 0.0
    %1917 = vmatpush1.msra.mxu0 0.0
    %1918 = vmatprep.subr.mxu0 0.0
    %1919 = vmatpush1.msra.mxu0 0.0
    %1920 = vmatprep.subr.mxu0 0.0
    %1921 = vmatpush1.msra.mxu0 0.0
    %1922 = vmatprep.subr.mxu0 0.0
    %1923 = vmatpush1.msra.mxu0 0.0
    %1924 = vmatprep.subr.mxu0 0.0
    %1925 = vmatpush1.msra.mxu0 0.0
    %1926 = vmatprep.subr.mxu0 0.0
    %1927 = vmatpush1.msra.mxu0 0.0
    %1928 = vmatprep.subr.mxu0 0.0
    %1929 = vmatpush1.msra.mxu0 0.0
    %1930 = vmatprep.subr.mxu0 0.0
    %1931 = vmatpush1.msra.mxu0 0.0
    %1932 = vmatprep.subr.mxu0 0.0
    %1933 = vmatpush1.msra.mxu0 0.0
    %1934 = vmatprep.subr.mxu0 0.0
    %1935 = vmatpush1.msra.mxu0 0.0
    %1936 = vmatprep.subr.mxu0 0.0
    %1937 = vmatpush1.msra.mxu0 0.0
    %1938 = vmatprep.subr.mxu0 0.0
    %1939 = vmatpush1.msra.mxu0 0.0
    %1940 = vmatprep.subr.mxu0 0.0
    %1941 = vmatpush1.msra.mxu0 0.0
    %1942 = vmatprep.subr.mxu0 0.0
    %1943 = vmatpush1.msra.mxu0 0.0
    %1944 = vmatprep.subr.mxu0 0.0
    %1945 = vmatpush1.msra.mxu0 0.0
    %1946 = vmatprep.subr.mxu0 0.0
    %1947 = vmatpush1.msra.mxu0 0.0
    %1948 = vmatprep.subr.mxu0 0.0
    %1949 = vmatpush1.msra.mxu0 0.0
    %1950 = vmatprep.subr.mxu0 0.0
    %1951 = vmatpush1.msra.mxu0 0.0
    %1952 = vmatprep.subr.mxu0 0.0
    %1953 = vmatpush1.msra.mxu0 0.0
    %1954 = vmatprep.subr.mxu0 0.0
    %1955 = vmatpush1.msra.mxu0 0.0
    %1956 = vmatprep.subr.mxu0 0.0
    %1957 = vmatpush1.msra.mxu0 0.0
    %1958 = vmatprep.subr.mxu0 0.0
    %1959 = vmatpush1.msra.mxu0 0.0
    %1960 = vmatprep.subr.mxu0 0.0
    %1961 = vmatpush1.msra.mxu0 0.0
    %1962 = vmatprep.subr.mxu0 0.0
    %1963 = vmatpush1.msra.mxu0 0.0
    %1964 = vmatprep.subr.mxu0 0.0
    %1965 = vmatpush1.msra.mxu0 0.0
    %1966 = vmatprep.subr.mxu0 0.0
    %1967 = vmatpush1.msra.mxu0 0.0
    %1968 = vmatprep.subr.mxu0 0.0
    %1969 = vmatpush1.msra.mxu0 0.0
    %1970 = vmatprep.mubr.f32.mxu0 0.0
    %1971 = vmatmul.mubr.f32.gmra.mrb[0].mxu0 %v1904
    %v1972 = vpop.f32.mrb[0].mxu0
    %v1973 = vadd.f32 0.0, %v1972
    %v1974 = vpop.f32.mrb[0].mxu0
    %1975 = vdwg.mxu0
    %1976 = vrot.lane.b32.xlu0 %v1396, 48
    %v1977 = vpop.permute.xlu0 %1976
    %v1980 = vsel %vm474, %v1899, 0
    %1982 = vmatprep.subr.mxu0 0.0
    %1983 = vmatpush1.msra.mxu0 %v1977
    %1984 = vmatprep.subr.mxu0 0.0
    %1985 = vmatpush1.msra.mxu0 0.0
    %1986 = vmatprep.subr.mxu0 0.0
    %1987 = vmatpush1.msra.mxu0 0.0
    %1988 = vmatprep.subr.mxu0 0.0
    %1989 = vmatpush1.msra.mxu0 0.0
    %1990 = vmatprep.subr.mxu0 0.0
    %1991 = vmatpush1.msra.mxu0 0.0
    %1992 = vmatprep.subr.mxu0 0.0
    %1993 = vmatpush1.msra.mxu0 0.0
    %1994 = vmatprep.subr.mxu0 0.0
    %1995 = vmatpush1.msra.mxu0 0.0
    %1996 = vmatprep.subr.mxu0 0.0
    %1997 = vmatpush1.msra.mxu0 0.0
    %1998 = vmatprep.subr.mxu0 0.0
    %1999 = vmatpush1.msra.mxu0 0.0
    %2000 = vmatprep.subr.mxu0 0.0
    %2001 = vmatpush1.msra.mxu0 0.0
    %2002 = vmatprep.subr.mxu0 0.0
    %2003 = vmatpush1.msra.mxu0 0.0
    %2004 = vmatprep.subr.mxu0 0.0
    %2005 = vmatpush1.msra.mxu0 0.0
    %2006 = vmatprep.subr.mxu0 0.0
    %2007 = vmatpush1.msra.mxu0 0.0
    %2008 = vmatprep.subr.mxu0 0.0
    %2009 = vmatpush1.msra.mxu0 0.0
    %2010 = vmatprep.subr.mxu0 0.0
    %2011 = vmatpush1.msra.mxu0 0.0
    %2012 = vmatprep.subr.mxu0 0.0
    %2013 = vmatpush1.msra.mxu0 0.0
    %2014 = vmatprep.subr.mxu0 0.0
    %2015 = vmatpush1.msra.mxu0 0.0
    %2016 = vmatprep.subr.mxu0 0.0
    %2017 = vmatpush1.msra.mxu0 0.0
    %2018 = vmatprep.subr.mxu0 0.0
    %2019 = vmatpush1.msra.mxu0 0.0
    %2020 = vmatprep.subr.mxu0 0.0
    %2021 = vmatpush1.msra.mxu0 0.0
    %2022 = vmatprep.subr.mxu0 0.0
    %2023 = vmatpush1.msra.mxu0 0.0
    %2024 = vmatprep.subr.mxu0 0.0
    %2025 = vmatpush1.msra.mxu0 0.0
    %2026 = vmatprep.subr.mxu0 0.0
    %2027 = vmatpush1.msra.mxu0 0.0
    %2028 = vmatprep.subr.mxu0 0.0
    %2029 = vmatpush1.msra.mxu0 0.0
    %2030 = vmatprep.subr.mxu0 0.0
    %2031 = vmatpush1.msra.mxu0 0.0
    %2032 = vmatprep.subr.mxu0 0.0
    %2033 = vmatpush1.msra.mxu0 0.0
    %2034 = vmatprep.subr.mxu0 0.0
    %2035 = vmatpush1.msra.mxu0 0.0
    %2036 = vmatprep.subr.mxu0 0.0
    %2037 = vmatpush1.msra.mxu0 0.0
    %2038 = vmatprep.subr.mxu0 0.0
    %2039 = vmatpush1.msra.mxu0 0.0
    %2040 = vmatprep.subr.mxu0 0.0
    %2041 = vmatpush1.msra.mxu0 0.0
    %2042 = vmatprep.subr.mxu0 0.0
    %2043 = vmatpush1.msra.mxu0 0.0
    %2044 = vmatprep.subr.mxu0 0.0
    %2045 = vmatpush1.msra.mxu0 0.0
    %2046 = vmatprep.mubr.f32.mxu0 0.0
    %2047 = vmatmul.mubr.f32.gmra.mrb[0].mxu0 %v1980
    %v2048 = vpop.f32.mrb[0].mxu0
    %v2049 = vadd.f32 0.0, %v2048
    %v2050 = vpop.f32.mrb[0].mxu0
    %2051 = vdwg.mxu0
    %v2052 = vpack.c.bf16 %v2049, %v1973
    %v2053 = vld [vmem:[%s1334 + $0x10] sm:$0xf]
    %v2054 = vld [vmem:[%s1334 + $0x18] sm:$0xf]
    %v2057 = vunpack.c.l.b16 %v2053
    %v2058 = vunpack.c.l.b16 %v2054
    %v2059 = vpack.c.b16 %v2058, %v2057
    %2060 = vrot.lane.b32.xlu0 %v2059, 32
    %v2061 = vpop.permute.xlu0 %2060
    %v2064 = vsel %vm304, %v2052, 0
    %2066 = vmatprep.subr.bf16.mxu0 0
    %2067 = vmatpush1.bf16.msra.mxu0 %v2061
    %2068 = vmatprep.subr.bf16.mxu0 0
    %2069 = vmatpush1.bf16.msra.mxu0 0
    %2070 = vmatprep.subr.bf16.mxu0 0
    %2071 = vmatpush1.bf16.msra.mxu0 0
    %2072 = vmatprep.subr.bf16.mxu0 0
    %2073 = vmatpush1.bf16.msra.mxu0 0
    %2074 = vmatprep.subr.bf16.mxu0 0
    %2075 = vmatpush1.bf16.msra.mxu0 0
    %2076 = vmatprep.subr.bf16.mxu0 0
    %2077 = vmatpush1.bf16.msra.mxu0 0
    %2078 = vmatprep.subr.bf16.mxu0 0
    %2079 = vmatpush1.bf16.msra.mxu0 0
    %2080 = vmatprep.subr.bf16.mxu0 0
    %2081 = vmatpush1.bf16.msra.mxu0 0
    %2082 = vmatprep.subr.bf16.mxu0 0
    %2083 = vmatpush1.bf16.msra.mxu0 0
    %2084 = vmatprep.subr.bf16.mxu0 0
    %2085 = vmatpush1.bf16.msra.mxu0 0
    %2086 = vmatprep.subr.bf16.mxu0 0
    %2087 = vmatpush1.bf16.msra.mxu0 0
    %2088 = vmatprep.subr.bf16.mxu0 0
    %2089 = vmatpush1.bf16.msra.mxu0 0
    %2090 = vmatprep.subr.bf16.mxu0 0
    %2091 = vmatpush1.bf16.msra.mxu0 0
    %2092 = vmatprep.subr.bf16.mxu0 0
    %2093 = vmatpush1.bf16.msra.mxu0 0
    %2094 = vmatprep.subr.bf16.mxu0 0
    %2095 = vmatpush1.bf16.msra.mxu0 0
    %2096 = vmatprep.subr.bf16.mxu0 0
    %2097 = vmatpush1.bf16.msra.mxu0 0
    %2098 = vmatprep.mubr.bf16.mxu0 0
    %2099 = vmatmul.mubr.bf16.gmra.mrb[0].mxu0 %v2064
    %v2100 = vpop.f32.mrb[0].mxu0
    %v2101 = vadd.f32 0.0, %v2100
    %v2102 = vpop.f32.mrb[0].mxu0
    %v2103 = vpop.f32.mrb[0].mxu0
    %v2104 = vadd.f32 0.0, %v2103
    %v2105 = vpop.f32.mrb[0].mxu0
    %2106 = vdwg.mxu0
    %v2109 = vunpack.c.l.b16 %v1724
    %v2110 = vunpack.c.l.b16 %v1725
    %v2111 = vpack.c.b16 %v2110, %v2109
    %2112 = vrot.lane.b32.xlu0 %v2111, 32
    %v2113 = vpop.permute.xlu0 %2112
    %v2116 = vsel %vm304, %v1723, 0
    %2118 = vmatprep.subr.bf16.mxu0 0
    %2119 = vmatpush1.bf16.msra.mxu0 %v2113
    %2120 = vmatprep.subr.bf16.mxu0 0
    %2121 = vmatpush1.bf16.msra.mxu0 0
    %2122 = vmatprep.subr.bf16.mxu0 0
    %2123 = vmatpush1.bf16.msra.mxu0 0
    %2124 = vmatprep.subr.bf16.mxu0 0
    %2125 = vmatpush1.bf16.msra.mxu0 0
    %2126 = vmatprep.subr.bf16.mxu0 0
    %2127 = vmatpush1.bf16.msra.mxu0 0
    %2128 = vmatprep.subr.bf16.mxu0 0
    %2129 = vmatpush1.bf16.msra.mxu0 0
    %2130 = vmatprep.subr.bf16.mxu0 0
    %2131 = vmatpush1.bf16.msra.mxu0 0
    %2132 = vmatprep.subr.bf16.mxu0 0
    %2133 = vmatpush1.bf16.msra.mxu0 0
    %2134 = vmatprep.subr.bf16.mxu0 0
    %2135 = vmatpush1.bf16.msra.mxu0 0
    %2136 = vmatprep.subr.bf16.mxu0 0
    %2137 = vmatpush1.bf16.msra.mxu0 0
    %2138 = vmatprep.subr.bf16.mxu0 0
    %2139 = vmatpush1.bf16.msra.mxu0 0
    %2140 = vmatprep.subr.bf16.mxu0 0
    %2141 = vmatpush1.bf16.msra.mxu0 0
    %2142 = vmatprep.subr.bf16.mxu0 0
    %2143 = vmatpush1.bf16.msra.mxu0 0
    %2144 = vmatprep.subr.bf16.mxu0 0
    %2145 = vmatpush1.bf16.msra.mxu0 0
    %2146 = vmatprep.subr.bf16.mxu0 0
    %2147 = vmatpush1.bf16.msra.mxu0 0
    %2148 = vmatprep.subr.bf16.mxu0 0
    %2149 = vmatpush1.bf16.msra.mxu0 0
    %2150 = vmatprep.mubr.bf16.mxu0 0
    %2151 = vmatmul.mubr.bf16.gmra.mrb[0].mxu0 %v2116
    %v2152 = vpop.f32.mrb[0].mxu0
    %v2153 = vadd.f32 %v2101, %v2152
    %v2154 = vpop.f32.mrb[0].mxu0
    %v2155 = vpop.f32.mrb[0].mxu0
    %v2156 = vadd.f32 %v2104, %v2155
    %v2157 = vpop.f32.mrb[0].mxu0
    %2158 = vdwg.mxu0
    %v2159 = vlaneseq
    %v2160 = vshrl.u32 %v2159, 7
    %v2161 = vsub.s32 0, %v2160
    %v2162 = vrot.slane %v1326, %v2161
    %v2163 = vadd.f32 %v2153, %v2162
    %v2164 = vadd.f32 %v2156, %v2162
    %v2165 = vadd.f32 %v1322, %v2163
    %v2166 = vadd.f32 %v1323, %v2164
    %v2167 = vsel %vm161, %v2165, 0.0
    %2168 = vadd.xlane.f32.xlu0 %v2167
    %v2169 = vpop.xlane.xlu0 %2168
    %v2170 = vsel %vm161, %v2166, 0.0
    %2171 = vadd.xlane.f32.xlu0 %v2170
    %v2172 = vpop.xlane.xlu0 %2171
    %v2173 = vmul.f32 %v2169, %v168
    %v2174 = vmul.f32 %v2172, %v168
    %v2175 = vsub.f32 %v2165, %v2173
    %v2176 = vsub.f32 %v2166, %v2174
    %v2177 = vmul.f32 %v2175, %v2175
    %v2178 = vmul.f32 %v2176, %v2176
    %v2179 = vsel %vm161, %v2177, 0.0
    %2180 = vadd.xlane.f32.xlu0 %v2179
    %v2181 = vpop.xlane.xlu0 %2180
    %v2182 = vsel %vm161, %v2178, 0.0
    %2183 = vadd.xlane.f32.xlu0 %v2182
    %v2184 = vpop.xlane.xlu0 %2183
    %v2185 = vmul.f32 %v2181, %v168
    %v2186 = vmul.f32 %v2184, %v168
    %v2187 = vadd.f32 %v2185, 1e-12
    %v2188 = vadd.f32 %v2186, 1e-12
    %v2189 = vrsqrt.pop %v2187
    %v2190 = vrsqrt.pop %v2188
    %v2191 = vmul.f32 %v2175, %v2189
    %v2192 = vmul.f32 %v2176, %v2190
    %v2193 = vlaneseq
    %v2194 = vshrl.u32 %v2193, 7
    %v2195 = vsub.s32 0, %v2194
    %v2196 = vrot.slane %v1327, %v2195
    %v2197 = vmul.f32 %v2191, %v2196
    %v2198 = vmul.f32 %v2192, %v2196
    %v2199 = vlaneseq
    %v2200 = vshrl.u32 %v2199, 7
    %v2201 = vsub.s32 0, %v2200
    %v2202 = vrot.slane %v1328, %v2201
    %v2203 = vadd.f32 %v2197, %v2202
    %v2204 = vadd.f32 %v2198, %v2202
    %v2205 = vpack.c.bf16 %v2204, %v2203
    %v2206 = vld [vmem:[%s1334 + $0x4] sm:$0xf]
    %v2207 = vld [vmem:[%s1334 + $0xc] sm:$0xf]
    %v2208 = vld [vmem:[%s1334 + $0x14] sm:$0xf]
    %v2209 = vld [vmem:[%s1334 + $0x1c] sm:$0xf]
    %v2210 = vlaneseq
    %v2211 = vshrl.u32 %v2210, 7
    %v2212 = vsub.s32 0, %v2211
    %v2213 = vrot.slane %v1329, %v2212
    %v2218 = vunpack.c.l.b16 %v2206
    %v2219 = vunpack.c.l.b16 %v2207
    %v2220 = vunpack.c.l.b16 %v2208
    %v2221 = vunpack.c.l.b16 %v2209
    %v2222 = vpack.c.b16 %v2219, %v2218
    %v2223 = vpack.c.b16 %v2221, %v2220
    %v2227 = vsel %vm161, %v2205, 0
    %2229 = vmatprep.subr.bf16.mxu0 0
    %2230 = vmatpush1.bf16.msra.mxu0 %v2222
    %2231 = vmatprep.subr.bf16.mxu0 0
    %2232 = vmatpush1.bf16.msra.mxu0 %v2223
    %2233 = vmatprep.subr.bf16.mxu0 0
    %2234 = vmatpush1.bf16.msra.mxu0 0
    %2235 = vmatprep.subr.bf16.mxu0 0
    %2236 = vmatpush1.bf16.msra.mxu0 0
    %2237 = vmatprep.subr.bf16.mxu0 0
    %2238 = vmatpush1.bf16.msra.mxu0 0
    %2239 = vmatprep.subr.bf16.mxu0 0
    %2240 = vmatpush1.bf16.msra.mxu0 0
    %2241 = vmatprep.subr.bf16.mxu0 0
    %2242 = vmatpush1.bf16.msra.mxu0 0
    %2243 = vmatprep.subr.bf16.mxu0 0
    %2244 = vmatpush1.bf16.msra.mxu0 0
    %2245 = vmatprep.subr.bf16.mxu0 0
    %2246 = vmatpush1.bf16.msra.mxu0 0
    %2247 = vmatprep.subr.bf16.mxu0 0
    %2248 = vmatpush1.bf16.msra.mxu0 0
    %2249 = vmatprep.subr.bf16.mxu0 0
    %2250 = vmatpush1.bf16.msra.mxu0 0
    %2251 = vmatprep.subr.bf16.mxu0 0
    %2252 = vmatpush1.bf16.msra.mxu0 0
    %2253 = vmatprep.subr.bf16.mxu0 0
    %2254 = vmatpush1.bf16.msra.mxu0 0
    %2255 = vmatprep.subr.bf16.mxu0 0
    %2256 = vmatpush1.bf16.msra.mxu0 0
    %2257 = vmatprep.subr.bf16.mxu0 0
    %2258 = vmatpush1.bf16.msra.mxu0 0
    %2259 = vmatprep.subr.bf16.mxu0 0
    %2260 = vmatpush1.bf16.msra.mxu0 0
    %2261 = vmatprep.mubr.bf16.mxu0 0
    %2262 = vmatmul.mubr.bf16.gmra.mrb[0].mxu0 %v2227
    %v2263 = vpop.f32.mrb[0].mxu0
    %v2264 = vadd.f32 %v2213, %v2263
    %v2265 = vpop.f32.mrb[0].mxu0
    %v2266 = vpop.f32.mrb[0].mxu0
    %v2267 = vadd.f32 %v2213, %v2266
    %v2268 = vpop.f32.mrb[0].mxu0
    %2269 = vdwg.mxu0
    %v2270 = vmul.f32 %v2264, %v2264
    %v2271 = vmul.f32 %v2267, %v2267
    %v2272 = vmul.f32 %v2264, %v2270
    %v2273 = vmul.f32 %v2267, %v2271
    %v2274 = vmul.f32 %v2272, 0.044715
    %v2275 = vmul.f32 %v2273, 0.044715
    %v2276 = vadd.f32 %v2264, %v2274
    %v2277 = vadd.f32 %v2267, %v2275
    %v2278 = vmul.f32 %v2276, 0.7978846
    %v2279 = vmul.f32 %v2277, 0.7978846
    %v2280 = vtanh.pop %v2278
    %v2281 = vtanh.pop %v2279
    %v2282 = vadd.f32 %v2280, 1.0
    %v2283 = vadd.f32 %v2281, 1.0
    %v2284 = vmul.f32 %v2282, 0.5
    %v2285 = vmul.f32 %v2283, 0.5
    %v2286 = vmul.f32 %v2264, %v2284
    %v2287 = vmul.f32 %v2267, %v2285
    %v2288 = vpack.c.bf16 %v2287, %v2286
    %v2289 = vld [vmem:[%s1334 + $0x20] sm:$0xf]
    %v2290 = vld [vmem:[%s1334 + $0x28] sm:$0xf]
    %v2291 = vld [vmem:[%s1334 + $0x30] sm:$0xf]
    %v2292 = vld [vmem:[%s1334 + $0x38] sm:$0xf]
    %v2293 = vld [vmem:[%s1334 + $0x40] sm:$0xf]
    %v2294 = vld [vmem:[%s1334 + $0x48] sm:$0xf]
    %v2295 = vld [vmem:[%s1334 + $0x50] sm:$0xf]
    %v2296 = vld [vmem:[%s1334 + $0x58] sm:$0xf]
    %v2297 = vlaneseq
    %v2298 = vshrl.u32 %v2297, 7
    %v2299 = vsub.s32 0, %v2298
    %v2300 = vrot.slane %v1330, %v2299
    %v2309 = vunpack.c.l.b16 %v2289
    %v2310 = vunpack.c.l.b16 %v2290
    %v2311 = vunpack.c.l.b16 %v2291
    %v2312 = vunpack.c.l.b16 %v2292
    %v2313 = vunpack.c.l.b16 %v2293
    %v2314 = vunpack.c.l.b16 %v2294
    %v2315 = vunpack.c.l.b16 %v2295
    %v2316 = vunpack.c.l.b16 %v2296
    %v2317 = vpack.c.b16 %v2310, %v2309
    %v2318 = vpack.c.b16 %v2312, %v2311
    %v2319 = vpack.c.b16 %v2314, %v2313
    %v2320 = vpack.c.b16 %v2316, %v2315
    %v2326 = vsel %vm1239, %v2288, 0
    %2328 = vmatprep.subr.bf16.mxu0 0
    %2329 = vmatpush1.bf16.msra.mxu0 %v2317
    %2330 = vmatprep.subr.bf16.mxu0 0
    %2331 = vmatpush1.bf16.msra.mxu0 %v2318
    %2332 = vmatprep.subr.bf16.mxu0 0
    %2333 = vmatpush1.bf16.msra.mxu0 %v2319
    %2334 = vmatprep.subr.bf16.mxu0 0
    %2335 = vmatpush1.bf16.msra.mxu0 %v2320
    %2336 = vmatprep.subr.bf16.mxu0 0
    %2337 = vmatpush1.bf16.msra.mxu0 0
    %2338 = vmatprep.subr.bf16.mxu0 0
    %2339 = vmatpush1.bf16.msra.mxu0 0
    %2340 = vmatprep.subr.bf16.mxu0 0
    %2341 = vmatpush1.bf16.msra.mxu0 0
    %2342 = vmatprep.subr.bf16.mxu0 0
    %2343 = vmatpush1.bf16.msra.mxu0 0
    %2344 = vmatprep.subr.bf16.mxu0 0
    %2345 = vmatpush1.bf16.msra.mxu0 0
    %2346 = vmatprep.subr.bf16.mxu0 0
    %2347 = vmatpush1.bf16.msra.mxu0 0
    %2348 = vmatprep.subr.bf16.mxu0 0
    %2349 = vmatpush1.bf16.msra.mxu0 0
    %2350 = vmatprep.subr.bf16.mxu0 0
    %2351 = vmatpush1.bf16.msra.mxu0 0
    %2352 = vmatprep.subr.bf16.mxu0 0
    %2353 = vmatpush1.bf16.msra.mxu0 0
    %2354 = vmatprep.subr.bf16.mxu0 0
    %2355 = vmatpush1.bf16.msra.mxu0 0
    %2356 = vmatprep.subr.bf16.mxu0 0
    %2357 = vmatpush1.bf16.msra.mxu0 0
    %2358 = vmatprep.subr.bf16.mxu0 0
    %2359 = vmatpush1.bf16.msra.mxu0 0
    %2360 = vmatprep.mubr.bf16.mxu0 0
    %2361 = vmatmul.mubr.bf16.gmra.mrb[0].mxu0 %v2326
    %v2362 = vpop.f32.mrb[0].mxu0
    %v2363 = vadd.f32 %v2300, %v2362
    %v2364 = vpop.f32.mrb[0].mxu0
    %v2365 = vpop.f32.mrb[0].mxu0
    %v2366 = vadd.f32 %v2300, %v2365
    %v2367 = vpop.f32.mrb[0].mxu0
    %2368 = vdwg.mxu0
    %v2369 = vadd.f32 %v2203, %v2363
    %v2370 = vadd.f32 %v2204, %v2366
    %v2371 = vsel %vm161, %v2369, 0.0
    %2372 = vadd.xlane.f32.xlu0 %v2371
    %v2373 = vpop.xlane.xlu0 %2372
    %v2374 = vsel %vm161, %v2370, 0.0
    %2375 = vadd.xlane.f32.xlu0 %v2374
    %v2376 = vpop.xlane.xlu0 %2375
    %v2377 = vmul.f32 %v2373, %v168
    %v2378 = vmul.f32 %v2376, %v168
    %v2379 = vsub.f32 %v2369, %v2377
    %v2380 = vsub.f32 %v2370, %v2378
    %v2381 = vmul.f32 %v2379, %v2379
    %v2382 = vmul.f32 %v2380, %v2380
    %v2383 = vsel %vm161, %v2381, 0.0
    %2384 = vadd.xlane.f32.xlu0 %v2383
    %v2385 = vpop.xlane.xlu0 %2384
    %v2386 = vsel %vm161, %v2382, 0.0
    %2387 = vadd.xlane.f32.xlu0 %v2386
    %v2388 = vpop.xlane.xlu0 %2387
    %v2389 = vmul.f32 %v2385, %v168
    %v2390 = vmul.f32 %v2388, %v168
    %v2391 = vadd.f32 %v2389, 1e-12
    %v2392 = vadd.f32 %v2390, 1e-12
    %v2393 = vrsqrt.pop %v2391
    %v2394 = vrsqrt.pop %v2392
    %v2395 = vmul.f32 %v2379, %v2393
    %v2396 = vmul.f32 %v2380, %v2394
    %v2397 = vlaneseq
    %v2398 = vshrl.u32 %v2397, 7
    %v2399 = vsub.s32 0, %v2398
    %v2400 = vrot.slane %v1331, %v2399
    %v2401 = vmul.f32 %v2395, %v2400
    %v2402 = vmul.f32 %v2396, %v2400
    %v2403 = vlaneseq
    %v2404 = vshrl.u32 %v2403, 7
    %v2405 = vsub.s32 0, %v2404
    %v2406 = vrot.slane %v1332, %v2405
    %v2407 = vadd.f32 %v2401, %v2406
    %v2408 = vadd.f32 %v2402, %v2406
    %v2409 = vld [vmem:[%s3 + $0x14] sm:$0xff]
    %v2410 = vld [vmem:[%s3 + $0x1c] sm:$0xff]
    %v2411 = vld [vmem:[%s3 + $0x24] sm:$0xff]
    %v2412 = vld [vmem:[%s3 + $0x2c] sm:$0xff]
    %v2413 = vld [vmem:[%s3 + $0x12] sm:$0x1]
    %v2414 = vlaneseq
    %v2415 = vshrl.u32 %v2414, 7
    %v2416 = vsub.s32 0, %v2415
    %v2417 = vrot.slane %v2413, %v2416
    %v2420 = vrot.slane %v2408, 7
    %vm2421 = vcmask 1041409
    %v2422 = vsel %vm2421, %v2420, %v2407
    %v2423 = vsel %vm161, %v2422, 0
    %2425 = vmatprep.subr.mxu0 0.0
    %2426 = vmatpush1.msra.mxu0 %v2409
    %2427 = vmatprep.subr.mxu0 0.0
    %2428 = vmatpush1.msra.mxu0 %v2410
    %2429 = vmatprep.subr.mxu0 0.0
    %2430 = vmatpush1.msra.mxu0 %v2411
    %2431 = vmatprep.subr.mxu0 0.0
    %2432 = vmatpush1.msra.mxu0 %v2412
    %2433 = vmatprep.subr.mxu0 0.0
    %2434 = vmatpush1.msra.mxu0 0.0
    %2435 = vmatprep.subr.mxu0 0.0
    %2436 = vmatpush1.msra.mxu0 0.0
    %2437 = vmatprep.subr.mxu0 0.0
    %2438 = vmatpush1.msra.mxu0 0.0
    %2439 = vmatprep.subr.mxu0 0.0
    %2440 = vmatpush1.msra.mxu0 0.0
    %2441 = vmatprep.subr.mxu0 0.0
    %2442 = vmatpush1.msra.mxu0 0.0
    %2443 = vmatprep.subr.mxu0 0.0
    %2444 = vmatpush1.msra.mxu0 0.0
    %2445 = vmatprep.subr.mxu0 0.0
    %2446 = vmatpush1.msra.mxu0 0.0
    %2447 = vmatprep.subr.mxu0 0.0
    %2448 = vmatpush1.msra.mxu0 0.0
    %2449 = vmatprep.subr.mxu0 0.0
    %2450 = vmatpush1.msra.mxu0 0.0
    %2451 = vmatprep.subr.mxu0 0.0
    %2452 = vmatpush1.msra.mxu0 0.0
    %2453 = vmatprep.subr.mxu0 0.0
    %2454 = vmatpush1.msra.mxu0 0.0
    %2455 = vmatprep.subr.mxu0 0.0
    %2456 = vmatpush1.msra.mxu0 0.0
    %2457 = vmatprep.subr.mxu0 0.0
    %2458 = vmatpush1.msra.mxu0 0.0
    %2459 = vmatprep.subr.mxu0 0.0
    %2460 = vmatpush1.msra.mxu0 0.0
    %2461 = vmatprep.subr.mxu0 0.0
    %2462 = vmatpush1.msra.mxu0 0.0
    %2463 = vmatprep.subr.mxu0 0.0
    %2464 = vmatpush1.msra.mxu0 0.0
    %2465 = vmatprep.subr.mxu0 0.0
    %2466 = vmatpush1.msra.mxu0 0.0
    %2467 = vmatprep.subr.mxu0 0.0
    %2468 = vmatpush1.msra.mxu0 0.0
    %2469 = vmatprep.subr.mxu0 0.0
    %2470 = vmatpush1.msra.mxu0 0.0
    %2471 = vmatprep.subr.mxu0 0.0
    %2472 = vmatpush1.msra.mxu0 0.0
    %2473 = vmatprep.subr.mxu0 0.0
    %2474 = vmatpush1.msra.mxu0 0.0
    %2475 = vmatprep.subr.mxu0 0.0
    %2476 = vmatpush1.msra.mxu0 0.0
    %2477 = vmatprep.subr.mxu0 0.0
    %2478 = vmatpush1.msra.mxu0 0.0
    %2479 = vmatprep.subr.mxu0 0.0
    %2480 = vmatpush1.msra.mxu0 0.0
    %2481 = vmatprep.subr.mxu0 0.0
    %2482 = vmatpush1.msra.mxu0 0.0
    %2483 = vmatprep.subr.mxu0 0.0
    %2484 = vmatpush1.msra.mxu0 0.0
    %2485 = vmatprep.subr.mxu0 0.0
    %2486 = vmatpush1.msra.mxu0 0.0
    %2487 = vmatprep.subr.mxu0 0.0
    %2488 = vmatpush1.msra.mxu0 0.0
    %2489 = vmatprep.mubr.f32.mxu0 0.0
    %2490 = vmatmul.mubr.f32.gmra.mrb[0].mxu0 %v2423
    %v2491 = vpop.f32.mrb[0].mxu0
    %v2492 = vadd.f32 %v2417, %v2491
    %v2493 = vpop.f32.mrb[0].mxu0
    %2494 = vdwg.mxu0
    %v2495 = vmax.f32 %v2492, 0.0
    %v2496 = vld [vmem:[%s3 + $0x34] sm:$0xff]
    %v2497 = vld [vmem:[%s3 + $0x3c] sm:$0xff]
    %v2498 = vld [vmem:[%s3 + $0x13] sm:$0x1]
    %v2499 = vlaneseq
    %v2500 = vshrl.u32 %v2499, 7
    %v2501 = vsub.s32 0, %v2500
    %v2502 = vrot.slane %v2498, %v2501
    %v2504 = vsel %vm304, %v2495, 0
    %2506 = vmatprep.subr.mxu0 0.0
    %2507 = vmatpush1.msra.mxu0 %v2496
    %2508 = vmatprep.subr.mxu0 0.0
    %2509 = vmatpush1.msra.mxu0 %v2497
    %2510 = vmatprep.subr.mxu0 0.0
    %2511 = vmatpush1.msra.mxu0 0.0
    %2512 = vmatprep.subr.mxu0 0.0
    %2513 = vmatpush1.msra.mxu0 0.0
    %2514 = vmatprep.subr.mxu0 0.0
    %2515 = vmatpush1.msra.mxu0 0.0
    %2516 = vmatprep.subr.mxu0 0.0
    %2517 = vmatpush1.msra.mxu0 0.0
    %2518 = vmatprep.subr.mxu0 0.0
    %2519 = vmatpush1.msra.mxu0 0.0
    %2520 = vmatprep.subr.mxu0 0.0
    %2521 = vmatpush1.msra.mxu0 0.0
    %2522 = vmatprep.subr.mxu0 0.0
    %2523 = vmatpush1.msra.mxu0 0.0
    %2524 = vmatprep.subr.mxu0 0.0
    %2525 = vmatpush1.msra.mxu0 0.0
    %2526 = vmatprep.subr.mxu0 0.0
    %2527 = vmatpush1.msra.mxu0 0.0
    %2528 = vmatprep.subr.mxu0 0.0
    %2529 = vmatpush1.msra.mxu0 0.0
    %2530 = vmatprep.subr.mxu0 0.0
    %2531 = vmatpush1.msra.mxu0 0.0
    %2532 = vmatprep.subr.mxu0 0.0
    %2533 = vmatpush1.msra.mxu0 0.0
    %2534 = vmatprep.subr.mxu0 0.0
    %2535 = vmatpush1.msra.mxu0 0.0
    %2536 = vmatprep.subr.mxu0 0.0
    %2537 = vmatpush1.msra.mxu0 0.0
    %2538 = vmatprep.subr.mxu0 0.0
    %2539 = vmatpush1.msra.mxu0 0.0
    %2540 = vmatprep.subr.mxu0 0.0
    %2541 = vmatpush1.msra.mxu0 0.0
    %2542 = vmatprep.subr.mxu0 0.0
    %2543 = vmatpush1.msra.mxu0 0.0
    %2544 = vmatprep.subr.mxu0 0.0
    %2545 = vmatpush1.msra.mxu0 0.0
    %2546 = vmatprep.subr.mxu0 0.0
    %2547 = vmatpush1.msra.mxu0 0.0
    %2548 = vmatprep.subr.mxu0 0.0
    %2549 = vmatpush1.msra.mxu0 0.0
    %2550 = vmatprep.subr.mxu0 0.0
    %2551 = vmatpush1.msra.mxu0 0.0
    %2552 = vmatprep.subr.mxu0 0.0
    %2553 = vmatpush1.msra.mxu0 0.0
    %2554 = vmatprep.subr.mxu0 0.0
    %2555 = vmatpush1.msra.mxu0 0.0
    %2556 = vmatprep.subr.mxu0 0.0
    %2557 = vmatpush1.msra.mxu0 0.0
    %2558 = vmatprep.subr.mxu0 0.0
    %2559 = vmatpush1.msra.mxu0 0.0
    %2560 = vmatprep.subr.mxu0 0.0
    %2561 = vmatpush1.msra.mxu0 0.0
    %2562 = vmatprep.subr.mxu0 0.0
    %2563 = vmatpush1.msra.mxu0 0.0
    %2564 = vmatprep.subr.mxu0 0.0
    %2565 = vmatpush1.msra.mxu0 0.0
    %2566 = vmatprep.subr.mxu0 0.0
    %2567 = vmatpush1.msra.mxu0 0.0
    %2568 = vmatprep.subr.mxu0 0.0
    %2569 = vmatpush1.msra.mxu0 0.0
    %2570 = vmatprep.mubr.f32.mxu0 0.0
    %2571 = vmatmul.mubr.f32.gmra.mrb[0].mxu0 %v2504
    %v2572 = vpop.f32.mrb[0].mxu0
    %v2573 = vadd.f32 %v2502, %v2572
    %v2574 = vpop.f32.mrb[0].mxu0
    %2575 = vdwg.mxu0
    %2576 = vst [vmem:[#allocation5] sm:$0x3] %v2573
    // Predicated region
    $region30: #{bert_classifier2_forward.1} parent=1 // pred_check
      _
    $region31: #{bert_classifier2_forward.1} parent=1 // pred_check_branch
      %2578 = sbr.rel (0) target = $region33
    $region32: #{bert_classifier2_forward.1} parent=1 // pred_region
      %s2580 = ssub.s32 32, 32
      %2581 = vsyncadd [#allocation4], %s2580
      %s2583 = sshll.u32 [#allocation5], 4
      %s2584 = int_to_ptr.vmem [resolvable:$true] %s2583
      %2586 = dma.vmem_to_hbm [thread:$0]  %s2584, 32, %s6, [#allocation4]
    $region33: #{bert_classifier2_forward.1} parent=1 // pred_fallthru
      _
    // Predicated region
    $region34: #{bert_classifier2_forward.1} parent=1 // pred_check
      _
    $region35: #{bert_classifier2_forward.1} parent=1 // pred_check_branch
      %2588 = sbr.rel (0) target = $region37
    $region36: #{bert_classifier2_forward.1} parent=1 // pred_region
      %2589 = dma.done [#allocation4], 32
    $region37: #{bert_classifier2_forward.1} parent=1 // pred_fallthru
      _
    %2590 = vsyncpa [#allocation3], 1
    %2591 = vsyncpa [#allocation4], 1

</llo_original>
